<compile_context>
chip_gen: v7x
topology: tpu7x:2x2x1
jax: 0.10.0
libtpu: 0.0.40
codegen_flags: <defaults>
</compile_context>

<pallas_src>
import functools

import jax
import jax.numpy as jnp
from jax.experimental import pallas as pl
from jax.experimental.pallas import tpu as pltpu

_PADL = 8            # left halo width: interior columns start on a sublane boundary
_WIDE_K_MAX_C = 16   # use the single wide-K im2col matmul when Cin <= this


def _double_conv_kernel(x_ref, w1_ref, b1_ref, w2_ref, b2_ref, o_ref,
                        xp_ref, y1p_ref, *, H, W, TH):
    """Fused DoubleConv for one batch element (NHWC layout).

    x_ref  : (1, H, W, Cin)                 input tile (VMEM)
    w1_ref : (9*Cin, Cmid)   compute_dtype  conv1 weights, im2col layout
    b1_ref : (1, Cmid)       f32            conv1 bias
    w2_ref : (9*Cmid, Cout)  compute_dtype  conv2 weights, im2col layout
    b2_ref : (1, Cout)       f32            conv2 bias
    o_ref  : (1, H, W, Cout)                output tile
    xp_ref : (H+2, _PADL+W+1, Cin)  compute_dtype  zero-haloed input scratch
    y1p_ref: (H+2, _PADL+W+1, Cmid) compute_dtype  zero-haloed conv1 scratch
    """
    Cin = x_ref.shape[-1]
    Cmid = w1_ref.shape[-1]
    Cout = w2_ref.shape[-1]
    Wp = _PADL + W + 1

    # Refresh only the 1-pixel halo strips (cheap); the interiors are fully
    # overwritten below on every grid step.  Columns 0.._PADL-2 are never read.
    for ref, c in ((xp_ref, Cin), (y1p_ref, Cmid)):
        z_row = jnp.zeros((1, Wp, c), ref.dtype)
        z_col = jnp.zeros((H + 2, 1, c), ref.dtype)
        ref[0:1, :, :] = z_row                           # top halo row
        ref[H + 1:H + 2, :, :] = z_row                   # bottom halo row
        ref[:, _PADL - 1:_PADL, :] = z_col               # left halo column
        ref[:, _PADL + W:_PADL + W + 1, :] = z_col       # right halo column

    # Sublane-aligned interior store (starts at column _PADL == 8).
    xp_ref[1:H + 1, _PADL:_PADL + W, :] = x_ref[0].astype(xp_ref.dtype)

    def conv3x3(src_ref, w_ref, b_ref, r0, c_src):
        """3x3 conv (padding already materialized in src_ref) over output rows
        [r0, r0 + TH).  Returns a bias-added f32 tile of shape (TH*W, c_dst)."""
        c_dst = w_ref.shape[-1]
        if c_src <= _WIDE_K_MAX_C:
            # Tiny channel count: one wide-K im2col matmul (K = 9*c_src).
            patches = jnp.concatenate(
                [src_ref[r0 + dy:r0 + dy + TH,
                         _PADL - 1 + dx:_PADL - 1 + dx + W, :]
                 for dy in range(3) for dx in range(3)],
                axis=-1).reshape(TH * W, 9 * c_src)
            acc = jnp.dot(patches, w_ref[...],
                          preferred_element_type=jnp.float32)
        else:
            # Larger channel count: 3 tap-accumulated matmuls over dy
            # (K = 3*c_src), avoiding the 9x lane-axis concat of activations.
            acc = jnp.zeros((TH * W, c_dst), jnp.float32)
            for dy in range(3):
                patches = jnp.concatenate(
                    [src_ref[r0 + dy:r0 + dy + TH,
                             _PADL - 1 + dx:_PADL - 1 + dx + W, :]
                     for dx in range(3)],
                    axis=-1).reshape(TH * W, 3 * c_src)
                acc = acc + jnp.dot(
                    patches, w_ref[dy * 3 * c_src:(dy + 1) * 3 * c_src, :],
                    preferred_element_type=jnp.float32)
        # Bias (and later ReLU) epilogue kept in f32 (no bf16 VPU on v5e).
        return acc + b_ref[...]

    n_tiles = H // TH

    # conv1 -> Dropout(0.4) [eval-mode identity] -> haloed VMEM intermediate.
    # TODO(synk): training-mode dropout mask + 1/(1-p) scaling omitted.
    for t in range(n_tiles):
        r0 = t * TH
        y1 = conv3x3(xp_ref, w1_ref, b1_ref, r0, Cin)
        y1p_ref[1 + r0:1 + r0 + TH, _PADL:_PADL + W, :] = (
            y1.reshape(TH, W, Cmid).astype(y1p_ref.dtype))

    # conv2 -> ReLU -> output.  Runs as a second pass because row tile t of
    # conv2 needs conv1 rows from the neighbouring row tiles.
    for t in range(n_tiles):
        r0 = t * TH
        y2 = jnp.maximum(conv3x3(y1p_ref, w2_ref, b2_ref, r0, Cmid), 0.0)
        o_ref[:, r0:r0 + TH, :, :] = (
            y2.reshape(1, TH, W, Cout).astype(o_ref.dtype))


def double_conv_pallas(x_nhwc, w1_mat, b1, w2_mat, b2, *,
                       compute_dtype=jnp.float32, row_tile=None):
    """Fused DoubleConv over NHWC input; weights already in im2col layout."""
    N, H, W, Cin = x_nhwc.shape
    Cmid = w1_mat.shape[-1]
    Cout = w2_mat.shape[-1]
    assert w1_mat.shape[0] == 9 * Cin and w2_mat.shape[0] == 9 * Cmid

    # No-ops when prepare_double_conv_params already produced these dtypes.
    w1_mat = w1_mat.astype(compute_dtype)
    w2_mat = w2_mat.astype(compute_dtype)
    b1 = b1.astype(jnp.float32)
    b2 = b2.astype(jnp.float32)

    if row_tile is None:
        row_tile = H if H <= 64 else 64   # TODO(synk): tune per TPU generation
    TH = min(H, row_tile)
    assert H % TH == 0, "H must be divisible by the row tile"

    kernel = functools.partial(_double_conv_kernel, H=H, W=W, TH=TH)

    cb = jnp.dtype(compute_dtype).itemsize
    ib = x_nhwc.dtype.itemsize
    Wp = _PADL + W + 1
    flops = 2 * N * H * W * 9 * (Cin * Cmid + Cmid * Cout)
    bytes_accessed = (N * H * W * (Cin + Cout) * ib
                      + (w1_mat.size + w2_mat.size) * cb
                      + (b1.size + b2.size) * 4)
    # Explicit VMEM budget: double-buffered in/out blocks + weights + padded
    # scratches + im2col/accumulator temporaries, ~2x headroom, v7x-safe cap.
    vmem_est = (2 * H * W * (Cin + Cout) * ib
                + 2 * ((w1_mat.size + w2_mat.size) * cb
                       + (b1.size + b2.size) * 4)
                + (H + 2) * Wp * (Cin + Cmid) * cb
                + TH * W * (9 * max(Cin, Cmid) * cb + 4 * (Cmid + Cout)))
    vmem_limit = int(min(60 * 2**20, max(32 * 2**20, 2 * vmem_est)))

    return pl.pallas_call(
        kernel,
        out_shape=jax.ShapeDtypeStruct((N, H, W, Cout), x_nhwc.dtype),
        grid_spec=pltpu.PrefetchScalarGridSpec(
            num_scalar_prefetch=0,
            grid=(N,),
            in_specs=[
                pl.BlockSpec((1, H, W, Cin), lambda n: (n, 0, 0, 0)),
                pl.BlockSpec((9 * Cin, Cmid), lambda n: (0, 0)),
                pl.BlockSpec((1, Cmid), lambda n: (0, 0)),
                pl.BlockSpec((9 * Cmid, Cout), lambda n: (0, 0)),
                pl.BlockSpec((1, Cout), lambda n: (0, 0)),
            ],
            out_specs=pl.BlockSpec((1, H, W, Cout), lambda n: (n, 0, 0, 0)),
            scratch_shapes=[
                pltpu.VMEM((H + 2, Wp, Cin), compute_dtype),
                pltpu.VMEM((H + 2, Wp, Cmid), compute_dtype),
            ],
        ),
        compiler_params=pltpu.CompilerParams(
            dimension_semantics=("parallel",),
            vmem_limit_bytes=vmem_limit),
        cost_estimate=pl.CostEstimate(
            flops=flops, transcendentals=0, bytes_accessed=bytes_accessed),
    )(x_nhwc, w1_mat, b1, w2_mat, b2)


def prepare_double_conv_params(params, compute_dtype=jnp.float32):
    """Convert PyTorch-layout params to the kernel layout.  Call ONCE.

    w: OIHW -> (ky, kx, cin, cout) -> (9*Cin, Cout) (row order matches the
    kernel's (dy, dx, cin) im2col order) pre-cast to compute_dtype;
    biases -> (1, C) kept in f32 for the f32 epilogue.
    """
    w1, b1, w2, b2 = params
    Cmid, Cin = w1.shape[0], w1.shape[1]
    Cout = w2.shape[0]
    w1_mat = jnp.transpose(w1, (2, 3, 1, 0)).reshape(9 * Cin, Cmid).astype(compute_dtype)
    w2_mat = jnp.transpose(w2, (2, 3, 1, 0)).reshape(9 * Cmid, Cout).astype(compute_dtype)
    return (w1_mat, b1.reshape(1, Cmid).astype(jnp.float32),
            w2_mat, b2.reshape(1, Cout).astype(jnp.float32))


def double_conv_forward(x_nchw, prepared_params, *,
                        compute_dtype=jnp.float32, row_tile=None):
    """DoubleConv forward with PyTorch NCHW I/O.

    `prepared_params` comes from prepare_double_conv_params (hoisted out of
    the hot path).  A full UNet would keep activations NHWC end-to-end and
    drop the two boundary transposes below.
    """
    x = jnp.transpose(x_nchw, (0, 2, 3, 1))              # NCHW -> NHWC
    y = double_conv_pallas(x, *prepared_params,
                           compute_dtype=compute_dtype, row_tile=row_tile)
    return jnp.transpose(y, (0, 3, 1, 2))                # NHWC -> NCHW


def init_double_conv_params(key, in_channels, out_channels, dtype=jnp.float32):
    """Deterministic param init (uniform, PyTorch-like fan-in scaling)."""
    k1, k2, k3, k4 = jax.random.split(key, 4)
    bound1 = 1.0 / (in_channels * 9) ** 0.5
    bound2 = 1.0 / (out_channels * 9) ** 0.5
    w1 = jax.random.uniform(k1, (out_channels, in_channels, 3, 3), dtype,
                            -bound1, bound1)
    b1 = jax.random.uniform(k2, (out_channels,), dtype, -bound1, bound1)
    w2 = jax.random.uniform(k3, (out_channels, out_channels, 3, 3), dtype,
                            -bound2, bound2)
    b2 = jax.random.uniform(k4, (out_channels,), dtype, -bound2, bound2)
    return (w1, b1, w2, b2)


def _reference_forward(x_nchw, params):
    """Pure-JAX reference (lax conv, HIGHEST precision)."""
    w1, b1, w2, b2 = params
    dn = ("NCHW", "OIHW", "NCHW")
    hp = jax.lax.Precision.HIGHEST
    y = jax.lax.conv_general_dilated(x_nchw, w1, (1, 1), ((1, 1), (1, 1)),
                                     dimension_numbers=dn, precision=hp)
    y = y + b1[None, :, None, None]
    y = jax.lax.conv_general_dilated(y, w2, (1, 1), ((1, 1), (1, 1)),
                                     dimension_numbers=dn, precision=hp)
    y = y + b2[None, :, None, None]
    return jnp.maximum(y, 0.0)


if __name__ == "__main__":
    key = jax.random.PRNGKey(0)
    k_x1, k_p1, k_x2, k_p2 = jax.random.split(key, 4)

    # Test 1: toy shape (wide-K im2col path, single row tile), f32 compute.
    # On v6e/v7x production runs pass compute_dtype=jnp.bfloat16 instead.
    N, Cin, H, W, Cout = 2, 4, 16, 16, 8
    x1 = jax.random.normal(k_x1, (N, Cin, H, W), jnp.float32)
    params1 = init_double_conv_params(k_p1, Cin, Cout)
    prepared1 = prepare_double_conv_params(params1)   # hoisted out of hot path
    out1 = jax.block_until_ready(double_conv_forward(x1, prepared1))
    ref1 = _reference_forward(x1, params1)
    assert out1.shape == (N, Cout, H, W)
    # Tolerance accommodates MXU multi-pass f32 accumulation-order differences.
    assert jnp.allclose(out1, ref1, atol=1e-2, rtol=1e-2), \
        float(jnp.max(jnp.abs(out1 - ref1)))

    # Test 2: wider channels -> tap-accumulated (K=3*C) path, 2 row tiles.
    N2, C2, H2, W2 = 1, 32, 16, 16
    x2 = jax.random.normal(k_x2, (N2, C2, H2, W2), jnp.float32)
    params2 = init_double_conv_params(k_p2, C2, C2)
    prepared2 = prepare_double_conv_params(params2)
    out2 = jax.block_until_ready(double_conv_forward(x2, prepared2, row_tile=8))
    ref2 = _reference_forward(x2, params2)
    assert out2.shape == (N2, C2, H2, W2)
    assert jnp.allclose(out2, ref2, atol=1e-2, rtol=1e-2), \
        float(jnp.max(jnp.abs(out2 - ref2)))

    print("KERNEL_OK")
</pallas_src>

<mosaic_0001>
module attributes {stable_mosaic.version = 11 : i64} {
  func.func @_double_conv_kernel(%arg0: i32, %arg1: memref<1x16x16x4xf32, #tpu.memory_space<vmem>>, %arg2: memref<36x8xf32, #tpu.memory_space<vmem>>, %arg3: memref<1x8xf32, #tpu.memory_space<vmem>>, %arg4: memref<72x8xf32, #tpu.memory_space<vmem>>, %arg5: memref<1x8xf32, #tpu.memory_space<vmem>>, %arg6: memref<1x16x16x8xf32, #tpu.memory_space<vmem>>, %arg7: memref<18x25x4xf32, #tpu.memory_space<vmem>>, %arg8: memref<18x25x8xf32, #tpu.memory_space<vmem>>) attributes {dimension_semantics = [#tpu.dimension_semantics<parallel>], iteration_bounds = array<i64: 2>, scalar_prefetch = 0 : i64, scratch_operands = 2 : i64, tpu.core_type = #tpu.core_type<tc>, window_params = [{transform_indices = @transform_0, window_bounds = array<i64: 1, 16, 16, 4>}, {pipeline_mode = #tpu.pipeline_mode<synchronous>, transform_indices = @transform_1, window_bounds = array<i64: 36, 8>}, {pipeline_mode = #tpu.pipeline_mode<synchronous>, transform_indices = @transform_2, window_bounds = array<i64: 1, 8>}, {pipeline_mode = #tpu.pipeline_mode<synchronous>, transform_indices = @transform_3, window_bounds = array<i64: 72, 8>}, {pipeline_mode = #tpu.pipeline_mode<synchronous>, transform_indices = @transform_4, window_bounds = array<i64: 1, 8>}, {transform_indices = @transform_5, window_bounds = array<i64: 1, 16, 16, 8>}]} {
    %cst = arith.constant 0.000000e+00 : f32
    %0 = vector.broadcast %cst : f32 to vector<1x25x4xf32>
    %cst_0 = arith.constant 0.000000e+00 : f32
    %1 = vector.broadcast %cst_0 : f32 to vector<18x1x4xf32>
    %c0 = arith.constant 0 : index
    %c0_1 = arith.constant 0 : index
    %c0_2 = arith.constant 0 : index
    %2 = vector.load %arg7[%c0, %c0_1, %c0_2] : memref<18x25x4xf32, #tpu.memory_space<vmem>>, vector<1x25x4xf32>
    tpu.vector_store %arg7[%c0, %c0_1, %c0_2], %0 {strides = array<i32>} : memref<18x25x4xf32, #tpu.memory_space<vmem>>, vector<1x25x4xf32>,
    %c17 = arith.constant 17 : index
    %c0_3 = arith.constant 0 : index
    %c0_4 = arith.constant 0 : index
    %3 = vector.load %arg7[%c17, %c0_3, %c0_4] : memref<18x25x4xf32, #tpu.memory_space<vmem>>, vector<1x25x4xf32>
    tpu.vector_store %arg7[%c17, %c0_3, %c0_4], %0 {strides = array<i32>} : memref<18x25x4xf32, #tpu.memory_space<vmem>>, vector<1x25x4xf32>,
    %c0_5 = arith.constant 0 : index
    %c7 = arith.constant 7 : index
    %c0_6 = arith.constant 0 : index
    %4 = vector.load %arg7[%c0_5, %c7, %c0_6] : memref<18x25x4xf32, #tpu.memory_space<vmem>>, vector<18x1x4xf32>
    tpu.vector_store %arg7[%c0_5, %c7, %c0_6], %1 {strides = array<i32>} : memref<18x25x4xf32, #tpu.memory_space<vmem>>, vector<18x1x4xf32>,
    %c0_7 = arith.constant 0 : index
    %c24 = arith.constant 24 : index
    %c0_8 = arith.constant 0 : index
    %5 = vector.load %arg7[%c0_7, %c24, %c0_8] : memref<18x25x4xf32, #tpu.memory_space<vmem>>, vector<18x1x4xf32>
    tpu.vector_store %arg7[%c0_7, %c24, %c0_8], %1 {strides = array<i32>} : memref<18x25x4xf32, #tpu.memory_space<vmem>>, vector<18x1x4xf32>,
    %cst_9 = arith.constant 0.000000e+00 : f32
    %6 = vector.broadcast %cst_9 : f32 to vector<1x25x8xf32>
    %cst_10 = arith.constant 0.000000e+00 : f32
    %7 = vector.broadcast %cst_10 : f32 to vector<18x1x8xf32>
    %c0_11 = arith.constant 0 : index
    %c0_12 = arith.constant 0 : index
    %c0_13 = arith.constant 0 : index
    %8 = vector.load %arg8[%c0_11, %c0_12, %c0_13] : memref<18x25x8xf32, #tpu.memory_space<vmem>>, vector<1x25x8xf32>
    tpu.vector_store %arg8[%c0_11, %c0_12, %c0_13], %6 {strides = array<i32>} : memref<18x25x8xf32, #tpu.memory_space<vmem>>, vector<1x25x8xf32>,
    %c17_14 = arith.constant 17 : index
    %c0_15 = arith.constant 0 : index
    %c0_16 = arith.constant 0 : index
    %9 = vector.load %arg8[%c17_14, %c0_15, %c0_16] : memref<18x25x8xf32, #tpu.memory_space<vmem>>, vector<1x25x8xf32>
    tpu.vector_store %arg8[%c17_14, %c0_15, %c0_16], %6 {strides = array<i32>} : memref<18x25x8xf32, #tpu.memory_space<vmem>>, vector<1x25x8xf32>,
    %c0_17 = arith.constant 0 : index
    %c7_18 = arith.constant 7 : index
    %c0_19 = arith.constant 0 : index
    %10 = vector.load %arg8[%c0_17, %c7_18, %c0_19] : memref<18x25x8xf32, #tpu.memory_space<vmem>>, vector<18x1x8xf32>
    tpu.vector_store %arg8[%c0_17, %c7_18, %c0_19], %7 {strides = array<i32>} : memref<18x25x8xf32, #tpu.memory_space<vmem>>, vector<18x1x8xf32>,
    %c0_20 = arith.constant 0 : index
    %c24_21 = arith.constant 24 : index
    %c0_22 = arith.constant 0 : index
    %11 = vector.load %arg8[%c0_20, %c24_21, %c0_22] : memref<18x25x8xf32, #tpu.memory_space<vmem>>, vector<18x1x8xf32>
    tpu.vector_store %arg8[%c0_20, %c24_21, %c0_22], %7 {strides = array<i32>} : memref<18x25x8xf32, #tpu.memory_space<vmem>>, vector<18x1x8xf32>,
    %c0_23 = arith.constant 0 : index
    %c0_24 = arith.constant 0 : index
    %c0_25 = arith.constant 0 : index
    %c0_26 = arith.constant 0 : index
    %12 = vector.load %arg1[%c0_23, %c0_24, %c0_25, %c0_26] : memref<1x16x16x4xf32, #tpu.memory_space<vmem>>, vector<1x16x16x4xf32>
    %13 = vector.shape_cast %12 : vector<1x16x16x4xf32> to vector<16x16x4xf32>
    %c1 = arith.constant 1 : index
    %c8 = arith.constant 8 : index
    %c0_27 = arith.constant 0 : index
    %14 = vector.load %arg7[%c1, %c8, %c0_27] : memref<18x25x4xf32, #tpu.memory_space<vmem>>, vector<16x16x4xf32>
    tpu.vector_store %arg7[%c1, %c8, %c0_27], %13 {strides = array<i32>} : memref<18x25x4xf32, #tpu.memory_space<vmem>>, vector<16x16x4xf32>,
    %c0_28 = arith.constant 0 : index
    %c7_29 = arith.constant 7 : index
    %c0_30 = arith.constant 0 : index
    %15 = vector.load %arg7[%c0_28, %c7_29, %c0_30] : memref<18x25x4xf32, #tpu.memory_space<vmem>>, vector<16x16x4xf32>
    %c0_31 = arith.constant 0 : index
    %c8_32 = arith.constant 8 : index
    %c0_33 = arith.constant 0 : index
    %16 = vector.load %arg7[%c0_31, %c8_32, %c0_33] : memref<18x25x4xf32, #tpu.memory_space<vmem>>, vector<16x16x4xf32>
    %c0_34 = arith.constant 0 : index
    %c9 = arith.constant 9 : index
    %c0_35 = arith.constant 0 : index
    %17 = vector.load %arg7[%c0_34, %c9, %c0_35] : memref<18x25x4xf32, #tpu.memory_space<vmem>>, vector<16x16x4xf32>
    %c1_36 = arith.constant 1 : index
    %c7_37 = arith.constant 7 : index
    %c0_38 = arith.constant 0 : index
    %18 = vector.load %arg7[%c1_36, %c7_37, %c0_38] : memref<18x25x4xf32, #tpu.memory_space<vmem>>, vector<16x16x4xf32>
    %c1_39 = arith.constant 1 : index
    %c8_40 = arith.constant 8 : index
    %c0_41 = arith.constant 0 : index
    %19 = vector.load %arg7[%c1_39, %c8_40, %c0_41] : memref<18x25x4xf32, #tpu.memory_space<vmem>>, vector<16x16x4xf32>
    %c1_42 = arith.constant 1 : index
    %c9_43 = arith.constant 9 : index
    %c0_44 = arith.constant 0 : index
    %20 = vector.load %arg7[%c1_42, %c9_43, %c0_44] : memref<18x25x4xf32, #tpu.memory_space<vmem>>, vector<16x16x4xf32>
    %c2 = arith.constant 2 : index
    %c7_45 = arith.constant 7 : index
    %c0_46 = arith.constant 0 : index
    %21 = vector.load %arg7[%c2, %c7_45, %c0_46] : memref<18x25x4xf32, #tpu.memory_space<vmem>>, vector<16x16x4xf32>
    %c2_47 = arith.constant 2 : index
    %c8_48 = arith.constant 8 : index
    %c0_49 = arith.constant 0 : index
    %22 = vector.load %arg7[%c2_47, %c8_48, %c0_49] : memref<18x25x4xf32, #tpu.memory_space<vmem>>, vector<16x16x4xf32>
    %c2_50 = arith.constant 2 : index
    %c9_51 = arith.constant 9 : index
    %c0_52 = arith.constant 0 : index
    %23 = vector.load %arg7[%c2_50, %c9_51, %c0_52] : memref<18x25x4xf32, #tpu.memory_space<vmem>>, vector<16x16x4xf32>
    %24 = tpu.concatenate %15, %16, %17, %18, %19, %20, %21, %22, %23 in 2 : vector<16x16x4xf32>, vector<16x16x4xf32>, vector<16x16x4xf32>, vector<16x16x4xf32>, vector<16x16x4xf32>, vector<16x16x4xf32>, vector<16x16x4xf32>, vector<16x16x4xf32>, vector<16x16x4xf32> -> vector<16x16x36xf32>
    %25 = vector.shape_cast %24 : vector<16x16x36xf32> to vector<256x36xf32>
    %c0_53 = arith.constant 0 : index
    %c0_54 = arith.constant 0 : index
    %26 = vector.load %arg2[%c0_53, %c0_54] : memref<36x8xf32, #tpu.memory_space<vmem>>, vector<36x8xf32>
    %cst_55 = arith.constant dense<0.000000e+00> : vector<256x8xf32>
    %27 = tpu.matmul %25, %26, %cst_55 {dimension_numbers = #tpu.dot_dimension_numbers<[1], [0], [0], [1], [0, 0, 1, 1], [], []>} : vector<256x36xf32>, vector<36x8xf32>, vector<256x8xf32> -> vector<256x8xf32>
    %c0_56 = arith.constant 0 : index
    %c0_57 = arith.constant 0 : index
    %28 = vector.load %arg3[%c0_56, %c0_57] : memref<1x8xf32, #tpu.memory_space<vmem>>, vector<1x8xf32>
    %29 = vector.broadcast %28 : vector<1x8xf32> to vector<256x8xf32>
    %30 = arith.addf %27, %29 : vector<256x8xf32>
    %31 = vector.shape_cast %30 : vector<256x8xf32> to vector<16x16x8xf32>
    %c1_58 = arith.constant 1 : index
    %c8_59 = arith.constant 8 : index
    %c0_60 = arith.constant 0 : index
    %32 = vector.load %arg8[%c1_58, %c8_59, %c0_60] : memref<18x25x8xf32, #tpu.memory_space<vmem>>, vector<16x16x8xf32>
    tpu.vector_store %arg8[%c1_58, %c8_59, %c0_60], %31 {strides = array<i32>} : memref<18x25x8xf32, #tpu.memory_space<vmem>>, vector<16x16x8xf32>,
    %c0_61 = arith.constant 0 : index
    %c7_62 = arith.constant 7 : index
    %c0_63 = arith.constant 0 : index
    %33 = vector.load %arg8[%c0_61, %c7_62, %c0_63] : memref<18x25x8xf32, #tpu.memory_space<vmem>>, vector<16x16x8xf32>
    %c0_64 = arith.constant 0 : index
    %c8_65 = arith.constant 8 : index
    %c0_66 = arith.constant 0 : index
    %34 = vector.load %arg8[%c0_64, %c8_65, %c0_66] : memref<18x25x8xf32, #tpu.memory_space<vmem>>, vector<16x16x8xf32>
    %c0_67 = arith.constant 0 : index
    %c9_68 = arith.constant 9 : index
    %c0_69 = arith.constant 0 : index
    %35 = vector.load %arg8[%c0_67, %c9_68, %c0_69] : memref<18x25x8xf32, #tpu.memory_space<vmem>>, vector<16x16x8xf32>
    %c1_70 = arith.constant 1 : index
    %c7_71 = arith.constant 7 : index
    %c0_72 = arith.constant 0 : index
    %36 = vector.load %arg8[%c1_70, %c7_71, %c0_72] : memref<18x25x8xf32, #tpu.memory_space<vmem>>, vector<16x16x8xf32>
    %c1_73 = arith.constant 1 : index
    %c8_74 = arith.constant 8 : index
    %c0_75 = arith.constant 0 : index
    %37 = vector.load %arg8[%c1_73, %c8_74, %c0_75] : memref<18x25x8xf32, #tpu.memory_space<vmem>>, vector<16x16x8xf32>
    %c1_76 = arith.constant 1 : index
    %c9_77 = arith.constant 9 : index
    %c0_78 = arith.constant 0 : index
    %38 = vector.load %arg8[%c1_76, %c9_77, %c0_78] : memref<18x25x8xf32, #tpu.memory_space<vmem>>, vector<16x16x8xf32>
    %c2_79 = arith.constant 2 : index
    %c7_80 = arith.constant 7 : index
    %c0_81 = arith.constant 0 : index
    %39 = vector.load %arg8[%c2_79, %c7_80, %c0_81] : memref<18x25x8xf32, #tpu.memory_space<vmem>>, vector<16x16x8xf32>
    %c2_82 = arith.constant 2 : index
    %c8_83 = arith.constant 8 : index
    %c0_84 = arith.constant 0 : index
    %40 = vector.load %arg8[%c2_82, %c8_83, %c0_84] : memref<18x25x8xf32, #tpu.memory_space<vmem>>, vector<16x16x8xf32>
    %c2_85 = arith.constant 2 : index
    %c9_86 = arith.constant 9 : index
    %c0_87 = arith.constant 0 : index
    %41 = vector.load %arg8[%c2_85, %c9_86, %c0_87] : memref<18x25x8xf32, #tpu.memory_space<vmem>>, vector<16x16x8xf32>
    %42 = tpu.concatenate %33, %34, %35, %36, %37, %38, %39, %40, %41 in 2 : vector<16x16x8xf32>, vector<16x16x8xf32>, vector<16x16x8xf32>, vector<16x16x8xf32>, vector<16x16x8xf32>, vector<16x16x8xf32>, vector<16x16x8xf32>, vector<16x16x8xf32>, vector<16x16x8xf32> -> vector<16x16x72xf32>
    %43 = vector.shape_cast %42 : vector<16x16x72xf32> to vector<256x72xf32>
    %c0_88 = arith.constant 0 : index
    %c0_89 = arith.constant 0 : index
    %44 = vector.load %arg4[%c0_88, %c0_89] : memref<72x8xf32, #tpu.memory_space<vmem>>, vector<72x8xf32>
    %cst_90 = arith.constant dense<0.000000e+00> : vector<256x8xf32>
    %45 = tpu.matmul %43, %44, %cst_90 {dimension_numbers = #tpu.dot_dimension_numbers<[1], [0], [0], [1], [0, 0, 1, 1], [], []>} : vector<256x72xf32>, vector<72x8xf32>, vector<256x8xf32> -> vector<256x8xf32>
    %c0_91 = arith.constant 0 : index
    %c0_92 = arith.constant 0 : index
    %46 = vector.load %arg5[%c0_91, %c0_92] : memref<1x8xf32, #tpu.memory_space<vmem>>, vector<1x8xf32>
    %47 = vector.broadcast %46 : vector<1x8xf32> to vector<256x8xf32>
    %48 = arith.addf %45, %47 : vector<256x8xf32>
    %cst_93 = arith.constant 0.000000e+00 : f32
    %49 = vector.broadcast %cst_93 : f32 to vector<256x8xf32>
    %50 = arith.maximumf %48, %49 : vector<256x8xf32>
    %51 = vector.shape_cast %50 : vector<256x8xf32> to vector<1x16x16x8xf32>
    %c0_94 = arith.constant 0 : index
    %c0_95 = arith.constant 0 : index
    %c0_96 = arith.constant 0 : index
    %c0_97 = arith.constant 0 : index
    %52 = vector.load %arg6[%c0_94, %c0_95, %c0_96, %c0_97] : memref<1x16x16x8xf32, #tpu.memory_space<vmem>>, vector<1x16x16x8xf32>
    tpu.vector_store %arg6[%c0_94, %c0_95, %c0_96, %c0_97], %51 {strides = array<i32>} : memref<1x16x16x8xf32, #tpu.memory_space<vmem>>, vector<1x16x16x8xf32>,
    return
  }
  func.func @transform_0(%arg0: i32) -> (i32, i32, i32, i32) {
    %c0_i32 = arith.constant 0 : i32
    %c0_i32_0 = arith.constant 0 : i32
    %c0_i32_1 = arith.constant 0 : i32
    %c0_i32_2 = arith.constant 0 : i32
    return %arg0, %c0_i32, %c0_i32_0, %c0_i32_1 : i32, i32, i32, i32
  }
  func.func @transform_1(%arg0: i32) -> (i32, i32) {
    %c0_i32 = arith.constant 0 : i32
    %c0_i32_0 = arith.constant 0 : i32
    %c0_i32_1 = arith.constant 0 : i32
    return %c0_i32, %c0_i32_0 : i32, i32
  }
  func.func @transform_2(%arg0: i32) -> (i32, i32) {
    %c0_i32 = arith.constant 0 : i32
    %c0_i32_0 = arith.constant 0 : i32
    %c0_i32_1 = arith.constant 0 : i32
    return %c0_i32, %c0_i32_0 : i32, i32
  }
  func.func @transform_3(%arg0: i32) -> (i32, i32) {
    %c0_i32 = arith.constant 0 : i32
    %c0_i32_0 = arith.constant 0 : i32
    %c0_i32_1 = arith.constant 0 : i32
    return %c0_i32, %c0_i32_0 : i32, i32
  }
  func.func @transform_4(%arg0: i32) -> (i32, i32) {
    %c0_i32 = arith.constant 0 : i32
    %c0_i32_0 = arith.constant 0 : i32
    %c0_i32_1 = arith.constant 0 : i32
    return %c0_i32, %c0_i32_0 : i32, i32
  }
  func.func @transform_5(%arg0: i32) -> (i32, i32, i32, i32) {
    %c0_i32 = arith.constant 0 : i32
    %c0_i32_0 = arith.constant 0 : i32
    %c0_i32_1 = arith.constant 0 : i32
    %c0_i32_2 = arith.constant 0 : i32
    return %arg0, %c0_i32, %c0_i32_0, %c0_i32_1 : i32, i32, i32, i32
  }
}

</mosaic_0001>

<llo_original>
// kernel: tpu_custom_call.1
$region0: #{tpu_custom_call.1}
  #allocation0 [shape = 'u32[]', space=smem, size = 0x4, offset = 0x4, fixed_abs, tag = 'smem constant byte address 0x4 - core index']
  #allocation1 [shape = 'u32[144,128]{1,0:T(1,128)}', space=vmem, size = 0x12000, scoped, tag = 'internal scratch']
  #allocation2 [shape = 'f32[18,25,4]{2,1,0:T(8,128)}', space=vmem, size = 0x48000, scoped, tag = 'scratch operand']
  #allocation3 [shape = 'f32[18,25,8]{2,1,0:T(8,128)}', space=vmem, size = 0x48000, scoped, tag = 'scratch operand']
  %s0 = inlined_call_operand.vmem [shape: f32[2,16,16,4], index: 0, kind: input, shape index: {}]
  %s1 = inlined_call_operand.vmem [shape: f32[36,8], index: 1, kind: input, shape index: {}]
  %s2 = inlined_call_operand.vmem [shape: f32[1,8], index: 2, kind: input, shape index: {}]
  %s3 = inlined_call_operand.vmem [shape: f32[72,8], index: 3, kind: input, shape index: {}]
  %s4 = inlined_call_operand.vmem [shape: f32[1,8], index: 4, kind: input, shape index: {}]
  %s5 = inlined_call_operand.vmem [shape: f32[2,16,16,8], index: 5, kind: output, shape index: {}]
  %s6 = sld [smem:[#allocation0]]
  $region53: #{tpu_custom_call.1} parent=0
    _
  %s8 = ssub.s32 1, %s6
  %s9 = scalar_select 0, %s8, %s6
  loop: start=0, step=1, limit=4
  $region2: #{tpu_custom_call.1} parent=0 // loop_pre_header
    _
  $region3: #{tpu_custom_call.1} parent=0 // loop_header
    %s11 = sphi 0, %s15
    %p12 = scmp.ge.s32.totalorder %s11, 4
    %s21 = sphi 0, %s23
    %s24 = sphi 0, %s21
    %s25 = sphi 0, %s24
    %s41 = sphi 0, %s25
    %s45 = sphi 0, %s45
    %s47 = sphi 0, %s45
    %s48 = sphi 0, %s47
    %s62 = sphi 0, %s48
    %s66 = sphi 0, %s66
    %s68 = sphi 0, %s66
    %s69 = sphi 0, %s68
    %s83 = sphi 0, %s69
    %s87 = sphi 0, %s87
    %s89 = sphi 0, %s87
    %s90 = sphi 0, %s89
    %s104 = sphi 0, %s90
    %s108 = sphi 0, %s108
    %s110 = sphi 0, %s108
    %s111 = sphi 0, %s110
    %s125 = sphi 0, %s111
    %s131 = sphi 0, %s133
    %s134 = sphi 0, %s131
    %s135 = sphi 0, %s134
    %s151 = sphi 0, %s135
  $region4: #{tpu_custom_call.1} parent=0 // loop_header_branch
    %14 = sbr.rel (%p12) target = $region8
  $region5: #{tpu_custom_call.1} parent=0 // loop_body
    %s16 = ssub.s32 %s11, 1
    %s17 = ssub.s32 %s11, 2
    %s18 = sadd.s32 %s11, 1
    %s19 = ssub.s32 %s11, %s18
    %p20 = scmp.eq.s32.totalorder %s19, 0
    %s22 = sadd.s32 %s21, 1
    %s23 = scalar_select %p20, %s21, %s22
    %p26 = pneg %p20
    %p27 = scmp.eq.s32.totalorder %s11, 1
    %p28 = por %p26, %p27
    %p29 = scmp.ne.s32.totalorder %s21, %s24
    %p30 = scmp.eq.s32.totalorder %s11, 0
    %p31 = por %p29, %p30
    %p32 = scmp.ne.s32.totalorder %s21, %s24
    %p33 = scmp.eq.s32.totalorder %s16, 1
    %p34 = por %p32, %p33
    %p35 = scmp.ne.s32.totalorder %s24, %s25
    %p36 = scmp.eq.s32.totalorder %s16, 0
    %p37 = por %p35, %p36
    %p38 = scmp.ne.s32.totalorder %s24, %s25
    %p39 = scmp.eq.s32.totalorder %s17, 1
    %p40 = por %p38, %p39
    %p42 = scmp.ne.s32.totalorder %s25, %s41
    %p43 = scmp.eq.s32.totalorder %s17, 0
    %p44 = por %p42, %p43
    %s46 = sadd.s32 %s45, 1
    %p49 = scmp.eq.s32.totalorder %s11, 1
    %p50 = scmp.ne.s32.totalorder %s45, %s47
    %p51 = scmp.eq.s32.totalorder %s11, 0
    %p52 = por %p50, %p51
    %p53 = scmp.ne.s32.totalorder %s45, %s47
    %p54 = scmp.eq.s32.totalorder %s16, 1
    %p55 = por %p53, %p54
    %p56 = scmp.ne.s32.totalorder %s47, %s48
    %p57 = scmp.eq.s32.totalorder %s16, 0
    %p58 = por %p56, %p57
    %p59 = scmp.ne.s32.totalorder %s47, %s48
    %p60 = scmp.eq.s32.totalorder %s17, 1
    %p61 = por %p59, %p60
    %p63 = scmp.ne.s32.totalorder %s48, %s62
    %p64 = scmp.eq.s32.totalorder %s17, 0
    %p65 = por %p63, %p64
    %s67 = sadd.s32 %s66, 1
    %p70 = scmp.eq.s32.totalorder %s11, 1
    %p71 = scmp.ne.s32.totalorder %s66, %s68
    %p72 = scmp.eq.s32.totalorder %s11, 0
    %p73 = por %p71, %p72
    %p74 = scmp.ne.s32.totalorder %s66, %s68
    %p75 = scmp.eq.s32.totalorder %s16, 1
    %p76 = por %p74, %p75
    %p77 = scmp.ne.s32.totalorder %s68, %s69
    %p78 = scmp.eq.s32.totalorder %s16, 0
    %p79 = por %p77, %p78
    %p80 = scmp.ne.s32.totalorder %s68, %s69
    %p81 = scmp.eq.s32.totalorder %s17, 1
    %p82 = por %p80, %p81
    %p84 = scmp.ne.s32.totalorder %s69, %s83
    %p85 = scmp.eq.s32.totalorder %s17, 0
    %p86 = por %p84, %p85
    %s88 = sadd.s32 %s87, 1
    %p91 = scmp.eq.s32.totalorder %s11, 1
    %p92 = scmp.ne.s32.totalorder %s87, %s89
    %p93 = scmp.eq.s32.totalorder %s11, 0
    %p94 = por %p92, %p93
    %p95 = scmp.ne.s32.totalorder %s87, %s89
    %p96 = scmp.eq.s32.totalorder %s16, 1
    %p97 = por %p95, %p96
    %p98 = scmp.ne.s32.totalorder %s89, %s90
    %p99 = scmp.eq.s32.totalorder %s16, 0
    %p100 = por %p98, %p99
    %p101 = scmp.ne.s32.totalorder %s89, %s90
    %p102 = scmp.eq.s32.totalorder %s17, 1
    %p103 = por %p101, %p102
    %p105 = scmp.ne.s32.totalorder %s90, %s104
    %p106 = scmp.eq.s32.totalorder %s17, 0
    %p107 = por %p105, %p106
    %s109 = sadd.s32 %s108, 1
    %p112 = scmp.eq.s32.totalorder %s11, 1
    %p113 = scmp.ne.s32.totalorder %s108, %s110
    %p114 = scmp.eq.s32.totalorder %s11, 0
    %p115 = por %p113, %p114
    %p116 = scmp.ne.s32.totalorder %s108, %s110
    %p117 = scmp.eq.s32.totalorder %s16, 1
    %p118 = por %p116, %p117
    %p119 = scmp.ne.s32.totalorder %s110, %s111
    %p120 = scmp.eq.s32.totalorder %s16, 0
    %p121 = por %p119, %p120
    %p122 = scmp.ne.s32.totalorder %s110, %s111
    %p123 = scmp.eq.s32.totalorder %s17, 1
    %p124 = por %p122, %p123
    %p126 = scmp.ne.s32.totalorder %s111, %s125
    %p127 = scmp.eq.s32.totalorder %s17, 0
    %p128 = por %p126, %p127
    %s129 = ssub.s32 %s11, %s18
    %p130 = scmp.eq.s32.totalorder %s129, 0
    %s132 = sadd.s32 %s131, 1
    %s133 = scalar_select %p130, %s131, %s132
    %p136 = pneg %p130
    %p137 = scmp.eq.s32.totalorder %s11, 1
    %p138 = por %p136, %p137
    %p139 = scmp.ne.s32.totalorder %s131, %s134
    %p140 = scmp.eq.s32.totalorder %s11, 0
    %p141 = por %p139, %p140
    %p142 = scmp.ne.s32.totalorder %s131, %s134
    %p143 = scmp.eq.s32.totalorder %s16, 1
    %p144 = por %p142, %p143
    %p145 = scmp.ne.s32.totalorder %s134, %s135
    %p146 = scmp.eq.s32.totalorder %s16, 0
    %p147 = por %p145, %p146
    %p148 = scmp.ne.s32.totalorder %s134, %s135
    %p149 = scmp.eq.s32.totalorder %s17, 1
    %p150 = por %p148, %p149
    %p152 = scmp.ne.s32.totalorder %s135, %s151
    %p153 = scmp.eq.s32.totalorder %s17, 0
    %p154 = por %p152, %p153
    %p155 = scmp.le.s32.totalorder 1, %s11
    %p156 = scmp.lt.s32.totalorder %s11, 3
    %p157 = pnand %p155, %p156
    %p158 = pneg %p157
    // Predicated region
    $region9: #{tpu_custom_call.1} parent=5 // pred_check
      _
    $region10: #{tpu_custom_call.1} parent=5 // pred_check_branch
      %160 = sbr.rel (%p157) target = $region12
    $region11: #{tpu_custom_call.1} parent=5 // pred_region
      %s161 = ssub.s32 %s11, 1
      // Predicated region
      $region13: #{tpu_custom_call.1} parent=11 // pred_check
        %p162 = pneg %p58
      $region14: #{tpu_custom_call.1} parent=11 // pred_check_branch
        %164 = sbr.rel (%p162) target = $region16
      $region15: #{tpu_custom_call.1} parent=11 // pred_region
        _
      $region16: #{tpu_custom_call.1} parent=11 // pred_fallthru
        _
      // Predicated region
      $region17: #{tpu_custom_call.1} parent=11 // pred_check
        %p165 = pneg %p79
      $region18: #{tpu_custom_call.1} parent=11 // pred_check_branch
        %167 = sbr.rel (%p165) target = $region20
      $region19: #{tpu_custom_call.1} parent=11 // pred_region
        _
      $region20: #{tpu_custom_call.1} parent=11 // pred_fallthru
        _
      // Predicated region
      $region21: #{tpu_custom_call.1} parent=11 // pred_check
        %p168 = pneg %p100
      $region22: #{tpu_custom_call.1} parent=11 // pred_check_branch
        %170 = sbr.rel (%p168) target = $region24
      $region23: #{tpu_custom_call.1} parent=11 // pred_region
        _
      $region24: #{tpu_custom_call.1} parent=11 // pred_fallthru
        _
      // Predicated region
      $region25: #{tpu_custom_call.1} parent=11 // pred_check
        %p171 = pneg %p121
      $region26: #{tpu_custom_call.1} parent=11 // pred_check_branch
        %173 = sbr.rel (%p171) target = $region28
      $region27: #{tpu_custom_call.1} parent=11 // pred_region
        _
      $region28: #{tpu_custom_call.1} parent=11 // pred_fallthru
        _
    $region12: #{tpu_custom_call.1} parent=5 // pred_fallthru
      _
    %p174 = scmp.lt.s32.totalorder %s11, 2
    // Predicated region
    $region29: #{tpu_custom_call.1} parent=5 // pred_check
      %p175 = pneg %p174
    $region30: #{tpu_custom_call.1} parent=5 // pred_check_branch
      %177 = sbr.rel (%p175) target = $region32
    $region31: #{tpu_custom_call.1} parent=5 // pred_region
      // Predicated region
      $region33: #{tpu_custom_call.1} parent=31 // pred_check
        %p178 = pneg %p31
      $region34: #{tpu_custom_call.1} parent=31 // pred_check_branch
        %180 = sbr.rel (%p178) target = $region36
      $region35: #{tpu_custom_call.1} parent=31 // pred_region
        %p181 = scmp.lt.s32.totalorder %s11, 1
        %s182 = scalar_select %p181, %s11, 1
        %s183 = smul.addr %s182, 32
        %s184 = smul.addr %s183, 8
        %s185 = scalar_lea.vmem %s0, %s184
      $region36: #{tpu_custom_call.1} parent=31 // pred_fallthru
        _
    $region32: #{tpu_custom_call.1} parent=5 // pred_fallthru
      _
    %p186 = scmp.le.s32.totalorder 1, %s11
    %p187 = scmp.lt.s32.totalorder %s11, 3
    %p188 = pnand %p186, %p187
    %p189 = pneg %p188
    // Predicated region
    $region37: #{tpu_custom_call.1} parent=5 // pred_check
      _
    $region38: #{tpu_custom_call.1} parent=5 // pred_check_branch
      %191 = sbr.rel (%p188) target = $region40
    $region39: #{tpu_custom_call.1} parent=5 // pred_region
      %s192 = ssub.s32 %s11, 1
      %p193 = scmp.lt.s32.totalorder %s16, 1
      %s194 = scalar_select %p193, %s16, 1
      %s195 = smul.addr %s194, 32
      %s196 = smul.addr %s195, 8
      %s197 = scalar_lea.vmem %s0, %s196
      %p198 = pneg %p37
      %p199 = pneg %p34
      %p200 = pneg %p58
      %p201 = pneg %p55
      %p202 = pneg %p79
      %p203 = pneg %p76
      %p204 = pneg %p100
      %p205 = pneg %p97
      %p206 = pneg %p121
      %p207 = pneg %p118
      %p208 = pneg %p147
      %p209 = pneg %p144
      %p210 = scmp.lt.s32.totalorder %s16, 1
      %s211 = scalar_select %p210, %s16, 1
      %s212 = smul.addr %s211, 32
      %s213 = smul.addr %s212, 8
      %s214 = scalar_lea.vmem %s5, %s213
      %p215 = scmp.lt.s32.totalorder %s16, 1
      %s216 = scalar_select %p215, %s16, 1
      %s217 = smul.addr %s216, 32
      %s218 = smul.addr %s217, 8
      %s219 = scalar_lea.vmem %s0, %s218
      %p220 = scmp.lt.s32.totalorder %s16, 1
      %s221 = scalar_select %p220, %s16, 1
      %s222 = smul.addr %s221, 32
      %s223 = smul.addr %s222, 8
      %s224 = scalar_lea.vmem %s5, %s223
      %vm225 = vcmask 31744
      %226 = vst.msk [vmem:[#allocation2] sm:$0xff] %vm225, 0.0
      %227 = vst.msk [vmem:[#allocation2 + $0x8] sm:$0xff] %vm225, 0.0
      %228 = vst.msk [vmem:[#allocation2 + $0x10] sm:$0xff] %vm225, 0.0
      %vm229 = vcmask 24576
      %230 = vst.msk [vmem:[#allocation2 + $0x18] sm:$0x1] %vm229, 0.0
      %s231 = scalar_lea.vmem [#allocation2], 544
      %232 = vst.msk [vmem:[%s231] sm:$0xff] %vm225, 0.0
      %233 = vst.msk [vmem:[%s231 + $0x8] sm:$0xff] %vm225, 0.0
      %234 = vst.msk [vmem:[%s231 + $0x10] sm:$0xff] %vm225, 0.0
      %235 = vst.msk [vmem:[%s231 + $0x18] sm:$0x1] %vm229, 0.0
      %236 = vst.msk [vmem:[#allocation2 + $0x7] sm:$0x1] %vm229, 0.0
      %237 = vst.msk [vmem:[#allocation2 + $0x27] sm:$0x1] %vm229, 0.0
      %238 = vst.msk [vmem:[#allocation2 + $0x47] sm:$0x1] %vm229, 0.0
      %239 = vst.msk [vmem:[#allocation2 + $0x67] sm:$0x1] %vm229, 0.0
      %240 = vst.msk [vmem:[#allocation2 + $0x87] sm:$0x1] %vm229, 0.0
      %241 = vst.msk [vmem:[#allocation2 + $0xa7] sm:$0x1] %vm229, 0.0
      %242 = vst.msk [vmem:[#allocation2 + $0xc7] sm:$0x1] %vm229, 0.0
      %243 = vst.msk [vmem:[#allocation2 + $0xe7] sm:$0x1] %vm229, 0.0
      %244 = vst.msk [vmem:[#allocation2 + $0x107] sm:$0x1] %vm229, 0.0
      %245 = vst.msk [vmem:[#allocation2 + $0x127] sm:$0x1] %vm229, 0.0
      %246 = vst.msk [vmem:[#allocation2 + $0x147] sm:$0x1] %vm229, 0.0
      %247 = vst.msk [vmem:[#allocation2 + $0x167] sm:$0x1] %vm229, 0.0
      %248 = vst.msk [vmem:[#allocation2 + $0x187] sm:$0x1] %vm229, 0.0
      %249 = vst.msk [vmem:[#allocation2 + $0x1a7] sm:$0x1] %vm229, 0.0
      %250 = vst.msk [vmem:[#allocation2 + $0x1c7] sm:$0x1] %vm229, 0.0
      %251 = vst.msk [vmem:[#allocation2 + $0x1e7] sm:$0x1] %vm229, 0.0
      %252 = vst.msk [vmem:[#allocation2 + $0x207] sm:$0x1] %vm229, 0.0
      %253 = vst.msk [vmem:[#allocation2 + $0x227] sm:$0x1] %vm229, 0.0
      %254 = vst.msk [vmem:[#allocation2 + $0x18] sm:$0x1] %vm229, 0.0
      %255 = vst.msk [vmem:[#allocation2 + $0x38] sm:$0x1] %vm229, 0.0
      %256 = vst.msk [vmem:[#allocation2 + $0x58] sm:$0x1] %vm229, 0.0
      %257 = vst.msk [vmem:[#allocation2 + $0x78] sm:$0x1] %vm229, 0.0
      %258 = vst.msk [vmem:[#allocation2 + $0x98] sm:$0x1] %vm229, 0.0
      %259 = vst.msk [vmem:[#allocation2 + $0xb8] sm:$0x1] %vm229, 0.0
      %260 = vst.msk [vmem:[#allocation2 + $0xd8] sm:$0x1] %vm229, 0.0
      %261 = vst.msk [vmem:[#allocation2 + $0xf8] sm:$0x1] %vm229, 0.0
      %262 = vst.msk [vmem:[#allocation2 + $0x118] sm:$0x1] %vm229, 0.0
      %263 = vst.msk [vmem:[#allocation2 + $0x138] sm:$0x1] %vm229, 0.0
      %264 = vst.msk [vmem:[#allocation2 + $0x158] sm:$0x1] %vm229, 0.0
      %265 = vst.msk [vmem:[#allocation2 + $0x178] sm:$0x1] %vm229, 0.0
      %266 = vst.msk [vmem:[#allocation2 + $0x198] sm:$0x1] %vm229, 0.0
      %267 = vst.msk [vmem:[#allocation2 + $0x1b8] sm:$0x1] %vm229, 0.0
      %268 = vst.msk [vmem:[#allocation2 + $0x1d8] sm:$0x1] %vm229, 0.0
      %269 = vst.msk [vmem:[#allocation2 + $0x1f8] sm:$0x1] %vm229, 0.0
      %270 = vst.msk [vmem:[#allocation2 + $0x218] sm:$0x1] %vm229, 0.0
      %271 = vst.msk [vmem:[#allocation2 + $0x238] sm:$0x1] %vm229, 0.0
      %vm272 = vcmask 64512
      %273 = vst.msk [vmem:[#allocation3] sm:$0xff] %vm272, 0.0
      %274 = vst.msk [vmem:[#allocation3 + $0x8] sm:$0xff] %vm272, 0.0
      %275 = vst.msk [vmem:[#allocation3 + $0x10] sm:$0xff] %vm272, 0.0
      %vm276 = vcmask 57344
      %277 = vst.msk [vmem:[#allocation3 + $0x18] sm:$0x1] %vm276, 0.0
      %s278 = scalar_lea.vmem [#allocation3], 544
      %279 = vst.msk [vmem:[%s278] sm:$0xff] %vm272, 0.0
      %280 = vst.msk [vmem:[%s278 + $0x8] sm:$0xff] %vm272, 0.0
      %281 = vst.msk [vmem:[%s278 + $0x10] sm:$0xff] %vm272, 0.0
      %282 = vst.msk [vmem:[%s278 + $0x18] sm:$0x1] %vm276, 0.0
      %283 = vst.msk [vmem:[#allocation3 + $0x7] sm:$0x1] %vm276, 0.0
      %284 = vst.msk [vmem:[#allocation3 + $0x27] sm:$0x1] %vm276, 0.0
      %285 = vst.msk [vmem:[#allocation3 + $0x47] sm:$0x1] %vm276, 0.0
      %286 = vst.msk [vmem:[#allocation3 + $0x67] sm:$0x1] %vm276, 0.0
      %287 = vst.msk [vmem:[#allocation3 + $0x87] sm:$0x1] %vm276, 0.0
      %288 = vst.msk [vmem:[#allocation3 + $0xa7] sm:$0x1] %vm276, 0.0
      %289 = vst.msk [vmem:[#allocation3 + $0xc7] sm:$0x1] %vm276, 0.0
      %290 = vst.msk [vmem:[#allocation3 + $0xe7] sm:$0x1] %vm276, 0.0
      %291 = vst.msk [vmem:[#allocation3 + $0x107] sm:$0x1] %vm276, 0.0
      %292 = vst.msk [vmem:[#allocation3 + $0x127] sm:$0x1] %vm276, 0.0
      %293 = vst.msk [vmem:[#allocation3 + $0x147] sm:$0x1] %vm276, 0.0
      %294 = vst.msk [vmem:[#allocation3 + $0x167] sm:$0x1] %vm276, 0.0
      %295 = vst.msk [vmem:[#allocation3 + $0x187] sm:$0x1] %vm276, 0.0
      %296 = vst.msk [vmem:[#allocation3 + $0x1a7] sm:$0x1] %vm276, 0.0
      %297 = vst.msk [vmem:[#allocation3 + $0x1c7] sm:$0x1] %vm276, 0.0
      %298 = vst.msk [vmem:[#allocation3 + $0x1e7] sm:$0x1] %vm276, 0.0
      %299 = vst.msk [vmem:[#allocation3 + $0x207] sm:$0x1] %vm276, 0.0
      %300 = vst.msk [vmem:[#allocation3 + $0x227] sm:$0x1] %vm276, 0.0
      %301 = vst.msk [vmem:[#allocation3 + $0x18] sm:$0x1] %vm276, 0.0
      %302 = vst.msk [vmem:[#allocation3 + $0x38] sm:$0x1] %vm276, 0.0
      %303 = vst.msk [vmem:[#allocation3 + $0x58] sm:$0x1] %vm276, 0.0
      %304 = vst.msk [vmem:[#allocation3 + $0x78] sm:$0x1] %vm276, 0.0
      %305 = vst.msk [vmem:[#allocation3 + $0x98] sm:$0x1] %vm276, 0.0
      %306 = vst.msk [vmem:[#allocation3 + $0xb8] sm:$0x1] %vm276, 0.0
      %307 = vst.msk [vmem:[#allocation3 + $0xd8] sm:$0x1] %vm276, 0.0
      %308 = vst.msk [vmem:[#allocation3 + $0xf8] sm:$0x1] %vm276, 0.0
      %309 = vst.msk [vmem:[#allocation3 + $0x118] sm:$0x1] %vm276, 0.0
      %310 = vst.msk [vmem:[#allocation3 + $0x138] sm:$0x1] %vm276, 0.0
      %311 = vst.msk [vmem:[#allocation3 + $0x158] sm:$0x1] %vm276, 0.0
      %312 = vst.msk [vmem:[#allocation3 + $0x178] sm:$0x1] %vm276, 0.0
      %313 = vst.msk [vmem:[#allocation3 + $0x198] sm:$0x1] %vm276, 0.0
      %314 = vst.msk [vmem:[#allocation3 + $0x1b8] sm:$0x1] %vm276, 0.0
      %315 = vst.msk [vmem:[#allocation3 + $0x1d8] sm:$0x1] %vm276, 0.0
      %316 = vst.msk [vmem:[#allocation3 + $0x1f8] sm:$0x1] %vm276, 0.0
      %317 = vst.msk [vmem:[#allocation3 + $0x218] sm:$0x1] %vm276, 0.0
      %318 = vst.msk [vmem:[#allocation3 + $0x238] sm:$0x1] %vm276, 0.0
      %v319 = vld [vmem:[%s219] sm:$0xff]
      %v320 = vld [vmem:[%s219 + $0x8] sm:$0xff]
      %v321 = vld [vmem:[%s219 + $0x10] sm:$0xff]
      %v322 = vld [vmem:[%s219 + $0x18] sm:$0xff]
      %v323 = vld [vmem:[%s219 + $0x20] sm:$0xff]
      %v324 = vld [vmem:[%s219 + $0x28] sm:$0xff]
      %v325 = vld [vmem:[%s219 + $0x30] sm:$0xff]
      %v326 = vld [vmem:[%s219 + $0x38] sm:$0xff]
      %v327 = vld [vmem:[%s219 + $0x40] sm:$0xff]
      %v328 = vld [vmem:[%s219 + $0x48] sm:$0xff]
      %v329 = vld [vmem:[%s219 + $0x50] sm:$0xff]
      %v330 = vld [vmem:[%s219 + $0x58] sm:$0xff]
      %v331 = vld [vmem:[%s219 + $0x60] sm:$0xff]
      %v332 = vld [vmem:[%s219 + $0x68] sm:$0xff]
      %v333 = vld [vmem:[%s219 + $0x70] sm:$0xff]
      %v334 = vld [vmem:[%s219 + $0x78] sm:$0xff]
      %v335 = vld [vmem:[%s219 + $0x80] sm:$0xff]
      %v336 = vld [vmem:[%s219 + $0x88] sm:$0xff]
      %v337 = vld [vmem:[%s219 + $0x90] sm:$0xff]
      %v338 = vld [vmem:[%s219 + $0x98] sm:$0xff]
      %v339 = vld [vmem:[%s219 + $0xa0] sm:$0xff]
      %v340 = vld [vmem:[%s219 + $0xa8] sm:$0xff]
      %v341 = vld [vmem:[%s219 + $0xb0] sm:$0xff]
      %v342 = vld [vmem:[%s219 + $0xb8] sm:$0xff]
      %v343 = vld [vmem:[%s219 + $0xc0] sm:$0xff]
      %v344 = vld [vmem:[%s219 + $0xc8] sm:$0xff]
      %v345 = vld [vmem:[%s219 + $0xd0] sm:$0xff]
      %v346 = vld [vmem:[%s219 + $0xd8] sm:$0xff]
      %v347 = vld [vmem:[%s219 + $0xe0] sm:$0xff]
      %v348 = vld [vmem:[%s219 + $0xe8] sm:$0xff]
      %v349 = vld [vmem:[%s219 + $0xf0] sm:$0xff]
      %v350 = vld [vmem:[%s219 + $0xf8] sm:$0xff]
      %s351 = scalar_lea.vmem [#allocation2], 32
      %352 = vst.msk [vmem:[%s351 + $0x8] sm:$0xff] %vm225, %v319
      %353 = vst.msk [vmem:[%s351 + $0x10] sm:$0xff] %vm225, %v320
      %354 = vst.msk [vmem:[%s351 + $0x28] sm:$0xff] %vm225, %v321
      %355 = vst.msk [vmem:[%s351 + $0x30] sm:$0xff] %vm225, %v322
      %356 = vst.msk [vmem:[%s351 + $0x48] sm:$0xff] %vm225, %v323
      %357 = vst.msk [vmem:[%s351 + $0x50] sm:$0xff] %vm225, %v324
      %358 = vst.msk [vmem:[%s351 + $0x68] sm:$0xff] %vm225, %v325
      %359 = vst.msk [vmem:[%s351 + $0x70] sm:$0xff] %vm225, %v326
      %360 = vst.msk [vmem:[%s351 + $0x88] sm:$0xff] %vm225, %v327
      %361 = vst.msk [vmem:[%s351 + $0x90] sm:$0xff] %vm225, %v328
      %362 = vst.msk [vmem:[%s351 + $0xa8] sm:$0xff] %vm225, %v329
      %363 = vst.msk [vmem:[%s351 + $0xb0] sm:$0xff] %vm225, %v330
      %364 = vst.msk [vmem:[%s351 + $0xc8] sm:$0xff] %vm225, %v331
      %365 = vst.msk [vmem:[%s351 + $0xd0] sm:$0xff] %vm225, %v332
      %366 = vst.msk [vmem:[%s351 + $0xe8] sm:$0xff] %vm225, %v333
      %367 = vst.msk [vmem:[%s351 + $0xf0] sm:$0xff] %vm225, %v334
      %368 = vst.msk [vmem:[%s351 + $0x108] sm:$0xff] %vm225, %v335
      %369 = vst.msk [vmem:[%s351 + $0x110] sm:$0xff] %vm225, %v336
      %370 = vst.msk [vmem:[%s351 + $0x128] sm:$0xff] %vm225, %v337
      %371 = vst.msk [vmem:[%s351 + $0x130] sm:$0xff] %vm225, %v338
      %372 = vst.msk [vmem:[%s351 + $0x148] sm:$0xff] %vm225, %v339
      %373 = vst.msk [vmem:[%s351 + $0x150] sm:$0xff] %vm225, %v340
      %374 = vst.msk [vmem:[%s351 + $0x168] sm:$0xff] %vm225, %v341
      %375 = vst.msk [vmem:[%s351 + $0x170] sm:$0xff] %vm225, %v342
      %376 = vst.msk [vmem:[%s351 + $0x188] sm:$0xff] %vm225, %v343
      %377 = vst.msk [vmem:[%s351 + $0x190] sm:$0xff] %vm225, %v344
      %378 = vst.msk [vmem:[%s351 + $0x1a8] sm:$0xff] %vm225, %v345
      %379 = vst.msk [vmem:[%s351 + $0x1b0] sm:$0xff] %vm225, %v346
      %380 = vst.msk [vmem:[%s351 + $0x1c8] sm:$0xff] %vm225, %v347
      %381 = vst.msk [vmem:[%s351 + $0x1d0] sm:$0xff] %vm225, %v348
      %382 = vst.msk [vmem:[%s351 + $0x1e8] sm:$0xff] %vm225, %v349
      %383 = vst.msk [vmem:[%s351 + $0x1f0] sm:$0xff] %vm225, %v350
      %v384 = vld [vmem:[#allocation2 + $0x7] sm:$0xff]
      %v385 = vld [vmem:[#allocation2 + $0xf] sm:$0xff]
      %v386 = vld [vmem:[#allocation2 + $0x27] sm:$0xff]
      %v387 = vld [vmem:[#allocation2 + $0x2f] sm:$0xff]
      %v388 = vld [vmem:[#allocation2 + $0x47] sm:$0xff]
      %v389 = vld [vmem:[#allocation2 + $0x4f] sm:$0xff]
      %v390 = vld [vmem:[#allocation2 + $0x67] sm:$0xff]
      %v391 = vld [vmem:[#allocation2 + $0x6f] sm:$0xff]
      %v392 = vld [vmem:[#allocation2 + $0x87] sm:$0xff]
      %v393 = vld [vmem:[#allocation2 + $0x8f] sm:$0xff]
      %v394 = vld [vmem:[#allocation2 + $0xa7] sm:$0xff]
      %v395 = vld [vmem:[#allocation2 + $0xaf] sm:$0xff]
      %v396 = vld [vmem:[#allocation2 + $0xc7] sm:$0xff]
      %v397 = vld [vmem:[#allocation2 + $0xcf] sm:$0xff]
      %v398 = vld [vmem:[#allocation2 + $0xe7] sm:$0xff]
      %v399 = vld [vmem:[#allocation2 + $0xef] sm:$0xff]
      %v400 = vld [vmem:[#allocation2 + $0x107] sm:$0xff]
      %v401 = vld [vmem:[#allocation2 + $0x10f] sm:$0xff]
      %v402 = vld [vmem:[#allocation2 + $0x127] sm:$0xff]
      %v403 = vld [vmem:[#allocation2 + $0x12f] sm:$0xff]
      %v404 = vld [vmem:[#allocation2 + $0x147] sm:$0xff]
      %v405 = vld [vmem:[#allocation2 + $0x14f] sm:$0xff]
      %v406 = vld [vmem:[#allocation2 + $0x167] sm:$0xff]
      %v407 = vld [vmem:[#allocation2 + $0x16f] sm:$0xff]
      %v408 = vld [vmem:[#allocation2 + $0x187] sm:$0xff]
      %v409 = vld [vmem:[#allocation2 + $0x18f] sm:$0xff]
      %v410 = vld [vmem:[#allocation2 + $0x1a7] sm:$0xff]
      %v411 = vld [vmem:[#allocation2 + $0x1af] sm:$0xff]
      %v412 = vld [vmem:[#allocation2 + $0x1c7] sm:$0xff]
      %v413 = vld [vmem:[#allocation2 + $0x1cf] sm:$0xff]
      %v414 = vld [vmem:[#allocation2 + $0x1e7] sm:$0xff]
      %v415 = vld [vmem:[#allocation2 + $0x1ef] sm:$0xff]
      %v416 = vld [vmem:[#allocation2 + $0x8] sm:$0xff]
      %v417 = vld [vmem:[#allocation2 + $0x10] sm:$0xff]
      %v418 = vld [vmem:[#allocation2 + $0x28] sm:$0xff]
      %v419 = vld [vmem:[#allocation2 + $0x30] sm:$0xff]
      %v420 = vld [vmem:[#allocation2 + $0x48] sm:$0xff]
      %v421 = vld [vmem:[#allocation2 + $0x50] sm:$0xff]
      %v422 = vld [vmem:[#allocation2 + $0x68] sm:$0xff]
      %v423 = vld [vmem:[#allocation2 + $0x70] sm:$0xff]
      %v424 = vld [vmem:[#allocation2 + $0x88] sm:$0xff]
      %v425 = vld [vmem:[#allocation2 + $0x90] sm:$0xff]
      %v426 = vld [vmem:[#allocation2 + $0xa8] sm:$0xff]
      %v427 = vld [vmem:[#allocation2 + $0xb0] sm:$0xff]
      %v428 = vld [vmem:[#allocation2 + $0xc8] sm:$0xff]
      %v429 = vld [vmem:[#allocation2 + $0xd0] sm:$0xff]
      %v430 = vld [vmem:[#allocation2 + $0xe8] sm:$0xff]
      %v431 = vld [vmem:[#allocation2 + $0xf0] sm:$0xff]
      %v432 = vld [vmem:[#allocation2 + $0x108] sm:$0xff]
      %v433 = vld [vmem:[#allocation2 + $0x110] sm:$0xff]
      %v434 = vld [vmem:[#allocation2 + $0x128] sm:$0xff]
      %v435 = vld [vmem:[#allocation2 + $0x130] sm:$0xff]
      %v436 = vld [vmem:[#allocation2 + $0x148] sm:$0xff]
      %v437 = vld [vmem:[#allocation2 + $0x150] sm:$0xff]
      %v438 = vld [vmem:[#allocation2 + $0x168] sm:$0xff]
      %v439 = vld [vmem:[#allocation2 + $0x170] sm:$0xff]
      %v440 = vld [vmem:[#allocation2 + $0x188] sm:$0xff]
      %v441 = vld [vmem:[#allocation2 + $0x190] sm:$0xff]
      %v442 = vld [vmem:[#allocation2 + $0x1a8] sm:$0xff]
      %v443 = vld [vmem:[#allocation2 + $0x1b0] sm:$0xff]
      %v444 = vld [vmem:[#allocation2 + $0x1c8] sm:$0xff]
      %v445 = vld [vmem:[#allocation2 + $0x1d0] sm:$0xff]
      %v446 = vld [vmem:[#allocation2 + $0x1e8] sm:$0xff]
      %v447 = vld [vmem:[#allocation2 + $0x1f0] sm:$0xff]
      %v448 = vld [vmem:[#allocation2 + $0x9] sm:$0xff]
      %v449 = vld [vmem:[#allocation2 + $0x11] sm:$0xff]
      %v450 = vld [vmem:[#allocation2 + $0x29] sm:$0xff]
      %v451 = vld [vmem:[#allocation2 + $0x31] sm:$0xff]
      %v452 = vld [vmem:[#allocation2 + $0x49] sm:$0xff]
      %v453 = vld [vmem:[#allocation2 + $0x51] sm:$0xff]
      %v454 = vld [vmem:[#allocation2 + $0x69] sm:$0xff]
      %v455 = vld [vmem:[#allocation2 + $0x71] sm:$0xff]
      %v456 = vld [vmem:[#allocation2 + $0x89] sm:$0xff]
      %v457 = vld [vmem:[#allocation2 + $0x91] sm:$0xff]
      %v458 = vld [vmem:[#allocation2 + $0xa9] sm:$0xff]
      %v459 = vld [vmem:[#allocation2 + $0xb1] sm:$0xff]
      %v460 = vld [vmem:[#allocation2 + $0xc9] sm:$0xff]
      %v461 = vld [vmem:[#allocation2 + $0xd1] sm:$0xff]
      %v462 = vld [vmem:[#allocation2 + $0xe9] sm:$0xff]
      %v463 = vld [vmem:[#allocation2 + $0xf1] sm:$0xff]
      %v464 = vld [vmem:[#allocation2 + $0x109] sm:$0xff]
      %v465 = vld [vmem:[#allocation2 + $0x111] sm:$0xff]
      %v466 = vld [vmem:[#allocation2 + $0x129] sm:$0xff]
      %v467 = vld [vmem:[#allocation2 + $0x131] sm:$0xff]
      %v468 = vld [vmem:[#allocation2 + $0x149] sm:$0xff]
      %v469 = vld [vmem:[#allocation2 + $0x151] sm:$0xff]
      %v470 = vld [vmem:[#allocation2 + $0x169] sm:$0xff]
      %v471 = vld [vmem:[#allocation2 + $0x171] sm:$0xff]
      %v472 = vld [vmem:[#allocation2 + $0x189] sm:$0xff]
      %v473 = vld [vmem:[#allocation2 + $0x191] sm:$0xff]
      %v474 = vld [vmem:[#allocation2 + $0x1a9] sm:$0xff]
      %v475 = vld [vmem:[#allocation2 + $0x1b1] sm:$0xff]
      %v476 = vld [vmem:[#allocation2 + $0x1c9] sm:$0xff]
      %v477 = vld [vmem:[#allocation2 + $0x1d1] sm:$0xff]
      %v478 = vld [vmem:[#allocation2 + $0x1e9] sm:$0xff]
      %v479 = vld [vmem:[#allocation2 + $0x1f1] sm:$0xff]
      %v480 = vld [vmem:[%s351 + $0x7] sm:$0xff]
      %v481 = vld [vmem:[%s351 + $0xf] sm:$0xff]
      %v482 = vld [vmem:[%s351 + $0x27] sm:$0xff]
      %v483 = vld [vmem:[%s351 + $0x2f] sm:$0xff]
      %v484 = vld [vmem:[%s351 + $0x47] sm:$0xff]
      %v485 = vld [vmem:[%s351 + $0x4f] sm:$0xff]
      %v486 = vld [vmem:[%s351 + $0x67] sm:$0xff]
      %v487 = vld [vmem:[%s351 + $0x6f] sm:$0xff]
      %v488 = vld [vmem:[%s351 + $0x87] sm:$0xff]
      %v489 = vld [vmem:[%s351 + $0x8f] sm:$0xff]
      %v490 = vld [vmem:[%s351 + $0xa7] sm:$0xff]
      %v491 = vld [vmem:[%s351 + $0xaf] sm:$0xff]
      %v492 = vld [vmem:[%s351 + $0xc7] sm:$0xff]
      %v493 = vld [vmem:[%s351 + $0xcf] sm:$0xff]
      %v494 = vld [vmem:[%s351 + $0xe7] sm:$0xff]
      %v495 = vld [vmem:[%s351 + $0xef] sm:$0xff]
      %v496 = vld [vmem:[%s351 + $0x107] sm:$0xff]
      %v497 = vld [vmem:[%s351 + $0x10f] sm:$0xff]
      %v498 = vld [vmem:[%s351 + $0x127] sm:$0xff]
      %v499 = vld [vmem:[%s351 + $0x12f] sm:$0xff]
      %v500 = vld [vmem:[%s351 + $0x147] sm:$0xff]
      %v501 = vld [vmem:[%s351 + $0x14f] sm:$0xff]
      %v502 = vld [vmem:[%s351 + $0x167] sm:$0xff]
      %v503 = vld [vmem:[%s351 + $0x16f] sm:$0xff]
      %v504 = vld [vmem:[%s351 + $0x187] sm:$0xff]
      %v505 = vld [vmem:[%s351 + $0x18f] sm:$0xff]
      %v506 = vld [vmem:[%s351 + $0x1a7] sm:$0xff]
      %v507 = vld [vmem:[%s351 + $0x1af] sm:$0xff]
      %v508 = vld [vmem:[%s351 + $0x1c7] sm:$0xff]
      %v509 = vld [vmem:[%s351 + $0x1cf] sm:$0xff]
      %v510 = vld [vmem:[%s351 + $0x1e7] sm:$0xff]
      %v511 = vld [vmem:[%s351 + $0x1ef] sm:$0xff]
      %v512 = vld [vmem:[%s351 + $0x8] sm:$0xff]
      %v513 = vld [vmem:[%s351 + $0x10] sm:$0xff]
      %v514 = vld [vmem:[%s351 + $0x28] sm:$0xff]
      %v515 = vld [vmem:[%s351 + $0x30] sm:$0xff]
      %v516 = vld [vmem:[%s351 + $0x48] sm:$0xff]
      %v517 = vld [vmem:[%s351 + $0x50] sm:$0xff]
      %v518 = vld [vmem:[%s351 + $0x68] sm:$0xff]
      %v519 = vld [vmem:[%s351 + $0x70] sm:$0xff]
      %v520 = vld [vmem:[%s351 + $0x88] sm:$0xff]
      %v521 = vld [vmem:[%s351 + $0x90] sm:$0xff]
      %v522 = vld [vmem:[%s351 + $0xa8] sm:$0xff]
      %v523 = vld [vmem:[%s351 + $0xb0] sm:$0xff]
      %v524 = vld [vmem:[%s351 + $0xc8] sm:$0xff]
      %v525 = vld [vmem:[%s351 + $0xd0] sm:$0xff]
      %v526 = vld [vmem:[%s351 + $0xe8] sm:$0xff]
      %v527 = vld [vmem:[%s351 + $0xf0] sm:$0xff]
      %v528 = vld [vmem:[%s351 + $0x108] sm:$0xff]
      %v529 = vld [vmem:[%s351 + $0x110] sm:$0xff]
      %v530 = vld [vmem:[%s351 + $0x128] sm:$0xff]
      %v531 = vld [vmem:[%s351 + $0x130] sm:$0xff]
      %v532 = vld [vmem:[%s351 + $0x148] sm:$0xff]
      %v533 = vld [vmem:[%s351 + $0x150] sm:$0xff]
      %v534 = vld [vmem:[%s351 + $0x168] sm:$0xff]
      %v535 = vld [vmem:[%s351 + $0x170] sm:$0xff]
      %v536 = vld [vmem:[%s351 + $0x188] sm:$0xff]
      %v537 = vld [vmem:[%s351 + $0x190] sm:$0xff]
      %v538 = vld [vmem:[%s351 + $0x1a8] sm:$0xff]
      %v539 = vld [vmem:[%s351 + $0x1b0] sm:$0xff]
      %v540 = vld [vmem:[%s351 + $0x1c8] sm:$0xff]
      %v541 = vld [vmem:[%s351 + $0x1d0] sm:$0xff]
      %v542 = vld [vmem:[%s351 + $0x1e8] sm:$0xff]
      %v543 = vld [vmem:[%s351 + $0x1f0] sm:$0xff]
      %v544 = vld [vmem:[%s351 + $0x9] sm:$0xff]
      %v545 = vld [vmem:[%s351 + $0x11] sm:$0xff]
      %v546 = vld [vmem:[%s351 + $0x29] sm:$0xff]
      %v547 = vld [vmem:[%s351 + $0x31] sm:$0xff]
      %v548 = vld [vmem:[%s351 + $0x49] sm:$0xff]
      %v549 = vld [vmem:[%s351 + $0x51] sm:$0xff]
      %v550 = vld [vmem:[%s351 + $0x69] sm:$0xff]
      %v551 = vld [vmem:[%s351 + $0x71] sm:$0xff]
      %v552 = vld [vmem:[%s351 + $0x89] sm:$0xff]
      %v553 = vld [vmem:[%s351 + $0x91] sm:$0xff]
      %v554 = vld [vmem:[%s351 + $0xa9] sm:$0xff]
      %v555 = vld [vmem:[%s351 + $0xb1] sm:$0xff]
      %v556 = vld [vmem:[%s351 + $0xc9] sm:$0xff]
      %v557 = vld [vmem:[%s351 + $0xd1] sm:$0xff]
      %v558 = vld [vmem:[%s351 + $0xe9] sm:$0xff]
      %v559 = vld [vmem:[%s351 + $0xf1] sm:$0xff]
      %v560 = vld [vmem:[%s351 + $0x109] sm:$0xff]
      %v561 = vld [vmem:[%s351 + $0x111] sm:$0xff]
      %v562 = vld [vmem:[%s351 + $0x129] sm:$0xff]
      %v563 = vld [vmem:[%s351 + $0x131] sm:$0xff]
      %v564 = vld [vmem:[%s351 + $0x149] sm:$0xff]
      %v565 = vld [vmem:[%s351 + $0x151] sm:$0xff]
      %v566 = vld [vmem:[%s351 + $0x169] sm:$0xff]
      %v567 = vld [vmem:[%s351 + $0x171] sm:$0xff]
      %v568 = vld [vmem:[%s351 + $0x189] sm:$0xff]
      %v569 = vld [vmem:[%s351 + $0x191] sm:$0xff]
      %v570 = vld [vmem:[%s351 + $0x1a9] sm:$0xff]
      %v571 = vld [vmem:[%s351 + $0x1b1] sm:$0xff]
      %v572 = vld [vmem:[%s351 + $0x1c9] sm:$0xff]
      %v573 = vld [vmem:[%s351 + $0x1d1] sm:$0xff]
      %v574 = vld [vmem:[%s351 + $0x1e9] sm:$0xff]
      %v575 = vld [vmem:[%s351 + $0x1f1] sm:$0xff]
      %s576 = scalar_lea.vmem [#allocation2], 64
      %v577 = vld [vmem:[%s576 + $0x7] sm:$0xff]
      %v578 = vld [vmem:[%s576 + $0xf] sm:$0xff]
      %v579 = vld [vmem:[%s576 + $0x27] sm:$0xff]
      %v580 = vld [vmem:[%s576 + $0x2f] sm:$0xff]
      %v581 = vld [vmem:[%s576 + $0x47] sm:$0xff]
      %v582 = vld [vmem:[%s576 + $0x4f] sm:$0xff]
      %v583 = vld [vmem:[%s576 + $0x67] sm:$0xff]
      %v584 = vld [vmem:[%s576 + $0x6f] sm:$0xff]
      %v585 = vld [vmem:[%s576 + $0x87] sm:$0xff]
      %v586 = vld [vmem:[%s576 + $0x8f] sm:$0xff]
      %v587 = vld [vmem:[%s576 + $0xa7] sm:$0xff]
      %v588 = vld [vmem:[%s576 + $0xaf] sm:$0xff]
      %v589 = vld [vmem:[%s576 + $0xc7] sm:$0xff]
      %v590 = vld [vmem:[%s576 + $0xcf] sm:$0xff]
      %v591 = vld [vmem:[%s576 + $0xe7] sm:$0xff]
      %v592 = vld [vmem:[%s576 + $0xef] sm:$0xff]
      %v593 = vld [vmem:[%s576 + $0x107] sm:$0xff]
      %v594 = vld [vmem:[%s576 + $0x10f] sm:$0xff]
      %v595 = vld [vmem:[%s576 + $0x127] sm:$0xff]
      %v596 = vld [vmem:[%s576 + $0x12f] sm:$0xff]
      %v597 = vld [vmem:[%s576 + $0x147] sm:$0xff]
      %v598 = vld [vmem:[%s576 + $0x14f] sm:$0xff]
      %v599 = vld [vmem:[%s576 + $0x167] sm:$0xff]
      %v600 = vld [vmem:[%s576 + $0x16f] sm:$0xff]
      %v601 = vld [vmem:[%s576 + $0x187] sm:$0xff]
      %v602 = vld [vmem:[%s576 + $0x18f] sm:$0xff]
      %v603 = vld [vmem:[%s576 + $0x1a7] sm:$0xff]
      %v604 = vld [vmem:[%s576 + $0x1af] sm:$0xff]
      %v605 = vld [vmem:[%s576 + $0x1c7] sm:$0xff]
      %v606 = vld [vmem:[%s576 + $0x1cf] sm:$0xff]
      %v607 = vld [vmem:[%s576 + $0x1e7] sm:$0xff]
      %v608 = vld [vmem:[%s576 + $0x1ef] sm:$0xff]
      %v609 = vld [vmem:[%s576 + $0x8] sm:$0xff]
      %v610 = vld [vmem:[%s576 + $0x10] sm:$0xff]
      %v611 = vld [vmem:[%s576 + $0x28] sm:$0xff]
      %v612 = vld [vmem:[%s576 + $0x30] sm:$0xff]
      %v613 = vld [vmem:[%s576 + $0x48] sm:$0xff]
      %v614 = vld [vmem:[%s576 + $0x50] sm:$0xff]
      %v615 = vld [vmem:[%s576 + $0x68] sm:$0xff]
      %v616 = vld [vmem:[%s576 + $0x70] sm:$0xff]
      %v617 = vld [vmem:[%s576 + $0x88] sm:$0xff]
      %v618 = vld [vmem:[%s576 + $0x90] sm:$0xff]
      %v619 = vld [vmem:[%s576 + $0xa8] sm:$0xff]
      %v620 = vld [vmem:[%s576 + $0xb0] sm:$0xff]
      %v621 = vld [vmem:[%s576 + $0xc8] sm:$0xff]
      %v622 = vld [vmem:[%s576 + $0xd0] sm:$0xff]
      %v623 = vld [vmem:[%s576 + $0xe8] sm:$0xff]
      %v624 = vld [vmem:[%s576 + $0xf0] sm:$0xff]
      %v625 = vld [vmem:[%s576 + $0x108] sm:$0xff]
      %v626 = vld [vmem:[%s576 + $0x110] sm:$0xff]
      %v627 = vld [vmem:[%s576 + $0x128] sm:$0xff]
      %v628 = vld [vmem:[%s576 + $0x130] sm:$0xff]
      %v629 = vld [vmem:[%s576 + $0x148] sm:$0xff]
      %v630 = vld [vmem:[%s576 + $0x150] sm:$0xff]
      %v631 = vld [vmem:[%s576 + $0x168] sm:$0xff]
      %v632 = vld [vmem:[%s576 + $0x170] sm:$0xff]
      %v633 = vld [vmem:[%s576 + $0x188] sm:$0xff]
      %v634 = vld [vmem:[%s576 + $0x190] sm:$0xff]
      %v635 = vld [vmem:[%s576 + $0x1a8] sm:$0xff]
      %v636 = vld [vmem:[%s576 + $0x1b0] sm:$0xff]
      %v637 = vld [vmem:[%s576 + $0x1c8] sm:$0xff]
      %v638 = vld [vmem:[%s576 + $0x1d0] sm:$0xff]
      %v639 = vld [vmem:[%s576 + $0x1e8] sm:$0xff]
      %v640 = vld [vmem:[%s576 + $0x1f0] sm:$0xff]
      %v641 = vld [vmem:[%s576 + $0x9] sm:$0xff]
      %v642 = vld [vmem:[%s576 + $0x11] sm:$0xff]
      %v643 = vld [vmem:[%s576 + $0x29] sm:$0xff]
      %v644 = vld [vmem:[%s576 + $0x31] sm:$0xff]
      %v645 = vld [vmem:[%s576 + $0x49] sm:$0xff]
      %v646 = vld [vmem:[%s576 + $0x51] sm:$0xff]
      %v647 = vld [vmem:[%s576 + $0x69] sm:$0xff]
      %v648 = vld [vmem:[%s576 + $0x71] sm:$0xff]
      %v649 = vld [vmem:[%s576 + $0x89] sm:$0xff]
      %v650 = vld [vmem:[%s576 + $0x91] sm:$0xff]
      %v651 = vld [vmem:[%s576 + $0xa9] sm:$0xff]
      %v652 = vld [vmem:[%s576 + $0xb1] sm:$0xff]
      %v653 = vld [vmem:[%s576 + $0xc9] sm:$0xff]
      %v654 = vld [vmem:[%s576 + $0xd1] sm:$0xff]
      %v655 = vld [vmem:[%s576 + $0xe9] sm:$0xff]
      %v656 = vld [vmem:[%s576 + $0xf1] sm:$0xff]
      %v657 = vld [vmem:[%s576 + $0x109] sm:$0xff]
      %v658 = vld [vmem:[%s576 + $0x111] sm:$0xff]
      %v659 = vld [vmem:[%s576 + $0x129] sm:$0xff]
      %v660 = vld [vmem:[%s576 + $0x131] sm:$0xff]
      %v661 = vld [vmem:[%s576 + $0x149] sm:$0xff]
      %v662 = vld [vmem:[%s576 + $0x151] sm:$0xff]
      %v663 = vld [vmem:[%s576 + $0x169] sm:$0xff]
      %v664 = vld [vmem:[%s576 + $0x171] sm:$0xff]
      %v665 = vld [vmem:[%s576 + $0x189] sm:$0xff]
      %v666 = vld [vmem:[%s576 + $0x191] sm:$0xff]
      %v667 = vld [vmem:[%s576 + $0x1a9] sm:$0xff]
      %v668 = vld [vmem:[%s576 + $0x1b1] sm:$0xff]
      %v669 = vld [vmem:[%s576 + $0x1c9] sm:$0xff]
      %v670 = vld [vmem:[%s576 + $0x1d1] sm:$0xff]
      %v671 = vld [vmem:[%s576 + $0x1e9] sm:$0xff]
      %v672 = vld [vmem:[%s576 + $0x1f1] sm:$0xff]
      %705 = vrot.lane.b32.xlu0 %v416, 4
      %v706 = vpop.permute.xlu0 %705
      %707 = vrot.lane.b32.xlu0 %v417, 4
      %v708 = vpop.permute.xlu0 %707
      %709 = vrot.lane.b32.xlu0 %v418, 4
      %v710 = vpop.permute.xlu0 %709
      %711 = vrot.lane.b32.xlu0 %v419, 4
      %v712 = vpop.permute.xlu0 %711
      %713 = vrot.lane.b32.xlu0 %v420, 4
      %v714 = vpop.permute.xlu0 %713
      %715 = vrot.lane.b32.xlu0 %v421, 4
      %v716 = vpop.permute.xlu0 %715
      %717 = vrot.lane.b32.xlu0 %v422, 4
      %v718 = vpop.permute.xlu0 %717
      %719 = vrot.lane.b32.xlu0 %v423, 4
      %v720 = vpop.permute.xlu0 %719
      %721 = vrot.lane.b32.xlu0 %v424, 4
      %v722 = vpop.permute.xlu0 %721
      %723 = vrot.lane.b32.xlu0 %v425, 4
      %v724 = vpop.permute.xlu0 %723
      %725 = vrot.lane.b32.xlu0 %v426, 4
      %v726 = vpop.permute.xlu0 %725
      %727 = vrot.lane.b32.xlu0 %v427, 4
      %v728 = vpop.permute.xlu0 %727
      %729 = vrot.lane.b32.xlu0 %v428, 4
      %v730 = vpop.permute.xlu0 %729
      %731 = vrot.lane.b32.xlu0 %v429, 4
      %v732 = vpop.permute.xlu0 %731
      %733 = vrot.lane.b32.xlu0 %v430, 4
      %v734 = vpop.permute.xlu0 %733
      %735 = vrot.lane.b32.xlu0 %v431, 4
      %v736 = vpop.permute.xlu0 %735
      %737 = vrot.lane.b32.xlu0 %v432, 4
      %v738 = vpop.permute.xlu0 %737
      %739 = vrot.lane.b32.xlu0 %v433, 4
      %v740 = vpop.permute.xlu0 %739
      %741 = vrot.lane.b32.xlu0 %v434, 4
      %v742 = vpop.permute.xlu0 %741
      %743 = vrot.lane.b32.xlu0 %v435, 4
      %v744 = vpop.permute.xlu0 %743
      %745 = vrot.lane.b32.xlu0 %v436, 4
      %v746 = vpop.permute.xlu0 %745
      %747 = vrot.lane.b32.xlu0 %v437, 4
      %v748 = vpop.permute.xlu0 %747
      %749 = vrot.lane.b32.xlu0 %v438, 4
      %v750 = vpop.permute.xlu0 %749
      %751 = vrot.lane.b32.xlu0 %v439, 4
      %v752 = vpop.permute.xlu0 %751
      %753 = vrot.lane.b32.xlu0 %v440, 4
      %v754 = vpop.permute.xlu0 %753
      %755 = vrot.lane.b32.xlu0 %v441, 4
      %v756 = vpop.permute.xlu0 %755
      %757 = vrot.lane.b32.xlu0 %v442, 4
      %v758 = vpop.permute.xlu0 %757
      %759 = vrot.lane.b32.xlu0 %v443, 4
      %v760 = vpop.permute.xlu0 %759
      %761 = vrot.lane.b32.xlu0 %v444, 4
      %v762 = vpop.permute.xlu0 %761
      %763 = vrot.lane.b32.xlu0 %v445, 4
      %v764 = vpop.permute.xlu0 %763
      %765 = vrot.lane.b32.xlu0 %v446, 4
      %v766 = vpop.permute.xlu0 %765
      %767 = vrot.lane.b32.xlu0 %v447, 4
      %v768 = vpop.permute.xlu0 %767
      %833 = vrot.lane.b32.xlu0 %v448, 8
      %v834 = vpop.permute.xlu0 %833
      %835 = vrot.lane.b32.xlu0 %v449, 8
      %v836 = vpop.permute.xlu0 %835
      %837 = vrot.lane.b32.xlu0 %v450, 8
      %v838 = vpop.permute.xlu0 %837
      %839 = vrot.lane.b32.xlu0 %v451, 8
      %v840 = vpop.permute.xlu0 %839
      %841 = vrot.lane.b32.xlu0 %v452, 8
      %v842 = vpop.permute.xlu0 %841
      %843 = vrot.lane.b32.xlu0 %v453, 8
      %v844 = vpop.permute.xlu0 %843
      %845 = vrot.lane.b32.xlu0 %v454, 8
      %v846 = vpop.permute.xlu0 %845
      %847 = vrot.lane.b32.xlu0 %v455, 8
      %v848 = vpop.permute.xlu0 %847
      %849 = vrot.lane.b32.xlu0 %v456, 8
      %v850 = vpop.permute.xlu0 %849
      %851 = vrot.lane.b32.xlu0 %v457, 8
      %v852 = vpop.permute.xlu0 %851
      %853 = vrot.lane.b32.xlu0 %v458, 8
      %v854 = vpop.permute.xlu0 %853
      %855 = vrot.lane.b32.xlu0 %v459, 8
      %v856 = vpop.permute.xlu0 %855
      %857 = vrot.lane.b32.xlu0 %v460, 8
      %v858 = vpop.permute.xlu0 %857
      %859 = vrot.lane.b32.xlu0 %v461, 8
      %v860 = vpop.permute.xlu0 %859
      %861 = vrot.lane.b32.xlu0 %v462, 8
      %v862 = vpop.permute.xlu0 %861
      %863 = vrot.lane.b32.xlu0 %v463, 8
      %v864 = vpop.permute.xlu0 %863
      %865 = vrot.lane.b32.xlu0 %v464, 8
      %v866 = vpop.permute.xlu0 %865
      %867 = vrot.lane.b32.xlu0 %v465, 8
      %v868 = vpop.permute.xlu0 %867
      %869 = vrot.lane.b32.xlu0 %v466, 8
      %v870 = vpop.permute.xlu0 %869
      %871 = vrot.lane.b32.xlu0 %v467, 8
      %v872 = vpop.permute.xlu0 %871
      %873 = vrot.lane.b32.xlu0 %v468, 8
      %v874 = vpop.permute.xlu0 %873
      %875 = vrot.lane.b32.xlu0 %v469, 8
      %v876 = vpop.permute.xlu0 %875
      %877 = vrot.lane.b32.xlu0 %v470, 8
      %v878 = vpop.permute.xlu0 %877
      %879 = vrot.lane.b32.xlu0 %v471, 8
      %v880 = vpop.permute.xlu0 %879
      %881 = vrot.lane.b32.xlu0 %v472, 8
      %v882 = vpop.permute.xlu0 %881
      %883 = vrot.lane.b32.xlu0 %v473, 8
      %v884 = vpop.permute.xlu0 %883
      %885 = vrot.lane.b32.xlu0 %v474, 8
      %v886 = vpop.permute.xlu0 %885
      %887 = vrot.lane.b32.xlu0 %v475, 8
      %v888 = vpop.permute.xlu0 %887
      %889 = vrot.lane.b32.xlu0 %v476, 8
      %v890 = vpop.permute.xlu0 %889
      %891 = vrot.lane.b32.xlu0 %v477, 8
      %v892 = vpop.permute.xlu0 %891
      %893 = vrot.lane.b32.xlu0 %v478, 8
      %v894 = vpop.permute.xlu0 %893
      %895 = vrot.lane.b32.xlu0 %v479, 8
      %v896 = vpop.permute.xlu0 %895
      %961 = vrot.lane.b32.xlu0 %v480, 12
      %v962 = vpop.permute.xlu0 %961
      %963 = vrot.lane.b32.xlu0 %v481, 12
      %v964 = vpop.permute.xlu0 %963
      %965 = vrot.lane.b32.xlu0 %v482, 12
      %v966 = vpop.permute.xlu0 %965
      %967 = vrot.lane.b32.xlu0 %v483, 12
      %v968 = vpop.permute.xlu0 %967
      %969 = vrot.lane.b32.xlu0 %v484, 12
      %v970 = vpop.permute.xlu0 %969
      %971 = vrot.lane.b32.xlu0 %v485, 12
      %v972 = vpop.permute.xlu0 %971
      %973 = vrot.lane.b32.xlu0 %v486, 12
      %v974 = vpop.permute.xlu0 %973
      %975 = vrot.lane.b32.xlu0 %v487, 12
      %v976 = vpop.permute.xlu0 %975
      %977 = vrot.lane.b32.xlu0 %v488, 12
      %v978 = vpop.permute.xlu0 %977
      %979 = vrot.lane.b32.xlu0 %v489, 12
      %v980 = vpop.permute.xlu0 %979
      %981 = vrot.lane.b32.xlu0 %v490, 12
      %v982 = vpop.permute.xlu0 %981
      %983 = vrot.lane.b32.xlu0 %v491, 12
      %v984 = vpop.permute.xlu0 %983
      %985 = vrot.lane.b32.xlu0 %v492, 12
      %v986 = vpop.permute.xlu0 %985
      %987 = vrot.lane.b32.xlu0 %v493, 12
      %v988 = vpop.permute.xlu0 %987
      %989 = vrot.lane.b32.xlu0 %v494, 12
      %v990 = vpop.permute.xlu0 %989
      %991 = vrot.lane.b32.xlu0 %v495, 12
      %v992 = vpop.permute.xlu0 %991
      %993 = vrot.lane.b32.xlu0 %v496, 12
      %v994 = vpop.permute.xlu0 %993
      %995 = vrot.lane.b32.xlu0 %v497, 12
      %v996 = vpop.permute.xlu0 %995
      %997 = vrot.lane.b32.xlu0 %v498, 12
      %v998 = vpop.permute.xlu0 %997
      %999 = vrot.lane.b32.xlu0 %v499, 12
      %v1000 = vpop.permute.xlu0 %999
      %1001 = vrot.lane.b32.xlu0 %v500, 12
      %v1002 = vpop.permute.xlu0 %1001
      %1003 = vrot.lane.b32.xlu0 %v501, 12
      %v1004 = vpop.permute.xlu0 %1003
      %1005 = vrot.lane.b32.xlu0 %v502, 12
      %v1006 = vpop.permute.xlu0 %1005
      %1007 = vrot.lane.b32.xlu0 %v503, 12
      %v1008 = vpop.permute.xlu0 %1007
      %1009 = vrot.lane.b32.xlu0 %v504, 12
      %v1010 = vpop.permute.xlu0 %1009
      %1011 = vrot.lane.b32.xlu0 %v505, 12
      %v1012 = vpop.permute.xlu0 %1011
      %1013 = vrot.lane.b32.xlu0 %v506, 12
      %v1014 = vpop.permute.xlu0 %1013
      %1015 = vrot.lane.b32.xlu0 %v507, 12
      %v1016 = vpop.permute.xlu0 %1015
      %1017 = vrot.lane.b32.xlu0 %v508, 12
      %v1018 = vpop.permute.xlu0 %1017
      %1019 = vrot.lane.b32.xlu0 %v509, 12
      %v1020 = vpop.permute.xlu0 %1019
      %1021 = vrot.lane.b32.xlu0 %v510, 12
      %v1022 = vpop.permute.xlu0 %1021
      %1023 = vrot.lane.b32.xlu0 %v511, 12
      %v1024 = vpop.permute.xlu0 %1023
      %1089 = vrot.lane.b32.xlu0 %v512, 16
      %v1090 = vpop.permute.xlu0 %1089
      %1091 = vrot.lane.b32.xlu0 %v513, 16
      %v1092 = vpop.permute.xlu0 %1091
      %1093 = vrot.lane.b32.xlu0 %v514, 16
      %v1094 = vpop.permute.xlu0 %1093
      %1095 = vrot.lane.b32.xlu0 %v515, 16
      %v1096 = vpop.permute.xlu0 %1095
      %1097 = vrot.lane.b32.xlu0 %v516, 16
      %v1098 = vpop.permute.xlu0 %1097
      %1099 = vrot.lane.b32.xlu0 %v517, 16
      %v1100 = vpop.permute.xlu0 %1099
      %1101 = vrot.lane.b32.xlu0 %v518, 16
      %v1102 = vpop.permute.xlu0 %1101
      %1103 = vrot.lane.b32.xlu0 %v519, 16
      %v1104 = vpop.permute.xlu0 %1103
      %1105 = vrot.lane.b32.xlu0 %v520, 16
      %v1106 = vpop.permute.xlu0 %1105
      %1107 = vrot.lane.b32.xlu0 %v521, 16
      %v1108 = vpop.permute.xlu0 %1107
      %1109 = vrot.lane.b32.xlu0 %v522, 16
      %v1110 = vpop.permute.xlu0 %1109
      %1111 = vrot.lane.b32.xlu0 %v523, 16
      %v1112 = vpop.permute.xlu0 %1111
      %1113 = vrot.lane.b32.xlu0 %v524, 16
      %v1114 = vpop.permute.xlu0 %1113
      %1115 = vrot.lane.b32.xlu0 %v525, 16
      %v1116 = vpop.permute.xlu0 %1115
      %1117 = vrot.lane.b32.xlu0 %v526, 16
      %v1118 = vpop.permute.xlu0 %1117
      %1119 = vrot.lane.b32.xlu0 %v527, 16
      %v1120 = vpop.permute.xlu0 %1119
      %1121 = vrot.lane.b32.xlu0 %v528, 16
      %v1122 = vpop.permute.xlu0 %1121
      %1123 = vrot.lane.b32.xlu0 %v529, 16
      %v1124 = vpop.permute.xlu0 %1123
      %1125 = vrot.lane.b32.xlu0 %v530, 16
      %v1126 = vpop.permute.xlu0 %1125
      %1127 = vrot.lane.b32.xlu0 %v531, 16
      %v1128 = vpop.permute.xlu0 %1127
      %1129 = vrot.lane.b32.xlu0 %v532, 16
      %v1130 = vpop.permute.xlu0 %1129
      %1131 = vrot.lane.b32.xlu0 %v533, 16
      %v1132 = vpop.permute.xlu0 %1131
      %1133 = vrot.lane.b32.xlu0 %v534, 16
      %v1134 = vpop.permute.xlu0 %1133
      %1135 = vrot.lane.b32.xlu0 %v535, 16
      %v1136 = vpop.permute.xlu0 %1135
      %1137 = vrot.lane.b32.xlu0 %v536, 16
      %v1138 = vpop.permute.xlu0 %1137
      %1139 = vrot.lane.b32.xlu0 %v537, 16
      %v1140 = vpop.permute.xlu0 %1139
      %1141 = vrot.lane.b32.xlu0 %v538, 16
      %v1142 = vpop.permute.xlu0 %1141
      %1143 = vrot.lane.b32.xlu0 %v539, 16
      %v1144 = vpop.permute.xlu0 %1143
      %1145 = vrot.lane.b32.xlu0 %v540, 16
      %v1146 = vpop.permute.xlu0 %1145
      %1147 = vrot.lane.b32.xlu0 %v541, 16
      %v1148 = vpop.permute.xlu0 %1147
      %1149 = vrot.lane.b32.xlu0 %v542, 16
      %v1150 = vpop.permute.xlu0 %1149
      %1151 = vrot.lane.b32.xlu0 %v543, 16
      %v1152 = vpop.permute.xlu0 %1151
      %1217 = vrot.lane.b32.xlu0 %v544, 20
      %v1218 = vpop.permute.xlu0 %1217
      %1219 = vrot.lane.b32.xlu0 %v545, 20
      %v1220 = vpop.permute.xlu0 %1219
      %1221 = vrot.lane.b32.xlu0 %v546, 20
      %v1222 = vpop.permute.xlu0 %1221
      %1223 = vrot.lane.b32.xlu0 %v547, 20
      %v1224 = vpop.permute.xlu0 %1223
      %1225 = vrot.lane.b32.xlu0 %v548, 20
      %v1226 = vpop.permute.xlu0 %1225
      %1227 = vrot.lane.b32.xlu0 %v549, 20
      %v1228 = vpop.permute.xlu0 %1227
      %1229 = vrot.lane.b32.xlu0 %v550, 20
      %v1230 = vpop.permute.xlu0 %1229
      %1231 = vrot.lane.b32.xlu0 %v551, 20
      %v1232 = vpop.permute.xlu0 %1231
      %1233 = vrot.lane.b32.xlu0 %v552, 20
      %v1234 = vpop.permute.xlu0 %1233
      %1235 = vrot.lane.b32.xlu0 %v553, 20
      %v1236 = vpop.permute.xlu0 %1235
      %1237 = vrot.lane.b32.xlu0 %v554, 20
      %v1238 = vpop.permute.xlu0 %1237
      %1239 = vrot.lane.b32.xlu0 %v555, 20
      %v1240 = vpop.permute.xlu0 %1239
      %1241 = vrot.lane.b32.xlu0 %v556, 20
      %v1242 = vpop.permute.xlu0 %1241
      %1243 = vrot.lane.b32.xlu0 %v557, 20
      %v1244 = vpop.permute.xlu0 %1243
      %1245 = vrot.lane.b32.xlu0 %v558, 20
      %v1246 = vpop.permute.xlu0 %1245
      %1247 = vrot.lane.b32.xlu0 %v559, 20
      %v1248 = vpop.permute.xlu0 %1247
      %1249 = vrot.lane.b32.xlu0 %v560, 20
      %v1250 = vpop.permute.xlu0 %1249
      %1251 = vrot.lane.b32.xlu0 %v561, 20
      %v1252 = vpop.permute.xlu0 %1251
      %1253 = vrot.lane.b32.xlu0 %v562, 20
      %v1254 = vpop.permute.xlu0 %1253
      %1255 = vrot.lane.b32.xlu0 %v563, 20
      %v1256 = vpop.permute.xlu0 %1255
      %1257 = vrot.lane.b32.xlu0 %v564, 20
      %v1258 = vpop.permute.xlu0 %1257
      %1259 = vrot.lane.b32.xlu0 %v565, 20
      %v1260 = vpop.permute.xlu0 %1259
      %1261 = vrot.lane.b32.xlu0 %v566, 20
      %v1262 = vpop.permute.xlu0 %1261
      %1263 = vrot.lane.b32.xlu0 %v567, 20
      %v1264 = vpop.permute.xlu0 %1263
      %1265 = vrot.lane.b32.xlu0 %v568, 20
      %v1266 = vpop.permute.xlu0 %1265
      %1267 = vrot.lane.b32.xlu0 %v569, 20
      %v1268 = vpop.permute.xlu0 %1267
      %1269 = vrot.lane.b32.xlu0 %v570, 20
      %v1270 = vpop.permute.xlu0 %1269
      %1271 = vrot.lane.b32.xlu0 %v571, 20
      %v1272 = vpop.permute.xlu0 %1271
      %1273 = vrot.lane.b32.xlu0 %v572, 20
      %v1274 = vpop.permute.xlu0 %1273
      %1275 = vrot.lane.b32.xlu0 %v573, 20
      %v1276 = vpop.permute.xlu0 %1275
      %1277 = vrot.lane.b32.xlu0 %v574, 20
      %v1278 = vpop.permute.xlu0 %1277
      %1279 = vrot.lane.b32.xlu0 %v575, 20
      %v1280 = vpop.permute.xlu0 %1279
      %1345 = vrot.lane.b32.xlu0 %v577, 24
      %v1346 = vpop.permute.xlu0 %1345
      %1347 = vrot.lane.b32.xlu0 %v578, 24
      %v1348 = vpop.permute.xlu0 %1347
      %1349 = vrot.lane.b32.xlu0 %v579, 24
      %v1350 = vpop.permute.xlu0 %1349
      %1351 = vrot.lane.b32.xlu0 %v580, 24
      %v1352 = vpop.permute.xlu0 %1351
      %1353 = vrot.lane.b32.xlu0 %v581, 24
      %v1354 = vpop.permute.xlu0 %1353
      %1355 = vrot.lane.b32.xlu0 %v582, 24
      %v1356 = vpop.permute.xlu0 %1355
      %1357 = vrot.lane.b32.xlu0 %v583, 24
      %v1358 = vpop.permute.xlu0 %1357
      %1359 = vrot.lane.b32.xlu0 %v584, 24
      %v1360 = vpop.permute.xlu0 %1359
      %1361 = vrot.lane.b32.xlu0 %v585, 24
      %v1362 = vpop.permute.xlu0 %1361
      %1363 = vrot.lane.b32.xlu0 %v586, 24
      %v1364 = vpop.permute.xlu0 %1363
      %1365 = vrot.lane.b32.xlu0 %v587, 24
      %v1366 = vpop.permute.xlu0 %1365
      %1367 = vrot.lane.b32.xlu0 %v588, 24
      %v1368 = vpop.permute.xlu0 %1367
      %1369 = vrot.lane.b32.xlu0 %v589, 24
      %v1370 = vpop.permute.xlu0 %1369
      %1371 = vrot.lane.b32.xlu0 %v590, 24
      %v1372 = vpop.permute.xlu0 %1371
      %1373 = vrot.lane.b32.xlu0 %v591, 24
      %v1374 = vpop.permute.xlu0 %1373
      %1375 = vrot.lane.b32.xlu0 %v592, 24
      %v1376 = vpop.permute.xlu0 %1375
      %1377 = vrot.lane.b32.xlu0 %v593, 24
      %v1378 = vpop.permute.xlu0 %1377
      %1379 = vrot.lane.b32.xlu0 %v594, 24
      %v1380 = vpop.permute.xlu0 %1379
      %1381 = vrot.lane.b32.xlu0 %v595, 24
      %v1382 = vpop.permute.xlu0 %1381
      %1383 = vrot.lane.b32.xlu0 %v596, 24
      %v1384 = vpop.permute.xlu0 %1383
      %1385 = vrot.lane.b32.xlu0 %v597, 24
      %v1386 = vpop.permute.xlu0 %1385
      %1387 = vrot.lane.b32.xlu0 %v598, 24
      %v1388 = vpop.permute.xlu0 %1387
      %1389 = vrot.lane.b32.xlu0 %v599, 24
      %v1390 = vpop.permute.xlu0 %1389
      %1391 = vrot.lane.b32.xlu0 %v600, 24
      %v1392 = vpop.permute.xlu0 %1391
      %1393 = vrot.lane.b32.xlu0 %v601, 24
      %v1394 = vpop.permute.xlu0 %1393
      %1395 = vrot.lane.b32.xlu0 %v602, 24
      %v1396 = vpop.permute.xlu0 %1395
      %1397 = vrot.lane.b32.xlu0 %v603, 24
      %v1398 = vpop.permute.xlu0 %1397
      %1399 = vrot.lane.b32.xlu0 %v604, 24
      %v1400 = vpop.permute.xlu0 %1399
      %1401 = vrot.lane.b32.xlu0 %v605, 24
      %v1402 = vpop.permute.xlu0 %1401
      %1403 = vrot.lane.b32.xlu0 %v606, 24
      %v1404 = vpop.permute.xlu0 %1403
      %1405 = vrot.lane.b32.xlu0 %v607, 24
      %v1406 = vpop.permute.xlu0 %1405
      %1407 = vrot.lane.b32.xlu0 %v608, 24
      %v1408 = vpop.permute.xlu0 %1407
      %1473 = vrot.lane.b32.xlu0 %v609, 28
      %v1474 = vpop.permute.xlu0 %1473
      %1475 = vrot.lane.b32.xlu0 %v610, 28
      %v1476 = vpop.permute.xlu0 %1475
      %1477 = vrot.lane.b32.xlu0 %v611, 28
      %v1478 = vpop.permute.xlu0 %1477
      %1479 = vrot.lane.b32.xlu0 %v612, 28
      %v1480 = vpop.permute.xlu0 %1479
      %1481 = vrot.lane.b32.xlu0 %v613, 28
      %v1482 = vpop.permute.xlu0 %1481
      %1483 = vrot.lane.b32.xlu0 %v614, 28
      %v1484 = vpop.permute.xlu0 %1483
      %1485 = vrot.lane.b32.xlu0 %v615, 28
      %v1486 = vpop.permute.xlu0 %1485
      %1487 = vrot.lane.b32.xlu0 %v616, 28
      %v1488 = vpop.permute.xlu0 %1487
      %1489 = vrot.lane.b32.xlu0 %v617, 28
      %v1490 = vpop.permute.xlu0 %1489
      %1491 = vrot.lane.b32.xlu0 %v618, 28
      %v1492 = vpop.permute.xlu0 %1491
      %1493 = vrot.lane.b32.xlu0 %v619, 28
      %v1494 = vpop.permute.xlu0 %1493
      %1495 = vrot.lane.b32.xlu0 %v620, 28
      %v1496 = vpop.permute.xlu0 %1495
      %1497 = vrot.lane.b32.xlu0 %v621, 28
      %v1498 = vpop.permute.xlu0 %1497
      %1499 = vrot.lane.b32.xlu0 %v622, 28
      %v1500 = vpop.permute.xlu0 %1499
      %1501 = vrot.lane.b32.xlu0 %v623, 28
      %v1502 = vpop.permute.xlu0 %1501
      %1503 = vrot.lane.b32.xlu0 %v624, 28
      %v1504 = vpop.permute.xlu0 %1503
      %1505 = vrot.lane.b32.xlu0 %v625, 28
      %v1506 = vpop.permute.xlu0 %1505
      %1507 = vrot.lane.b32.xlu0 %v626, 28
      %v1508 = vpop.permute.xlu0 %1507
      %1509 = vrot.lane.b32.xlu0 %v627, 28
      %v1510 = vpop.permute.xlu0 %1509
      %1511 = vrot.lane.b32.xlu0 %v628, 28
      %v1512 = vpop.permute.xlu0 %1511
      %1513 = vrot.lane.b32.xlu0 %v629, 28
      %v1514 = vpop.permute.xlu0 %1513
      %1515 = vrot.lane.b32.xlu0 %v630, 28
      %v1516 = vpop.permute.xlu0 %1515
      %1517 = vrot.lane.b32.xlu0 %v631, 28
      %v1518 = vpop.permute.xlu0 %1517
      %1519 = vrot.lane.b32.xlu0 %v632, 28
      %v1520 = vpop.permute.xlu0 %1519
      %1521 = vrot.lane.b32.xlu0 %v633, 28
      %v1522 = vpop.permute.xlu0 %1521
      %1523 = vrot.lane.b32.xlu0 %v634, 28
      %v1524 = vpop.permute.xlu0 %1523
      %1525 = vrot.lane.b32.xlu0 %v635, 28
      %v1526 = vpop.permute.xlu0 %1525
      %1527 = vrot.lane.b32.xlu0 %v636, 28
      %v1528 = vpop.permute.xlu0 %1527
      %1529 = vrot.lane.b32.xlu0 %v637, 28
      %v1530 = vpop.permute.xlu0 %1529
      %1531 = vrot.lane.b32.xlu0 %v638, 28
      %v1532 = vpop.permute.xlu0 %1531
      %1533 = vrot.lane.b32.xlu0 %v639, 28
      %v1534 = vpop.permute.xlu0 %1533
      %1535 = vrot.lane.b32.xlu0 %v640, 28
      %v1536 = vpop.permute.xlu0 %1535
      %1601 = vrot.lane.b32.xlu0 %v641, 32
      %v1602 = vpop.permute.xlu0 %1601
      %1603 = vrot.lane.b32.xlu0 %v642, 32
      %v1604 = vpop.permute.xlu0 %1603
      %1605 = vrot.lane.b32.xlu0 %v643, 32
      %v1606 = vpop.permute.xlu0 %1605
      %1607 = vrot.lane.b32.xlu0 %v644, 32
      %v1608 = vpop.permute.xlu0 %1607
      %1609 = vrot.lane.b32.xlu0 %v645, 32
      %v1610 = vpop.permute.xlu0 %1609
      %1611 = vrot.lane.b32.xlu0 %v646, 32
      %v1612 = vpop.permute.xlu0 %1611
      %1613 = vrot.lane.b32.xlu0 %v647, 32
      %v1614 = vpop.permute.xlu0 %1613
      %1615 = vrot.lane.b32.xlu0 %v648, 32
      %v1616 = vpop.permute.xlu0 %1615
      %1617 = vrot.lane.b32.xlu0 %v649, 32
      %v1618 = vpop.permute.xlu0 %1617
      %1619 = vrot.lane.b32.xlu0 %v650, 32
      %v1620 = vpop.permute.xlu0 %1619
      %1621 = vrot.lane.b32.xlu0 %v651, 32
      %v1622 = vpop.permute.xlu0 %1621
      %1623 = vrot.lane.b32.xlu0 %v652, 32
      %v1624 = vpop.permute.xlu0 %1623
      %1625 = vrot.lane.b32.xlu0 %v653, 32
      %v1626 = vpop.permute.xlu0 %1625
      %1627 = vrot.lane.b32.xlu0 %v654, 32
      %v1628 = vpop.permute.xlu0 %1627
      %1629 = vrot.lane.b32.xlu0 %v655, 32
      %v1630 = vpop.permute.xlu0 %1629
      %1631 = vrot.lane.b32.xlu0 %v656, 32
      %v1632 = vpop.permute.xlu0 %1631
      %1633 = vrot.lane.b32.xlu0 %v657, 32
      %v1634 = vpop.permute.xlu0 %1633
      %1635 = vrot.lane.b32.xlu0 %v658, 32
      %v1636 = vpop.permute.xlu0 %1635
      %1637 = vrot.lane.b32.xlu0 %v659, 32
      %v1638 = vpop.permute.xlu0 %1637
      %1639 = vrot.lane.b32.xlu0 %v660, 32
      %v1640 = vpop.permute.xlu0 %1639
      %1641 = vrot.lane.b32.xlu0 %v661, 32
      %v1642 = vpop.permute.xlu0 %1641
      %1643 = vrot.lane.b32.xlu0 %v662, 32
      %v1644 = vpop.permute.xlu0 %1643
      %1645 = vrot.lane.b32.xlu0 %v663, 32
      %v1646 = vpop.permute.xlu0 %1645
      %1647 = vrot.lane.b32.xlu0 %v664, 32
      %v1648 = vpop.permute.xlu0 %1647
      %1649 = vrot.lane.b32.xlu0 %v665, 32
      %v1650 = vpop.permute.xlu0 %1649
      %1651 = vrot.lane.b32.xlu0 %v666, 32
      %v1652 = vpop.permute.xlu0 %1651
      %1653 = vrot.lane.b32.xlu0 %v667, 32
      %v1654 = vpop.permute.xlu0 %1653
      %1655 = vrot.lane.b32.xlu0 %v668, 32
      %v1656 = vpop.permute.xlu0 %1655
      %1657 = vrot.lane.b32.xlu0 %v669, 32
      %v1658 = vpop.permute.xlu0 %1657
      %1659 = vrot.lane.b32.xlu0 %v670, 32
      %v1660 = vpop.permute.xlu0 %1659
      %1661 = vrot.lane.b32.xlu0 %v671, 32
      %v1662 = vpop.permute.xlu0 %1661
      %1663 = vrot.lane.b32.xlu0 %v672, 32
      %v1664 = vpop.permute.xlu0 %1663
      %v1697 = vsel %vm225, %v384, %v706
      %v1698 = vsel %vm225, %v385, %v708
      %v1699 = vsel %vm225, %v386, %v710
      %v1700 = vsel %vm225, %v387, %v712
      %v1701 = vsel %vm225, %v388, %v714
      %v1702 = vsel %vm225, %v389, %v716
      %v1703 = vsel %vm225, %v390, %v718
      %v1704 = vsel %vm225, %v391, %v720
      %v1705 = vsel %vm225, %v392, %v722
      %v1706 = vsel %vm225, %v393, %v724
      %v1707 = vsel %vm225, %v394, %v726
      %v1708 = vsel %vm225, %v395, %v728
      %v1709 = vsel %vm225, %v396, %v730
      %v1710 = vsel %vm225, %v397, %v732
      %v1711 = vsel %vm225, %v398, %v734
      %v1712 = vsel %vm225, %v399, %v736
      %v1713 = vsel %vm225, %v400, %v738
      %v1714 = vsel %vm225, %v401, %v740
      %v1715 = vsel %vm225, %v402, %v742
      %v1716 = vsel %vm225, %v403, %v744
      %v1717 = vsel %vm225, %v404, %v746
      %v1718 = vsel %vm225, %v405, %v748
      %v1719 = vsel %vm225, %v406, %v750
      %v1720 = vsel %vm225, %v407, %v752
      %v1721 = vsel %vm225, %v408, %v754
      %v1722 = vsel %vm225, %v409, %v756
      %v1723 = vsel %vm225, %v410, %v758
      %v1724 = vsel %vm225, %v411, %v760
      %v1725 = vsel %vm225, %v412, %v762
      %v1726 = vsel %vm225, %v413, %v764
      %v1727 = vsel %vm225, %v414, %v766
      %v1728 = vsel %vm225, %v415, %v768
      %v1729 = vsel %vm272, %v1697, %v834
      %v1730 = vsel %vm272, %v1698, %v836
      %v1731 = vsel %vm272, %v1699, %v838
      %v1732 = vsel %vm272, %v1700, %v840
      %v1733 = vsel %vm272, %v1701, %v842
      %v1734 = vsel %vm272, %v1702, %v844
      %v1735 = vsel %vm272, %v1703, %v846
      %v1736 = vsel %vm272, %v1704, %v848
      %v1737 = vsel %vm272, %v1705, %v850
      %v1738 = vsel %vm272, %v1706, %v852
      %v1739 = vsel %vm272, %v1707, %v854
      %v1740 = vsel %vm272, %v1708, %v856
      %v1741 = vsel %vm272, %v1709, %v858
      %v1742 = vsel %vm272, %v1710, %v860
      %v1743 = vsel %vm272, %v1711, %v862
      %v1744 = vsel %vm272, %v1712, %v864
      %v1745 = vsel %vm272, %v1713, %v866
      %v1746 = vsel %vm272, %v1714, %v868
      %v1747 = vsel %vm272, %v1715, %v870
      %v1748 = vsel %vm272, %v1716, %v872
      %v1749 = vsel %vm272, %v1717, %v874
      %v1750 = vsel %vm272, %v1718, %v876
      %v1751 = vsel %vm272, %v1719, %v878
      %v1752 = vsel %vm272, %v1720, %v880
      %v1753 = vsel %vm272, %v1721, %v882
      %v1754 = vsel %vm272, %v1722, %v884
      %v1755 = vsel %vm272, %v1723, %v886
      %v1756 = vsel %vm272, %v1724, %v888
      %v1757 = vsel %vm272, %v1725, %v890
      %v1758 = vsel %vm272, %v1726, %v892
      %v1759 = vsel %vm272, %v1727, %v894
      %v1760 = vsel %vm272, %v1728, %v896
      %vm1761 = vcmask 97280
      %v1762 = vsel %vm1761, %v1729, %v962
      %v1763 = vsel %vm1761, %v1730, %v964
      %v1764 = vsel %vm1761, %v1731, %v966
      %v1765 = vsel %vm1761, %v1732, %v968
      %v1766 = vsel %vm1761, %v1733, %v970
      %v1767 = vsel %vm1761, %v1734, %v972
      %v1768 = vsel %vm1761, %v1735, %v974
      %v1769 = vsel %vm1761, %v1736, %v976
      %v1770 = vsel %vm1761, %v1737, %v978
      %v1771 = vsel %vm1761, %v1738, %v980
      %v1772 = vsel %vm1761, %v1739, %v982
      %v1773 = vsel %vm1761, %v1740, %v984
      %v1774 = vsel %vm1761, %v1741, %v986
      %v1775 = vsel %vm1761, %v1742, %v988
      %v1776 = vsel %vm1761, %v1743, %v990
      %v1777 = vsel %vm1761, %v1744, %v992
      %v1778 = vsel %vm1761, %v1745, %v994
      %v1779 = vsel %vm1761, %v1746, %v996
      %v1780 = vsel %vm1761, %v1747, %v998
      %v1781 = vsel %vm1761, %v1748, %v1000
      %v1782 = vsel %vm1761, %v1749, %v1002
      %v1783 = vsel %vm1761, %v1750, %v1004
      %v1784 = vsel %vm1761, %v1751, %v1006
      %v1785 = vsel %vm1761, %v1752, %v1008
      %v1786 = vsel %vm1761, %v1753, %v1010
      %v1787 = vsel %vm1761, %v1754, %v1012
      %v1788 = vsel %vm1761, %v1755, %v1014
      %v1789 = vsel %vm1761, %v1756, %v1016
      %v1790 = vsel %vm1761, %v1757, %v1018
      %v1791 = vsel %vm1761, %v1758, %v1020
      %v1792 = vsel %vm1761, %v1759, %v1022
      %v1793 = vsel %vm1761, %v1760, %v1024
      %vm1794 = vcmask 130048
      %v1795 = vsel %vm1794, %v1762, %v1090
      %v1796 = vsel %vm1794, %v1763, %v1092
      %v1797 = vsel %vm1794, %v1764, %v1094
      %v1798 = vsel %vm1794, %v1765, %v1096
      %v1799 = vsel %vm1794, %v1766, %v1098
      %v1800 = vsel %vm1794, %v1767, %v1100
      %v1801 = vsel %vm1794, %v1768, %v1102
      %v1802 = vsel %vm1794, %v1769, %v1104
      %v1803 = vsel %vm1794, %v1770, %v1106
      %v1804 = vsel %vm1794, %v1771, %v1108
      %v1805 = vsel %vm1794, %v1772, %v1110
      %v1806 = vsel %vm1794, %v1773, %v1112
      %v1807 = vsel %vm1794, %v1774, %v1114
      %v1808 = vsel %vm1794, %v1775, %v1116
      %v1809 = vsel %vm1794, %v1776, %v1118
      %v1810 = vsel %vm1794, %v1777, %v1120
      %v1811 = vsel %vm1794, %v1778, %v1122
      %v1812 = vsel %vm1794, %v1779, %v1124
      %v1813 = vsel %vm1794, %v1780, %v1126
      %v1814 = vsel %vm1794, %v1781, %v1128
      %v1815 = vsel %vm1794, %v1782, %v1130
      %v1816 = vsel %vm1794, %v1783, %v1132
      %v1817 = vsel %vm1794, %v1784, %v1134
      %v1818 = vsel %vm1794, %v1785, %v1136
      %v1819 = vsel %vm1794, %v1786, %v1138
      %v1820 = vsel %vm1794, %v1787, %v1140
      %v1821 = vsel %vm1794, %v1788, %v1142
      %v1822 = vsel %vm1794, %v1789, %v1144
      %v1823 = vsel %vm1794, %v1790, %v1146
      %v1824 = vsel %vm1794, %v1791, %v1148
      %v1825 = vsel %vm1794, %v1792, %v1150
      %v1826 = vsel %vm1794, %v1793, %v1152
      %vm1827 = vcmask 162816
      %v1828 = vsel %vm1827, %v1795, %v1218
      %v1829 = vsel %vm1827, %v1796, %v1220
      %v1830 = vsel %vm1827, %v1797, %v1222
      %v1831 = vsel %vm1827, %v1798, %v1224
      %v1832 = vsel %vm1827, %v1799, %v1226
      %v1833 = vsel %vm1827, %v1800, %v1228
      %v1834 = vsel %vm1827, %v1801, %v1230
      %v1835 = vsel %vm1827, %v1802, %v1232
      %v1836 = vsel %vm1827, %v1803, %v1234
      %v1837 = vsel %vm1827, %v1804, %v1236
      %v1838 = vsel %vm1827, %v1805, %v1238
      %v1839 = vsel %vm1827, %v1806, %v1240
      %v1840 = vsel %vm1827, %v1807, %v1242
      %v1841 = vsel %vm1827, %v1808, %v1244
      %v1842 = vsel %vm1827, %v1809, %v1246
      %v1843 = vsel %vm1827, %v1810, %v1248
      %v1844 = vsel %vm1827, %v1811, %v1250
      %v1845 = vsel %vm1827, %v1812, %v1252
      %v1846 = vsel %vm1827, %v1813, %v1254
      %v1847 = vsel %vm1827, %v1814, %v1256
      %v1848 = vsel %vm1827, %v1815, %v1258
      %v1849 = vsel %vm1827, %v1816, %v1260
      %v1850 = vsel %vm1827, %v1817, %v1262
      %v1851 = vsel %vm1827, %v1818, %v1264
      %v1852 = vsel %vm1827, %v1819, %v1266
      %v1853 = vsel %vm1827, %v1820, %v1268
      %v1854 = vsel %vm1827, %v1821, %v1270
      %v1855 = vsel %vm1827, %v1822, %v1272
      %v1856 = vsel %vm1827, %v1823, %v1274
      %v1857 = vsel %vm1827, %v1824, %v1276
      %v1858 = vsel %vm1827, %v1825, %v1278
      %v1859 = vsel %vm1827, %v1826, %v1280
      %vm1860 = vcmask 195584
      %v1861 = vsel %vm1860, %v1828, %v1346
      %v1862 = vsel %vm1860, %v1829, %v1348
      %v1863 = vsel %vm1860, %v1830, %v1350
      %v1864 = vsel %vm1860, %v1831, %v1352
      %v1865 = vsel %vm1860, %v1832, %v1354
      %v1866 = vsel %vm1860, %v1833, %v1356
      %v1867 = vsel %vm1860, %v1834, %v1358
      %v1868 = vsel %vm1860, %v1835, %v1360
      %v1869 = vsel %vm1860, %v1836, %v1362
      %v1870 = vsel %vm1860, %v1837, %v1364
      %v1871 = vsel %vm1860, %v1838, %v1366
      %v1872 = vsel %vm1860, %v1839, %v1368
      %v1873 = vsel %vm1860, %v1840, %v1370
      %v1874 = vsel %vm1860, %v1841, %v1372
      %v1875 = vsel %vm1860, %v1842, %v1374
      %v1876 = vsel %vm1860, %v1843, %v1376
      %v1877 = vsel %vm1860, %v1844, %v1378
      %v1878 = vsel %vm1860, %v1845, %v1380
      %v1879 = vsel %vm1860, %v1846, %v1382
      %v1880 = vsel %vm1860, %v1847, %v1384
      %v1881 = vsel %vm1860, %v1848, %v1386
      %v1882 = vsel %vm1860, %v1849, %v1388
      %v1883 = vsel %vm1860, %v1850, %v1390
      %v1884 = vsel %vm1860, %v1851, %v1392
      %v1885 = vsel %vm1860, %v1852, %v1394
      %v1886 = vsel %vm1860, %v1853, %v1396
      %v1887 = vsel %vm1860, %v1854, %v1398
      %v1888 = vsel %vm1860, %v1855, %v1400
      %v1889 = vsel %vm1860, %v1856, %v1402
      %v1890 = vsel %vm1860, %v1857, %v1404
      %v1891 = vsel %vm1860, %v1858, %v1406
      %v1892 = vsel %vm1860, %v1859, %v1408
      %vm1893 = vcmask 228352
      %v1894 = vsel %vm1893, %v1861, %v1474
      %v1895 = vsel %vm1893, %v1862, %v1476
      %v1896 = vsel %vm1893, %v1863, %v1478
      %v1897 = vsel %vm1893, %v1864, %v1480
      %v1898 = vsel %vm1893, %v1865, %v1482
      %v1899 = vsel %vm1893, %v1866, %v1484
      %v1900 = vsel %vm1893, %v1867, %v1486
      %v1901 = vsel %vm1893, %v1868, %v1488
      %v1902 = vsel %vm1893, %v1869, %v1490
      %v1903 = vsel %vm1893, %v1870, %v1492
      %v1904 = vsel %vm1893, %v1871, %v1494
      %v1905 = vsel %vm1893, %v1872, %v1496
      %v1906 = vsel %vm1893, %v1873, %v1498
      %v1907 = vsel %vm1893, %v1874, %v1500
      %v1908 = vsel %vm1893, %v1875, %v1502
      %v1909 = vsel %vm1893, %v1876, %v1504
      %v1910 = vsel %vm1893, %v1877, %v1506
      %v1911 = vsel %vm1893, %v1878, %v1508
      %v1912 = vsel %vm1893, %v1879, %v1510
      %v1913 = vsel %vm1893, %v1880, %v1512
      %v1914 = vsel %vm1893, %v1881, %v1514
      %v1915 = vsel %vm1893, %v1882, %v1516
      %v1916 = vsel %vm1893, %v1883, %v1518
      %v1917 = vsel %vm1893, %v1884, %v1520
      %v1918 = vsel %vm1893, %v1885, %v1522
      %v1919 = vsel %vm1893, %v1886, %v1524
      %v1920 = vsel %vm1893, %v1887, %v1526
      %v1921 = vsel %vm1893, %v1888, %v1528
      %v1922 = vsel %vm1893, %v1889, %v1530
      %v1923 = vsel %vm1893, %v1890, %v1532
      %v1924 = vsel %vm1893, %v1891, %v1534
      %v1925 = vsel %vm1893, %v1892, %v1536
      %vm1926 = vcmask 261120
      %v1927 = vsel %vm1926, %v1894, %v1602
      %v1928 = vsel %vm1926, %v1895, %v1604
      %v1929 = vsel %vm1926, %v1896, %v1606
      %v1930 = vsel %vm1926, %v1897, %v1608
      %v1931 = vsel %vm1926, %v1898, %v1610
      %v1932 = vsel %vm1926, %v1899, %v1612
      %v1933 = vsel %vm1926, %v1900, %v1614
      %v1934 = vsel %vm1926, %v1901, %v1616
      %v1935 = vsel %vm1926, %v1902, %v1618
      %v1936 = vsel %vm1926, %v1903, %v1620
      %v1937 = vsel %vm1926, %v1904, %v1622
      %v1938 = vsel %vm1926, %v1905, %v1624
      %v1939 = vsel %vm1926, %v1906, %v1626
      %v1940 = vsel %vm1926, %v1907, %v1628
      %v1941 = vsel %vm1926, %v1908, %v1630
      %v1942 = vsel %vm1926, %v1909, %v1632
      %v1943 = vsel %vm1926, %v1910, %v1634
      %v1944 = vsel %vm1926, %v1911, %v1636
      %v1945 = vsel %vm1926, %v1912, %v1638
      %v1946 = vsel %vm1926, %v1913, %v1640
      %v1947 = vsel %vm1926, %v1914, %v1642
      %v1948 = vsel %vm1926, %v1915, %v1644
      %v1949 = vsel %vm1926, %v1916, %v1646
      %v1950 = vsel %vm1926, %v1917, %v1648
      %v1951 = vsel %vm1926, %v1918, %v1650
      %v1952 = vsel %vm1926, %v1919, %v1652
      %v1953 = vsel %vm1926, %v1920, %v1654
      %v1954 = vsel %vm1926, %v1921, %v1656
      %v1955 = vsel %vm1926, %v1922, %v1658
      %v1956 = vsel %vm1926, %v1923, %v1660
      %v1957 = vsel %vm1926, %v1924, %v1662
      %v1958 = vsel %vm1926, %v1925, %v1664
      %v1959 = vld [vmem:[%s1] sm:$0xff]
      %v1960 = vld [vmem:[%s1 + $0x8] sm:$0xff]
      %v1961 = vld [vmem:[%s1 + $0x10] sm:$0xff]
      %v1962 = vld [vmem:[%s1 + $0x18] sm:$0xff]
      %v1963 = vld [vmem:[%s1 + $0x20] sm:$0xf]
      %v1964 = vld [vmem:[%s2] sm:$0x1]
      %v1966 = vlaneseq
      %v1967 = vshrl.u32 %v1966, 7
      %v1968 = vsub.s32 0, %v1967
      %v1969 = vrot.slane %v1964, %v1968
      %vm1971 = vcmask 293888
      %v1973 = vsel %vm1971, %v1927, 0
      %v1976 = vsel %vm1971, %v1928, 0
      %v1979 = vsel %vm1971, %v1929, 0
      %v1982 = vsel %vm1971, %v1930, 0
      %v1985 = vsel %vm1971, %v1931, 0
      %v1988 = vsel %vm1971, %v1932, 0
      %v1991 = vsel %vm1971, %v1933, 0
      %v1994 = vsel %vm1971, %v1934, 0
      %v1997 = vsel %vm1971, %v1935, 0
      %v2000 = vsel %vm1971, %v1936, 0
      %v2003 = vsel %vm1971, %v1937, 0
      %v2006 = vsel %vm1971, %v1938, 0
      %v2009 = vsel %vm1971, %v1939, 0
      %v2012 = vsel %vm1971, %v1940, 0
      %v2015 = vsel %vm1971, %v1941, 0
      %v2018 = vsel %vm1971, %v1942, 0
      %v2021 = vsel %vm1971, %v1943, 0
      %v2024 = vsel %vm1971, %v1944, 0
      %v2027 = vsel %vm1971, %v1945, 0
      %v2030 = vsel %vm1971, %v1946, 0
      %v2033 = vsel %vm1971, %v1947, 0
      %v2036 = vsel %vm1971, %v1948, 0
      %v2039 = vsel %vm1971, %v1949, 0
      %v2042 = vsel %vm1971, %v1950, 0
      %v2045 = vsel %vm1971, %v1951, 0
      %v2048 = vsel %vm1971, %v1952, 0
      %v2051 = vsel %vm1971, %v1953, 0
      %v2054 = vsel %vm1971, %v1954, 0
      %v2057 = vsel %vm1971, %v1955, 0
      %v2060 = vsel %vm1971, %v1956, 0
      %v2063 = vsel %vm1971, %v1957, 0
      %v2066 = vsel %vm1971, %v1958, 0
      %vm2068 = vcmask 1043456
      %v2070 = vsel %vm2068, %v1963, 0
      %2072 = vmatprep.subr.mxu0 0.0
      %2073 = vmatpush1.msra.mxu0 %v1959
      %2074 = vmatprep.subr.mxu0 0.0
      %2075 = vmatpush1.msra.mxu0 %v1960
      %2076 = vmatprep.subr.mxu0 0.0
      %2077 = vmatpush1.msra.mxu0 %v1961
      %2078 = vmatprep.subr.mxu0 0.0
      %2079 = vmatpush1.msra.mxu0 %v1962
      %2080 = vmatprep.subr.mxu0 0.0
      %2081 = vmatpush1.msra.mxu0 %v2070
      %2082 = vmatprep.subr.mxu0 0.0
      %2083 = vmatpush1.msra.mxu0 0.0
      %2084 = vmatprep.subr.mxu0 0.0
      %2085 = vmatpush1.msra.mxu0 0.0
      %2086 = vmatprep.subr.mxu0 0.0
      %2087 = vmatpush1.msra.mxu0 0.0
      %2088 = vmatprep.subr.mxu0 0.0
      %2089 = vmatpush1.msra.mxu0 0.0
      %2090 = vmatprep.subr.mxu0 0.0
      %2091 = vmatpush1.msra.mxu0 0.0
      %2092 = vmatprep.subr.mxu0 0.0
      %2093 = vmatpush1.msra.mxu0 0.0
      %2094 = vmatprep.subr.mxu0 0.0
      %2095 = vmatpush1.msra.mxu0 0.0
      %2096 = vmatprep.subr.mxu0 0.0
      %2097 = vmatpush1.msra.mxu0 0.0
      %2098 = vmatprep.subr.mxu0 0.0
      %2099 = vmatpush1.msra.mxu0 0.0
      %2100 = vmatprep.subr.mxu0 0.0
      %2101 = vmatpush1.msra.mxu0 0.0
      %2102 = vmatprep.subr.mxu0 0.0
      %2103 = vmatpush1.msra.mxu0 0.0
      %2104 = vmatprep.subr.mxu0 0.0
      %2105 = vmatpush1.msra.mxu0 0.0
      %2106 = vmatprep.subr.mxu0 0.0
      %2107 = vmatpush1.msra.mxu0 0.0
      %2108 = vmatprep.subr.mxu0 0.0
      %2109 = vmatpush1.msra.mxu0 0.0
      %2110 = vmatprep.subr.mxu0 0.0
      %2111 = vmatpush1.msra.mxu0 0.0
      %2112 = vmatprep.subr.mxu0 0.0
      %2113 = vmatpush1.msra.mxu0 0.0
      %2114 = vmatprep.subr.mxu0 0.0
      %2115 = vmatpush1.msra.mxu0 0.0
      %2116 = vmatprep.subr.mxu0 0.0
      %2117 = vmatpush1.msra.mxu0 0.0
      %2118 = vmatprep.subr.mxu0 0.0
      %2119 = vmatpush1.msra.mxu0 0.0
      %2120 = vmatprep.subr.mxu0 0.0
      %2121 = vmatpush1.msra.mxu0 0.0
      %2122 = vmatprep.subr.mxu0 0.0
      %2123 = vmatpush1.msra.mxu0 0.0
      %2124 = vmatprep.subr.mxu0 0.0
      %2125 = vmatpush1.msra.mxu0 0.0
      %2126 = vmatprep.subr.mxu0 0.0
      %2127 = vmatpush1.msra.mxu0 0.0
      %2128 = vmatprep.subr.mxu0 0.0
      %2129 = vmatpush1.msra.mxu0 0.0
      %2130 = vmatprep.subr.mxu0 0.0
      %2131 = vmatpush1.msra.mxu0 0.0
      %2132 = vmatprep.subr.mxu0 0.0
      %2133 = vmatpush1.msra.mxu0 0.0
      %2134 = vmatprep.subr.mxu0 0.0
      %2135 = vmatpush1.msra.mxu0 0.0
      %2136 = vmatprep.mubr.f32.mxu0 0.0
      %2137 = vmatmul.mubr.f32.gmra.mrb[0].mxu0 %v1973
      %v2138 = vpop.f32.mrb[0].mxu0
      %v2139 = vadd.f32 %v1969, %v2138
      %v2140 = vpop.f32.mrb[0].mxu0
      %2141 = vmatprep.mubr.f32.mxu0 0.0
      %2142 = vmatmul.mubr.f32.gmra.mrb[0].mxu0 %v1976
      %v2143 = vpop.f32.mrb[0].mxu0
      %v2144 = vadd.f32 %v1969, %v2143
      %v2145 = vpop.f32.mrb[0].mxu0
      %2146 = vmatprep.mubr.f32.mxu0 0.0
      %2147 = vmatmul.mubr.f32.gmra.mrb[0].mxu0 %v1979
      %v2148 = vpop.f32.mrb[0].mxu0
      %v2149 = vadd.f32 %v1969, %v2148
      %v2150 = vpop.f32.mrb[0].mxu0
      %2151 = vmatprep.mubr.f32.mxu0 0.0
      %2152 = vmatmul.mubr.f32.gmra.mrb[0].mxu0 %v1982
      %v2153 = vpop.f32.mrb[0].mxu0
      %v2154 = vadd.f32 %v1969, %v2153
      %v2155 = vpop.f32.mrb[0].mxu0
      %2156 = vmatprep.mubr.f32.mxu0 0.0
      %2157 = vmatmul.mubr.f32.gmra.mrb[0].mxu0 %v1985
      %v2158 = vpop.f32.mrb[0].mxu0
      %v2159 = vadd.f32 %v1969, %v2158
      %v2160 = vpop.f32.mrb[0].mxu0
      %2161 = vmatprep.mubr.f32.mxu0 0.0
      %2162 = vmatmul.mubr.f32.gmra.mrb[0].mxu0 %v1988
      %v2163 = vpop.f32.mrb[0].mxu0
      %v2164 = vadd.f32 %v1969, %v2163
      %v2165 = vpop.f32.mrb[0].mxu0
      %2166 = vmatprep.mubr.f32.mxu0 0.0
      %2167 = vmatmul.mubr.f32.gmra.mrb[0].mxu0 %v1991
      %v2168 = vpop.f32.mrb[0].mxu0
      %v2169 = vadd.f32 %v1969, %v2168
      %v2170 = vpop.f32.mrb[0].mxu0
      %2171 = vmatprep.mubr.f32.mxu0 0.0
      %2172 = vmatmul.mubr.f32.gmra.mrb[0].mxu0 %v1994
      %v2173 = vpop.f32.mrb[0].mxu0
      %v2174 = vadd.f32 %v1969, %v2173
      %v2175 = vpop.f32.mrb[0].mxu0
      %2176 = vmatprep.mubr.f32.mxu0 0.0
      %2177 = vmatmul.mubr.f32.gmra.mrb[0].mxu0 %v1997
      %v2178 = vpop.f32.mrb[0].mxu0
      %v2179 = vadd.f32 %v1969, %v2178
      %v2180 = vpop.f32.mrb[0].mxu0
      %2181 = vmatprep.mubr.f32.mxu0 0.0
      %2182 = vmatmul.mubr.f32.gmra.mrb[0].mxu0 %v2000
      %v2183 = vpop.f32.mrb[0].mxu0
      %v2184 = vadd.f32 %v1969, %v2183
      %v2185 = vpop.f32.mrb[0].mxu0
      %2186 = vmatprep.mubr.f32.mxu0 0.0
      %2187 = vmatmul.mubr.f32.gmra.mrb[0].mxu0 %v2003
      %v2188 = vpop.f32.mrb[0].mxu0
      %v2189 = vadd.f32 %v1969, %v2188
      %v2190 = vpop.f32.mrb[0].mxu0
      %2191 = vmatprep.mubr.f32.mxu0 0.0
      %2192 = vmatmul.mubr.f32.gmra.mrb[0].mxu0 %v2006
      %v2193 = vpop.f32.mrb[0].mxu0
      %v2194 = vadd.f32 %v1969, %v2193
      %v2195 = vpop.f32.mrb[0].mxu0
      %2196 = vmatprep.mubr.f32.mxu0 0.0
      %2197 = vmatmul.mubr.f32.gmra.mrb[0].mxu0 %v2009
      %v2198 = vpop.f32.mrb[0].mxu0
      %v2199 = vadd.f32 %v1969, %v2198
      %v2200 = vpop.f32.mrb[0].mxu0
      %2201 = vmatprep.mubr.f32.mxu0 0.0
      %2202 = vmatmul.mubr.f32.gmra.mrb[0].mxu0 %v2012
      %v2203 = vpop.f32.mrb[0].mxu0
      %v2204 = vadd.f32 %v1969, %v2203
      %v2205 = vpop.f32.mrb[0].mxu0
      %2206 = vmatprep.mubr.f32.mxu0 0.0
      %2207 = vmatmul.mubr.f32.gmra.mrb[0].mxu0 %v2015
      %v2208 = vpop.f32.mrb[0].mxu0
      %v2209 = vadd.f32 %v1969, %v2208
      %v2210 = vpop.f32.mrb[0].mxu0
      %2211 = vmatprep.mubr.f32.mxu0 0.0
      %2212 = vmatmul.mubr.f32.gmra.mrb[0].mxu0 %v2018
      %v2213 = vpop.f32.mrb[0].mxu0
      %v2214 = vadd.f32 %v1969, %v2213
      %v2215 = vpop.f32.mrb[0].mxu0
      %2216 = vmatprep.mubr.f32.mxu0 0.0
      %2217 = vmatmul.mubr.f32.gmra.mrb[0].mxu0 %v2021
      %v2218 = vpop.f32.mrb[0].mxu0
      %v2219 = vadd.f32 %v1969, %v2218
      %v2220 = vpop.f32.mrb[0].mxu0
      %2221 = vmatprep.mubr.f32.mxu0 0.0
      %2222 = vmatmul.mubr.f32.gmra.mrb[0].mxu0 %v2024
      %v2223 = vpop.f32.mrb[0].mxu0
      %v2224 = vadd.f32 %v1969, %v2223
      %v2225 = vpop.f32.mrb[0].mxu0
      %2226 = vmatprep.mubr.f32.mxu0 0.0
      %2227 = vmatmul.mubr.f32.gmra.mrb[0].mxu0 %v2027
      %v2228 = vpop.f32.mrb[0].mxu0
      %v2229 = vadd.f32 %v1969, %v2228
      %v2230 = vpop.f32.mrb[0].mxu0
      %2231 = vmatprep.mubr.f32.mxu0 0.0
      %2232 = vmatmul.mubr.f32.gmra.mrb[0].mxu0 %v2030
      %v2233 = vpop.f32.mrb[0].mxu0
      %v2234 = vadd.f32 %v1969, %v2233
      %v2235 = vpop.f32.mrb[0].mxu0
      %2236 = vmatprep.mubr.f32.mxu0 0.0
      %2237 = vmatmul.mubr.f32.gmra.mrb[0].mxu0 %v2033
      %v2238 = vpop.f32.mrb[0].mxu0
      %v2239 = vadd.f32 %v1969, %v2238
      %v2240 = vpop.f32.mrb[0].mxu0
      %2241 = vmatprep.mubr.f32.mxu0 0.0
      %2242 = vmatmul.mubr.f32.gmra.mrb[0].mxu0 %v2036
      %v2243 = vpop.f32.mrb[0].mxu0
      %v2244 = vadd.f32 %v1969, %v2243
      %v2245 = vpop.f32.mrb[0].mxu0
      %2246 = vmatprep.mubr.f32.mxu0 0.0
      %2247 = vmatmul.mubr.f32.gmra.mrb[0].mxu0 %v2039
      %v2248 = vpop.f32.mrb[0].mxu0
      %v2249 = vadd.f32 %v1969, %v2248
      %v2250 = vpop.f32.mrb[0].mxu0
      %2251 = vmatprep.mubr.f32.mxu0 0.0
      %2252 = vmatmul.mubr.f32.gmra.mrb[0].mxu0 %v2042
      %v2253 = vpop.f32.mrb[0].mxu0
      %v2254 = vadd.f32 %v1969, %v2253
      %v2255 = vpop.f32.mrb[0].mxu0
      %2256 = vmatprep.mubr.f32.mxu0 0.0
      %2257 = vmatmul.mubr.f32.gmra.mrb[0].mxu0 %v2045
      %v2258 = vpop.f32.mrb[0].mxu0
      %v2259 = vadd.f32 %v1969, %v2258
      %v2260 = vpop.f32.mrb[0].mxu0
      %2261 = vmatprep.mubr.f32.mxu0 0.0
      %2262 = vmatmul.mubr.f32.gmra.mrb[0].mxu0 %v2048
      %v2263 = vpop.f32.mrb[0].mxu0
      %v2264 = vadd.f32 %v1969, %v2263
      %v2265 = vpop.f32.mrb[0].mxu0
      %2266 = vmatprep.mubr.f32.mxu0 0.0
      %2267 = vmatmul.mubr.f32.gmra.mrb[0].mxu0 %v2051
      %v2268 = vpop.f32.mrb[0].mxu0
      %v2269 = vadd.f32 %v1969, %v2268
      %v2270 = vpop.f32.mrb[0].mxu0
      %2271 = vmatprep.mubr.f32.mxu0 0.0
      %2272 = vmatmul.mubr.f32.gmra.mrb[0].mxu0 %v2054
      %v2273 = vpop.f32.mrb[0].mxu0
      %v2274 = vadd.f32 %v1969, %v2273
      %v2275 = vpop.f32.mrb[0].mxu0
      %2276 = vmatprep.mubr.f32.mxu0 0.0
      %2277 = vmatmul.mubr.f32.gmra.mrb[0].mxu0 %v2057
      %v2278 = vpop.f32.mrb[0].mxu0
      %v2279 = vadd.f32 %v1969, %v2278
      %v2280 = vpop.f32.mrb[0].mxu0
      %2281 = vmatprep.mubr.f32.mxu0 0.0
      %2282 = vmatmul.mubr.f32.gmra.mrb[0].mxu0 %v2060
      %v2283 = vpop.f32.mrb[0].mxu0
      %v2284 = vadd.f32 %v1969, %v2283
      %v2285 = vpop.f32.mrb[0].mxu0
      %2286 = vmatprep.mubr.f32.mxu0 0.0
      %2287 = vmatmul.mubr.f32.gmra.mrb[0].mxu0 %v2063
      %v2288 = vpop.f32.mrb[0].mxu0
      %v2289 = vadd.f32 %v1969, %v2288
      %v2290 = vpop.f32.mrb[0].mxu0
      %2291 = vmatprep.mubr.f32.mxu0 0.0
      %2292 = vmatmul.mubr.f32.gmra.mrb[0].mxu0 %v2066
      %v2293 = vpop.f32.mrb[0].mxu0
      %v2294 = vadd.f32 %v1969, %v2293
      %v2295 = vpop.f32.mrb[0].mxu0
      %2296 = vdwg.mxu0
      %s2297 = scalar_lea.vmem [#allocation3], 32
      %2298 = vst.msk [vmem:[%s2297 + $0x8] sm:$0xff] %vm272, %v2139
      %2299 = vst.msk [vmem:[%s2297 + $0x10] sm:$0xff] %vm272, %v2144
      %2300 = vst.msk [vmem:[%s2297 + $0x28] sm:$0xff] %vm272, %v2149
      %2301 = vst.msk [vmem:[%s2297 + $0x30] sm:$0xff] %vm272, %v2154
      %2302 = vst.msk [vmem:[%s2297 + $0x48] sm:$0xff] %vm272, %v2159
      %2303 = vst.msk [vmem:[%s2297 + $0x50] sm:$0xff] %vm272, %v2164
      %2304 = vst.msk [vmem:[%s2297 + $0x68] sm:$0xff] %vm272, %v2169
      %2305 = vst.msk [vmem:[%s2297 + $0x70] sm:$0xff] %vm272, %v2174
      %2306 = vst.msk [vmem:[%s2297 + $0x88] sm:$0xff] %vm272, %v2179
      %2307 = vst.msk [vmem:[%s2297 + $0x90] sm:$0xff] %vm272, %v2184
      %2308 = vst.msk [vmem:[%s2297 + $0xa8] sm:$0xff] %vm272, %v2189
      %2309 = vst.msk [vmem:[%s2297 + $0xb0] sm:$0xff] %vm272, %v2194
      %2310 = vst.msk [vmem:[%s2297 + $0xc8] sm:$0xff] %vm272, %v2199
      %2311 = vst.msk [vmem:[%s2297 + $0xd0] sm:$0xff] %vm272, %v2204
      %2312 = vst.msk [vmem:[%s2297 + $0xe8] sm:$0xff] %vm272, %v2209
      %2313 = vst.msk [vmem:[%s2297 + $0xf0] sm:$0xff] %vm272, %v2214
      %2314 = vst.msk [vmem:[%s2297 + $0x108] sm:$0xff] %vm272, %v2219
      %2315 = vst.msk [vmem:[%s2297 + $0x110] sm:$0xff] %vm272, %v2224
      %2316 = vst.msk [vmem:[%s2297 + $0x128] sm:$0xff] %vm272, %v2229
      %2317 = vst.msk [vmem:[%s2297 + $0x130] sm:$0xff] %vm272, %v2234
      %2318 = vst.msk [vmem:[%s2297 + $0x148] sm:$0xff] %vm272, %v2239
      %2319 = vst.msk [vmem:[%s2297 + $0x150] sm:$0xff] %vm272, %v2244
      %2320 = vst.msk [vmem:[%s2297 + $0x168] sm:$0xff] %vm272, %v2249
      %2321 = vst.msk [vmem:[%s2297 + $0x170] sm:$0xff] %vm272, %v2254
      %2322 = vst.msk [vmem:[%s2297 + $0x188] sm:$0xff] %vm272, %v2259
      %2323 = vst.msk [vmem:[%s2297 + $0x190] sm:$0xff] %vm272, %v2264
      %2324 = vst.msk [vmem:[%s2297 + $0x1a8] sm:$0xff] %vm272, %v2269
      %2325 = vst.msk [vmem:[%s2297 + $0x1b0] sm:$0xff] %vm272, %v2274
      %2326 = vst.msk [vmem:[%s2297 + $0x1c8] sm:$0xff] %vm272, %v2279
      %2327 = vst.msk [vmem:[%s2297 + $0x1d0] sm:$0xff] %vm272, %v2284
      %2328 = vst.msk [vmem:[%s2297 + $0x1e8] sm:$0xff] %vm272, %v2289
      %2329 = vst.msk [vmem:[%s2297 + $0x1f0] sm:$0xff] %vm272, %v2294
      %v2330 = vld [vmem:[#allocation3 + $0x7] sm:$0xff]
      %v2331 = vld [vmem:[#allocation3 + $0xf] sm:$0xff]
      %v2332 = vld [vmem:[#allocation3 + $0x27] sm:$0xff]
      %v2333 = vld [vmem:[#allocation3 + $0x2f] sm:$0xff]
      %v2334 = vld [vmem:[#allocation3 + $0x47] sm:$0xff]
      %v2335 = vld [vmem:[#allocation3 + $0x4f] sm:$0xff]
      %v2336 = vld [vmem:[#allocation3 + $0x67] sm:$0xff]
      %v2337 = vld [vmem:[#allocation3 + $0x6f] sm:$0xff]
      %v2338 = vld [vmem:[#allocation3 + $0x87] sm:$0xff]
      %v2339 = vld [vmem:[#allocation3 + $0x8f] sm:$0xff]
      %v2340 = vld [vmem:[#allocation3 + $0xa7] sm:$0xff]
      %v2341 = vld [vmem:[#allocation3 + $0xaf] sm:$0xff]
      %v2342 = vld [vmem:[#allocation3 + $0xc7] sm:$0xff]
      %v2343 = vld [vmem:[#allocation3 + $0xcf] sm:$0xff]
      %v2344 = vld [vmem:[#allocation3 + $0xe7] sm:$0xff]
      %v2345 = vld [vmem:[#allocation3 + $0xef] sm:$0xff]
      %v2346 = vld [vmem:[#allocation3 + $0x107] sm:$0xff]
      %v2347 = vld [vmem:[#allocation3 + $0x10f] sm:$0xff]
      %v2348 = vld [vmem:[#allocation3 + $0x127] sm:$0xff]
      %v2349 = vld [vmem:[#allocation3 + $0x12f] sm:$0xff]
      %v2350 = vld [vmem:[#allocation3 + $0x147] sm:$0xff]
      %v2351 = vld [vmem:[#allocation3 + $0x14f] sm:$0xff]
      %v2352 = vld [vmem:[#allocation3 + $0x167] sm:$0xff]
      %v2353 = vld [vmem:[#allocation3 + $0x16f] sm:$0xff]
      %v2354 = vld [vmem:[#allocation3 + $0x187] sm:$0xff]
      %v2355 = vld [vmem:[#allocation3 + $0x18f] sm:$0xff]
      %v2356 = vld [vmem:[#allocation3 + $0x1a7] sm:$0xff]
      %v2357 = vld [vmem:[#allocation3 + $0x1af] sm:$0xff]
      %v2358 = vld [vmem:[#allocation3 + $0x1c7] sm:$0xff]
      %v2359 = vld [vmem:[#allocation3 + $0x1cf] sm:$0xff]
      %v2360 = vld [vmem:[#allocation3 + $0x1e7] sm:$0xff]
      %v2361 = vld [vmem:[#allocation3 + $0x1ef] sm:$0xff]
      %v2362 = vld [vmem:[#allocation3 + $0x8] sm:$0xff]
      %v2363 = vld [vmem:[#allocation3 + $0x10] sm:$0xff]
      %v2364 = vld [vmem:[#allocation3 + $0x28] sm:$0xff]
      %v2365 = vld [vmem:[#allocation3 + $0x30] sm:$0xff]
      %v2366 = vld [vmem:[#allocation3 + $0x48] sm:$0xff]
      %v2367 = vld [vmem:[#allocation3 + $0x50] sm:$0xff]
      %v2368 = vld [vmem:[#allocation3 + $0x68] sm:$0xff]
      %v2369 = vld [vmem:[#allocation3 + $0x70] sm:$0xff]
      %v2370 = vld [vmem:[#allocation3 + $0x88] sm:$0xff]
      %v2371 = vld [vmem:[#allocation3 + $0x90] sm:$0xff]
      %v2372 = vld [vmem:[#allocation3 + $0xa8] sm:$0xff]
      %v2373 = vld [vmem:[#allocation3 + $0xb0] sm:$0xff]
      %v2374 = vld [vmem:[#allocation3 + $0xc8] sm:$0xff]
      %v2375 = vld [vmem:[#allocation3 + $0xd0] sm:$0xff]
      %v2376 = vld [vmem:[#allocation3 + $0xe8] sm:$0xff]
      %v2377 = vld [vmem:[#allocation3 + $0xf0] sm:$0xff]
      %v2378 = vld [vmem:[#allocation3 + $0x108] sm:$0xff]
      %v2379 = vld [vmem:[#allocation3 + $0x110] sm:$0xff]
      %v2380 = vld [vmem:[#allocation3 + $0x128] sm:$0xff]
      %v2381 = vld [vmem:[#allocation3 + $0x130] sm:$0xff]
      %v2382 = vld [vmem:[#allocation3 + $0x148] sm:$0xff]
      %v2383 = vld [vmem:[#allocation3 + $0x150] sm:$0xff]
      %v2384 = vld [vmem:[#allocation3 + $0x168] sm:$0xff]
      %v2385 = vld [vmem:[#allocation3 + $0x170] sm:$0xff]
      %v2386 = vld [vmem:[#allocation3 + $0x188] sm:$0xff]
      %v2387 = vld [vmem:[#allocation3 + $0x190] sm:$0xff]
      %v2388 = vld [vmem:[#allocation3 + $0x1a8] sm:$0xff]
      %v2389 = vld [vmem:[#allocation3 + $0x1b0] sm:$0xff]
      %v2390 = vld [vmem:[#allocation3 + $0x1c8] sm:$0xff]
      %v2391 = vld [vmem:[#allocation3 + $0x1d0] sm:$0xff]
      %v2392 = vld [vmem:[#allocation3 + $0x1e8] sm:$0xff]
      %v2393 = vld [vmem:[#allocation3 + $0x1f0] sm:$0xff]
      %v2394 = vld [vmem:[#allocation3 + $0x9] sm:$0xff]
      %v2395 = vld [vmem:[#allocation3 + $0x11] sm:$0xff]
      %v2396 = vld [vmem:[#allocation3 + $0x29] sm:$0xff]
      %v2397 = vld [vmem:[#allocation3 + $0x31] sm:$0xff]
      %v2398 = vld [vmem:[#allocation3 + $0x49] sm:$0xff]
      %v2399 = vld [vmem:[#allocation3 + $0x51] sm:$0xff]
      %v2400 = vld [vmem:[#allocation3 + $0x69] sm:$0xff]
      %v2401 = vld [vmem:[#allocation3 + $0x71] sm:$0xff]
      %v2402 = vld [vmem:[#allocation3 + $0x89] sm:$0xff]
      %v2403 = vld [vmem:[#allocation3 + $0x91] sm:$0xff]
      %v2404 = vld [vmem:[#allocation3 + $0xa9] sm:$0xff]
      %v2405 = vld [vmem:[#allocation3 + $0xb1] sm:$0xff]
      %v2406 = vld [vmem:[#allocation3 + $0xc9] sm:$0xff]
      %v2407 = vld [vmem:[#allocation3 + $0xd1] sm:$0xff]
      %v2408 = vld [vmem:[#allocation3 + $0xe9] sm:$0xff]
      %v2409 = vld [vmem:[#allocation3 + $0xf1] sm:$0xff]
      %v2410 = vld [vmem:[#allocation3 + $0x109] sm:$0xff]
      %v2411 = vld [vmem:[#allocation3 + $0x111] sm:$0xff]
      %v2412 = vld [vmem:[#allocation3 + $0x129] sm:$0xff]
      %v2413 = vld [vmem:[#allocation3 + $0x131] sm:$0xff]
      %v2414 = vld [vmem:[#allocation3 + $0x149] sm:$0xff]
      %v2415 = vld [vmem:[#allocation3 + $0x151] sm:$0xff]
      %v2416 = vld [vmem:[#allocation3 + $0x169] sm:$0xff]
      %v2417 = vld [vmem:[#allocation3 + $0x171] sm:$0xff]
      %v2418 = vld [vmem:[#allocation3 + $0x189] sm:$0xff]
      %v2419 = vld [vmem:[#allocation3 + $0x191] sm:$0xff]
      %v2420 = vld [vmem:[#allocation3 + $0x1a9] sm:$0xff]
      %v2421 = vld [vmem:[#allocation3 + $0x1b1] sm:$0xff]
      %v2422 = vld [vmem:[#allocation3 + $0x1c9] sm:$0xff]
      %v2423 = vld [vmem:[#allocation3 + $0x1d1] sm:$0xff]
      %v2424 = vld [vmem:[#allocation3 + $0x1e9] sm:$0xff]
      %v2425 = vld [vmem:[#allocation3 + $0x1f1] sm:$0xff]
      %v2426 = vld [vmem:[%s2297 + $0x7] sm:$0xff]
      %v2427 = vld [vmem:[%s2297 + $0xf] sm:$0xff]
      %v2428 = vld [vmem:[%s2297 + $0x27] sm:$0xff]
      %v2429 = vld [vmem:[%s2297 + $0x2f] sm:$0xff]
      %v2430 = vld [vmem:[%s2297 + $0x47] sm:$0xff]
      %v2431 = vld [vmem:[%s2297 + $0x4f] sm:$0xff]
      %v2432 = vld [vmem:[%s2297 + $0x67] sm:$0xff]
      %v2433 = vld [vmem:[%s2297 + $0x6f] sm:$0xff]
      %v2434 = vld [vmem:[%s2297 + $0x87] sm:$0xff]
      %v2435 = vld [vmem:[%s2297 + $0x8f] sm:$0xff]
      %v2436 = vld [vmem:[%s2297 + $0xa7] sm:$0xff]
      %v2437 = vld [vmem:[%s2297 + $0xaf] sm:$0xff]
      %v2438 = vld [vmem:[%s2297 + $0xc7] sm:$0xff]
      %v2439 = vld [vmem:[%s2297 + $0xcf] sm:$0xff]
      %v2440 = vld [vmem:[%s2297 + $0xe7] sm:$0xff]
      %v2441 = vld [vmem:[%s2297 + $0xef] sm:$0xff]
      %v2442 = vld [vmem:[%s2297 + $0x107] sm:$0xff]
      %v2443 = vld [vmem:[%s2297 + $0x10f] sm:$0xff]
      %v2444 = vld [vmem:[%s2297 + $0x127] sm:$0xff]
      %v2445 = vld [vmem:[%s2297 + $0x12f] sm:$0xff]
      %v2446 = vld [vmem:[%s2297 + $0x147] sm:$0xff]
      %v2447 = vld [vmem:[%s2297 + $0x14f] sm:$0xff]
      %v2448 = vld [vmem:[%s2297 + $0x167] sm:$0xff]
      %v2449 = vld [vmem:[%s2297 + $0x16f] sm:$0xff]
      %v2450 = vld [vmem:[%s2297 + $0x187] sm:$0xff]
      %v2451 = vld [vmem:[%s2297 + $0x18f] sm:$0xff]
      %v2452 = vld [vmem:[%s2297 + $0x1a7] sm:$0xff]
      %v2453 = vld [vmem:[%s2297 + $0x1af] sm:$0xff]
      %v2454 = vld [vmem:[%s2297 + $0x1c7] sm:$0xff]
      %v2455 = vld [vmem:[%s2297 + $0x1cf] sm:$0xff]
      %v2456 = vld [vmem:[%s2297 + $0x1e7] sm:$0xff]
      %v2457 = vld [vmem:[%s2297 + $0x1ef] sm:$0xff]
      %v2458 = vld [vmem:[%s2297 + $0x8] sm:$0xff]
      %v2459 = vld [vmem:[%s2297 + $0x10] sm:$0xff]
      %v2460 = vld [vmem:[%s2297 + $0x28] sm:$0xff]
      %v2461 = vld [vmem:[%s2297 + $0x30] sm:$0xff]
      %v2462 = vld [vmem:[%s2297 + $0x48] sm:$0xff]
      %v2463 = vld [vmem:[%s2297 + $0x50] sm:$0xff]
      %v2464 = vld [vmem:[%s2297 + $0x68] sm:$0xff]
      %v2465 = vld [vmem:[%s2297 + $0x70] sm:$0xff]
      %v2466 = vld [vmem:[%s2297 + $0x88] sm:$0xff]
      %v2467 = vld [vmem:[%s2297 + $0x90] sm:$0xff]
      %v2468 = vld [vmem:[%s2297 + $0xa8] sm:$0xff]
      %v2469 = vld [vmem:[%s2297 + $0xb0] sm:$0xff]
      %v2470 = vld [vmem:[%s2297 + $0xc8] sm:$0xff]
      %v2471 = vld [vmem:[%s2297 + $0xd0] sm:$0xff]
      %v2472 = vld [vmem:[%s2297 + $0xe8] sm:$0xff]
      %v2473 = vld [vmem:[%s2297 + $0xf0] sm:$0xff]
      %v2474 = vld [vmem:[%s2297 + $0x108] sm:$0xff]
      %v2475 = vld [vmem:[%s2297 + $0x110] sm:$0xff]
      %v2476 = vld [vmem:[%s2297 + $0x128] sm:$0xff]
      %v2477 = vld [vmem:[%s2297 + $0x130] sm:$0xff]
      %v2478 = vld [vmem:[%s2297 + $0x148] sm:$0xff]
      %v2479 = vld [vmem:[%s2297 + $0x150] sm:$0xff]
      %v2480 = vld [vmem:[%s2297 + $0x168] sm:$0xff]
      %v2481 = vld [vmem:[%s2297 + $0x170] sm:$0xff]
      %v2482 = vld [vmem:[%s2297 + $0x188] sm:$0xff]
      %v2483 = vld [vmem:[%s2297 + $0x190] sm:$0xff]
      %v2484 = vld [vmem:[%s2297 + $0x1a8] sm:$0xff]
      %v2485 = vld [vmem:[%s2297 + $0x1b0] sm:$0xff]
      %v2486 = vld [vmem:[%s2297 + $0x1c8] sm:$0xff]
      %v2487 = vld [vmem:[%s2297 + $0x1d0] sm:$0xff]
      %v2488 = vld [vmem:[%s2297 + $0x1e8] sm:$0xff]
      %v2489 = vld [vmem:[%s2297 + $0x1f0] sm:$0xff]
      %v2490 = vld [vmem:[%s2297 + $0x9] sm:$0xff]
      %v2491 = vld [vmem:[%s2297 + $0x11] sm:$0xff]
      %v2492 = vld [vmem:[%s2297 + $0x29] sm:$0xff]
      %v2493 = vld [vmem:[%s2297 + $0x31] sm:$0xff]
      %v2494 = vld [vmem:[%s2297 + $0x49] sm:$0xff]
      %v2495 = vld [vmem:[%s2297 + $0x51] sm:$0xff]
      %v2496 = vld [vmem:[%s2297 + $0x69] sm:$0xff]
      %v2497 = vld [vmem:[%s2297 + $0x71] sm:$0xff]
      %v2498 = vld [vmem:[%s2297 + $0x89] sm:$0xff]
      %v2499 = vld [vmem:[%s2297 + $0x91] sm:$0xff]
      %v2500 = vld [vmem:[%s2297 + $0xa9] sm:$0xff]
      %v2501 = vld [vmem:[%s2297 + $0xb1] sm:$0xff]
      %v2502 = vld [vmem:[%s2297 + $0xc9] sm:$0xff]
      %v2503 = vld [vmem:[%s2297 + $0xd1] sm:$0xff]
      %v2504 = vld [vmem:[%s2297 + $0xe9] sm:$0xff]
      %v2505 = vld [vmem:[%s2297 + $0xf1] sm:$0xff]
      %v2506 = vld [vmem:[%s2297 + $0x109] sm:$0xff]
      %v2507 = vld [vmem:[%s2297 + $0x111] sm:$0xff]
      %v2508 = vld [vmem:[%s2297 + $0x129] sm:$0xff]
      %v2509 = vld [vmem:[%s2297 + $0x131] sm:$0xff]
      %v2510 = vld [vmem:[%s2297 + $0x149] sm:$0xff]
      %v2511 = vld [vmem:[%s2297 + $0x151] sm:$0xff]
      %v2512 = vld [vmem:[%s2297 + $0x169] sm:$0xff]
      %v2513 = vld [vmem:[%s2297 + $0x171] sm:$0xff]
      %v2514 = vld [vmem:[%s2297 + $0x189] sm:$0xff]
      %v2515 = vld [vmem:[%s2297 + $0x191] sm:$0xff]
      %v2516 = vld [vmem:[%s2297 + $0x1a9] sm:$0xff]
      %v2517 = vld [vmem:[%s2297 + $0x1b1] sm:$0xff]
      %v2518 = vld [vmem:[%s2297 + $0x1c9] sm:$0xff]
      %v2519 = vld [vmem:[%s2297 + $0x1d1] sm:$0xff]
      %v2520 = vld [vmem:[%s2297 + $0x1e9] sm:$0xff]
      %v2521 = vld [vmem:[%s2297 + $0x1f1] sm:$0xff]
      %s2522 = scalar_lea.vmem [#allocation3], 64
      %v2523 = vld [vmem:[%s2522 + $0x7] sm:$0xff]
      %v2524 = vld [vmem:[%s2522 + $0xf] sm:$0xff]
      %v2525 = vld [vmem:[%s2522 + $0x27] sm:$0xff]
      %v2526 = vld [vmem:[%s2522 + $0x2f] sm:$0xff]
      %v2527 = vld [vmem:[%s2522 + $0x47] sm:$0xff]
      %v2528 = vld [vmem:[%s2522 + $0x4f] sm:$0xff]
      %v2529 = vld [vmem:[%s2522 + $0x67] sm:$0xff]
      %v2530 = vld [vmem:[%s2522 + $0x6f] sm:$0xff]
      %v2531 = vld [vmem:[%s2522 + $0x87] sm:$0xff]
      %v2532 = vld [vmem:[%s2522 + $0x8f] sm:$0xff]
      %v2533 = vld [vmem:[%s2522 + $0xa7] sm:$0xff]
      %v2534 = vld [vmem:[%s2522 + $0xaf] sm:$0xff]
      %v2535 = vld [vmem:[%s2522 + $0xc7] sm:$0xff]
      %v2536 = vld [vmem:[%s2522 + $0xcf] sm:$0xff]
      %v2537 = vld [vmem:[%s2522 + $0xe7] sm:$0xff]
      %v2538 = vld [vmem:[%s2522 + $0xef] sm:$0xff]
      %v2539 = vld [vmem:[%s2522 + $0x107] sm:$0xff]
      %v2540 = vld [vmem:[%s2522 + $0x10f] sm:$0xff]
      %v2541 = vld [vmem:[%s2522 + $0x127] sm:$0xff]
      %v2542 = vld [vmem:[%s2522 + $0x12f] sm:$0xff]
      %v2543 = vld [vmem:[%s2522 + $0x147] sm:$0xff]
      %v2544 = vld [vmem:[%s2522 + $0x14f] sm:$0xff]
      %v2545 = vld [vmem:[%s2522 + $0x167] sm:$0xff]
      %v2546 = vld [vmem:[%s2522 + $0x16f] sm:$0xff]
      %v2547 = vld [vmem:[%s2522 + $0x187] sm:$0xff]
      %v2548 = vld [vmem:[%s2522 + $0x18f] sm:$0xff]
      %v2549 = vld [vmem:[%s2522 + $0x1a7] sm:$0xff]
      %v2550 = vld [vmem:[%s2522 + $0x1af] sm:$0xff]
      %v2551 = vld [vmem:[%s2522 + $0x1c7] sm:$0xff]
      %v2552 = vld [vmem:[%s2522 + $0x1cf] sm:$0xff]
      %v2553 = vld [vmem:[%s2522 + $0x1e7] sm:$0xff]
      %v2554 = vld [vmem:[%s2522 + $0x1ef] sm:$0xff]
      %v2555 = vld [vmem:[%s2522 + $0x8] sm:$0xff]
      %v2556 = vld [vmem:[%s2522 + $0x10] sm:$0xff]
      %v2557 = vld [vmem:[%s2522 + $0x28] sm:$0xff]
      %v2558 = vld [vmem:[%s2522 + $0x30] sm:$0xff]
      %v2559 = vld [vmem:[%s2522 + $0x48] sm:$0xff]
      %v2560 = vld [vmem:[%s2522 + $0x50] sm:$0xff]
      %v2561 = vld [vmem:[%s2522 + $0x68] sm:$0xff]
      %v2562 = vld [vmem:[%s2522 + $0x70] sm:$0xff]
      %v2563 = vld [vmem:[%s2522 + $0x88] sm:$0xff]
      %v2564 = vld [vmem:[%s2522 + $0x90] sm:$0xff]
      %v2565 = vld [vmem:[%s2522 + $0xa8] sm:$0xff]
      %v2566 = vld [vmem:[%s2522 + $0xb0] sm:$0xff]
      %v2567 = vld [vmem:[%s2522 + $0xc8] sm:$0xff]
      %v2568 = vld [vmem:[%s2522 + $0xd0] sm:$0xff]
      %v2569 = vld [vmem:[%s2522 + $0xe8] sm:$0xff]
      %v2570 = vld [vmem:[%s2522 + $0xf0] sm:$0xff]
      %v2571 = vld [vmem:[%s2522 + $0x108] sm:$0xff]
      %v2572 = vld [vmem:[%s2522 + $0x110] sm:$0xff]
      %v2573 = vld [vmem:[%s2522 + $0x128] sm:$0xff]
      %v2574 = vld [vmem:[%s2522 + $0x130] sm:$0xff]
      %v2575 = vld [vmem:[%s2522 + $0x148] sm:$0xff]
      %v2576 = vld [vmem:[%s2522 + $0x150] sm:$0xff]
      %v2577 = vld [vmem:[%s2522 + $0x168] sm:$0xff]
      %v2578 = vld [vmem:[%s2522 + $0x170] sm:$0xff]
      %v2579 = vld [vmem:[%s2522 + $0x188] sm:$0xff]
      %v2580 = vld [vmem:[%s2522 + $0x190] sm:$0xff]
      %v2581 = vld [vmem:[%s2522 + $0x1a8] sm:$0xff]
      %v2582 = vld [vmem:[%s2522 + $0x1b0] sm:$0xff]
      %v2583 = vld [vmem:[%s2522 + $0x1c8] sm:$0xff]
      %v2584 = vld [vmem:[%s2522 + $0x1d0] sm:$0xff]
      %v2585 = vld [vmem:[%s2522 + $0x1e8] sm:$0xff]
      %v2586 = vld [vmem:[%s2522 + $0x1f0] sm:$0xff]
      %v2587 = vld [vmem:[%s2522 + $0x9] sm:$0xff]
      %v2588 = vld [vmem:[%s2522 + $0x11] sm:$0xff]
      %v2589 = vld [vmem:[%s2522 + $0x29] sm:$0xff]
      %v2590 = vld [vmem:[%s2522 + $0x31] sm:$0xff]
      %v2591 = vld [vmem:[%s2522 + $0x49] sm:$0xff]
      %v2592 = vld [vmem:[%s2522 + $0x51] sm:$0xff]
      %v2593 = vld [vmem:[%s2522 + $0x69] sm:$0xff]
      %v2594 = vld [vmem:[%s2522 + $0x71] sm:$0xff]
      %v2595 = vld [vmem:[%s2522 + $0x89] sm:$0xff]
      %v2596 = vld [vmem:[%s2522 + $0x91] sm:$0xff]
      %v2597 = vld [vmem:[%s2522 + $0xa9] sm:$0xff]
      %v2598 = vld [vmem:[%s2522 + $0xb1] sm:$0xff]
      %v2599 = vld [vmem:[%s2522 + $0xc9] sm:$0xff]
      %v2600 = vld [vmem:[%s2522 + $0xd1] sm:$0xff]
      %v2601 = vld [vmem:[%s2522 + $0xe9] sm:$0xff]
      %v2602 = vld [vmem:[%s2522 + $0xf1] sm:$0xff]
      %v2603 = vld [vmem:[%s2522 + $0x109] sm:$0xff]
      %v2604 = vld [vmem:[%s2522 + $0x111] sm:$0xff]
      %v2605 = vld [vmem:[%s2522 + $0x129] sm:$0xff]
      %v2606 = vld [vmem:[%s2522 + $0x131] sm:$0xff]
      %v2607 = vld [vmem:[%s2522 + $0x149] sm:$0xff]
      %v2608 = vld [vmem:[%s2522 + $0x151] sm:$0xff]
      %v2609 = vld [vmem:[%s2522 + $0x169] sm:$0xff]
      %v2610 = vld [vmem:[%s2522 + $0x171] sm:$0xff]
      %v2611 = vld [vmem:[%s2522 + $0x189] sm:$0xff]
      %v2612 = vld [vmem:[%s2522 + $0x191] sm:$0xff]
      %v2613 = vld [vmem:[%s2522 + $0x1a9] sm:$0xff]
      %v2614 = vld [vmem:[%s2522 + $0x1b1] sm:$0xff]
      %v2615 = vld [vmem:[%s2522 + $0x1c9] sm:$0xff]
      %v2616 = vld [vmem:[%s2522 + $0x1d1] sm:$0xff]
      %v2617 = vld [vmem:[%s2522 + $0x1e9] sm:$0xff]
      %v2618 = vld [vmem:[%s2522 + $0x1f1] sm:$0xff]
      %2651 = vrot.lane.b32.xlu0 %v2362, 8
      %v2652 = vpop.permute.xlu0 %2651
      %2653 = vrot.lane.b32.xlu0 %v2363, 8
      %v2654 = vpop.permute.xlu0 %2653
      %2655 = vrot.lane.b32.xlu0 %v2364, 8
      %v2656 = vpop.permute.xlu0 %2655
      %2657 = vrot.lane.b32.xlu0 %v2365, 8
      %v2658 = vpop.permute.xlu0 %2657
      %2659 = vrot.lane.b32.xlu0 %v2366, 8
      %v2660 = vpop.permute.xlu0 %2659
      %2661 = vrot.lane.b32.xlu0 %v2367, 8
      %v2662 = vpop.permute.xlu0 %2661
      %2663 = vrot.lane.b32.xlu0 %v2368, 8
      %v2664 = vpop.permute.xlu0 %2663
      %2665 = vrot.lane.b32.xlu0 %v2369, 8
      %v2666 = vpop.permute.xlu0 %2665
      %2667 = vrot.lane.b32.xlu0 %v2370, 8
      %v2668 = vpop.permute.xlu0 %2667
      %2669 = vrot.lane.b32.xlu0 %v2371, 8
      %v2670 = vpop.permute.xlu0 %2669
      %2671 = vrot.lane.b32.xlu0 %v2372, 8
      %v2672 = vpop.permute.xlu0 %2671
      %2673 = vrot.lane.b32.xlu0 %v2373, 8
      %v2674 = vpop.permute.xlu0 %2673
      %2675 = vrot.lane.b32.xlu0 %v2374, 8
      %v2676 = vpop.permute.xlu0 %2675
      %2677 = vrot.lane.b32.xlu0 %v2375, 8
      %v2678 = vpop.permute.xlu0 %2677
      %2679 = vrot.lane.b32.xlu0 %v2376, 8
      %v2680 = vpop.permute.xlu0 %2679
      %2681 = vrot.lane.b32.xlu0 %v2377, 8
      %v2682 = vpop.permute.xlu0 %2681
      %2683 = vrot.lane.b32.xlu0 %v2378, 8
      %v2684 = vpop.permute.xlu0 %2683
      %2685 = vrot.lane.b32.xlu0 %v2379, 8
      %v2686 = vpop.permute.xlu0 %2685
      %2687 = vrot.lane.b32.xlu0 %v2380, 8
      %v2688 = vpop.permute.xlu0 %2687
      %2689 = vrot.lane.b32.xlu0 %v2381, 8
      %v2690 = vpop.permute.xlu0 %2689
      %2691 = vrot.lane.b32.xlu0 %v2382, 8
      %v2692 = vpop.permute.xlu0 %2691
      %2693 = vrot.lane.b32.xlu0 %v2383, 8
      %v2694 = vpop.permute.xlu0 %2693
      %2695 = vrot.lane.b32.xlu0 %v2384, 8
      %v2696 = vpop.permute.xlu0 %2695
      %2697 = vrot.lane.b32.xlu0 %v2385, 8
      %v2698 = vpop.permute.xlu0 %2697
      %2699 = vrot.lane.b32.xlu0 %v2386, 8
      %v2700 = vpop.permute.xlu0 %2699
      %2701 = vrot.lane.b32.xlu0 %v2387, 8
      %v2702 = vpop.permute.xlu0 %2701
      %2703 = vrot.lane.b32.xlu0 %v2388, 8
      %v2704 = vpop.permute.xlu0 %2703
      %2705 = vrot.lane.b32.xlu0 %v2389, 8
      %v2706 = vpop.permute.xlu0 %2705
      %2707 = vrot.lane.b32.xlu0 %v2390, 8
      %v2708 = vpop.permute.xlu0 %2707
      %2709 = vrot.lane.b32.xlu0 %v2391, 8
      %v2710 = vpop.permute.xlu0 %2709
      %2711 = vrot.lane.b32.xlu0 %v2392, 8
      %v2712 = vpop.permute.xlu0 %2711
      %2713 = vrot.lane.b32.xlu0 %v2393, 8
      %v2714 = vpop.permute.xlu0 %2713
      %2779 = vrot.lane.b32.xlu0 %v2394, 16
      %v2780 = vpop.permute.xlu0 %2779
      %2781 = vrot.lane.b32.xlu0 %v2395, 16
      %v2782 = vpop.permute.xlu0 %2781
      %2783 = vrot.lane.b32.xlu0 %v2396, 16
      %v2784 = vpop.permute.xlu0 %2783
      %2785 = vrot.lane.b32.xlu0 %v2397, 16
      %v2786 = vpop.permute.xlu0 %2785
      %2787 = vrot.lane.b32.xlu0 %v2398, 16
      %v2788 = vpop.permute.xlu0 %2787
      %2789 = vrot.lane.b32.xlu0 %v2399, 16
      %v2790 = vpop.permute.xlu0 %2789
      %2791 = vrot.lane.b32.xlu0 %v2400, 16
      %v2792 = vpop.permute.xlu0 %2791
      %2793 = vrot.lane.b32.xlu0 %v2401, 16
      %v2794 = vpop.permute.xlu0 %2793
      %2795 = vrot.lane.b32.xlu0 %v2402, 16
      %v2796 = vpop.permute.xlu0 %2795
      %2797 = vrot.lane.b32.xlu0 %v2403, 16
      %v2798 = vpop.permute.xlu0 %2797
      %2799 = vrot.lane.b32.xlu0 %v2404, 16
      %v2800 = vpop.permute.xlu0 %2799
      %2801 = vrot.lane.b32.xlu0 %v2405, 16
      %v2802 = vpop.permute.xlu0 %2801
      %2803 = vrot.lane.b32.xlu0 %v2406, 16
      %v2804 = vpop.permute.xlu0 %2803
      %2805 = vrot.lane.b32.xlu0 %v2407, 16
      %v2806 = vpop.permute.xlu0 %2805
      %2807 = vrot.lane.b32.xlu0 %v2408, 16
      %v2808 = vpop.permute.xlu0 %2807
      %2809 = vrot.lane.b32.xlu0 %v2409, 16
      %v2810 = vpop.permute.xlu0 %2809
      %2811 = vrot.lane.b32.xlu0 %v2410, 16
      %v2812 = vpop.permute.xlu0 %2811
      %2813 = vrot.lane.b32.xlu0 %v2411, 16
      %v2814 = vpop.permute.xlu0 %2813
      %2815 = vrot.lane.b32.xlu0 %v2412, 16
      %v2816 = vpop.permute.xlu0 %2815
      %2817 = vrot.lane.b32.xlu0 %v2413, 16
      %v2818 = vpop.permute.xlu0 %2817
      %2819 = vrot.lane.b32.xlu0 %v2414, 16
      %v2820 = vpop.permute.xlu0 %2819
      %2821 = vrot.lane.b32.xlu0 %v2415, 16
      %v2822 = vpop.permute.xlu0 %2821
      %2823 = vrot.lane.b32.xlu0 %v2416, 16
      %v2824 = vpop.permute.xlu0 %2823
      %2825 = vrot.lane.b32.xlu0 %v2417, 16
      %v2826 = vpop.permute.xlu0 %2825
      %2827 = vrot.lane.b32.xlu0 %v2418, 16
      %v2828 = vpop.permute.xlu0 %2827
      %2829 = vrot.lane.b32.xlu0 %v2419, 16
      %v2830 = vpop.permute.xlu0 %2829
      %2831 = vrot.lane.b32.xlu0 %v2420, 16
      %v2832 = vpop.permute.xlu0 %2831
      %2833 = vrot.lane.b32.xlu0 %v2421, 16
      %v2834 = vpop.permute.xlu0 %2833
      %2835 = vrot.lane.b32.xlu0 %v2422, 16
      %v2836 = vpop.permute.xlu0 %2835
      %2837 = vrot.lane.b32.xlu0 %v2423, 16
      %v2838 = vpop.permute.xlu0 %2837
      %2839 = vrot.lane.b32.xlu0 %v2424, 16
      %v2840 = vpop.permute.xlu0 %2839
      %2841 = vrot.lane.b32.xlu0 %v2425, 16
      %v2842 = vpop.permute.xlu0 %2841
      %2907 = vrot.lane.b32.xlu0 %v2426, 24
      %v2908 = vpop.permute.xlu0 %2907
      %2909 = vrot.lane.b32.xlu0 %v2427, 24
      %v2910 = vpop.permute.xlu0 %2909
      %2911 = vrot.lane.b32.xlu0 %v2428, 24
      %v2912 = vpop.permute.xlu0 %2911
      %2913 = vrot.lane.b32.xlu0 %v2429, 24
      %v2914 = vpop.permute.xlu0 %2913
      %2915 = vrot.lane.b32.xlu0 %v2430, 24
      %v2916 = vpop.permute.xlu0 %2915
      %2917 = vrot.lane.b32.xlu0 %v2431, 24
      %v2918 = vpop.permute.xlu0 %2917
      %2919 = vrot.lane.b32.xlu0 %v2432, 24
      %v2920 = vpop.permute.xlu0 %2919
      %2921 = vrot.lane.b32.xlu0 %v2433, 24
      %v2922 = vpop.permute.xlu0 %2921
      %2923 = vrot.lane.b32.xlu0 %v2434, 24
      %v2924 = vpop.permute.xlu0 %2923
      %2925 = vrot.lane.b32.xlu0 %v2435, 24
      %v2926 = vpop.permute.xlu0 %2925
      %2927 = vrot.lane.b32.xlu0 %v2436, 24
      %v2928 = vpop.permute.xlu0 %2927
      %2929 = vrot.lane.b32.xlu0 %v2437, 24
      %v2930 = vpop.permute.xlu0 %2929
      %2931 = vrot.lane.b32.xlu0 %v2438, 24
      %v2932 = vpop.permute.xlu0 %2931
      %2933 = vrot.lane.b32.xlu0 %v2439, 24
      %v2934 = vpop.permute.xlu0 %2933
      %2935 = vrot.lane.b32.xlu0 %v2440, 24
      %v2936 = vpop.permute.xlu0 %2935
      %2937 = vrot.lane.b32.xlu0 %v2441, 24
      %v2938 = vpop.permute.xlu0 %2937
      %2939 = vrot.lane.b32.xlu0 %v2442, 24
      %v2940 = vpop.permute.xlu0 %2939
      %2941 = vrot.lane.b32.xlu0 %v2443, 24
      %v2942 = vpop.permute.xlu0 %2941
      %2943 = vrot.lane.b32.xlu0 %v2444, 24
      %v2944 = vpop.permute.xlu0 %2943
      %2945 = vrot.lane.b32.xlu0 %v2445, 24
      %v2946 = vpop.permute.xlu0 %2945
      %2947 = vrot.lane.b32.xlu0 %v2446, 24
      %v2948 = vpop.permute.xlu0 %2947
      %2949 = vrot.lane.b32.xlu0 %v2447, 24
      %v2950 = vpop.permute.xlu0 %2949
      %2951 = vrot.lane.b32.xlu0 %v2448, 24
      %v2952 = vpop.permute.xlu0 %2951
      %2953 = vrot.lane.b32.xlu0 %v2449, 24
      %v2954 = vpop.permute.xlu0 %2953
      %2955 = vrot.lane.b32.xlu0 %v2450, 24
      %v2956 = vpop.permute.xlu0 %2955
      %2957 = vrot.lane.b32.xlu0 %v2451, 24
      %v2958 = vpop.permute.xlu0 %2957
      %2959 = vrot.lane.b32.xlu0 %v2452, 24
      %v2960 = vpop.permute.xlu0 %2959
      %2961 = vrot.lane.b32.xlu0 %v2453, 24
      %v2962 = vpop.permute.xlu0 %2961
      %2963 = vrot.lane.b32.xlu0 %v2454, 24
      %v2964 = vpop.permute.xlu0 %2963
      %2965 = vrot.lane.b32.xlu0 %v2455, 24
      %v2966 = vpop.permute.xlu0 %2965
      %2967 = vrot.lane.b32.xlu0 %v2456, 24
      %v2968 = vpop.permute.xlu0 %2967
      %2969 = vrot.lane.b32.xlu0 %v2457, 24
      %v2970 = vpop.permute.xlu0 %2969
      %3035 = vrot.lane.b32.xlu0 %v2458, 32
      %v3036 = vpop.permute.xlu0 %3035
      %3037 = vrot.lane.b32.xlu0 %v2459, 32
      %v3038 = vpop.permute.xlu0 %3037
      %3039 = vrot.lane.b32.xlu0 %v2460, 32
      %v3040 = vpop.permute.xlu0 %3039
      %3041 = vrot.lane.b32.xlu0 %v2461, 32
      %v3042 = vpop.permute.xlu0 %3041
      %3043 = vrot.lane.b32.xlu0 %v2462, 32
      %v3044 = vpop.permute.xlu0 %3043
      %3045 = vrot.lane.b32.xlu0 %v2463, 32
      %v3046 = vpop.permute.xlu0 %3045
      %3047 = vrot.lane.b32.xlu0 %v2464, 32
      %v3048 = vpop.permute.xlu0 %3047
      %3049 = vrot.lane.b32.xlu0 %v2465, 32
      %v3050 = vpop.permute.xlu0 %3049
      %3051 = vrot.lane.b32.xlu0 %v2466, 32
      %v3052 = vpop.permute.xlu0 %3051
      %3053 = vrot.lane.b32.xlu0 %v2467, 32
      %v3054 = vpop.permute.xlu0 %3053
      %3055 = vrot.lane.b32.xlu0 %v2468, 32
      %v3056 = vpop.permute.xlu0 %3055
      %3057 = vrot.lane.b32.xlu0 %v2469, 32
      %v3058 = vpop.permute.xlu0 %3057
      %3059 = vrot.lane.b32.xlu0 %v2470, 32
      %v3060 = vpop.permute.xlu0 %3059
      %3061 = vrot.lane.b32.xlu0 %v2471, 32
      %v3062 = vpop.permute.xlu0 %3061
      %3063 = vrot.lane.b32.xlu0 %v2472, 32
      %v3064 = vpop.permute.xlu0 %3063
      %3065 = vrot.lane.b32.xlu0 %v2473, 32
      %v3066 = vpop.permute.xlu0 %3065
      %3067 = vrot.lane.b32.xlu0 %v2474, 32
      %v3068 = vpop.permute.xlu0 %3067
      %3069 = vrot.lane.b32.xlu0 %v2475, 32
      %v3070 = vpop.permute.xlu0 %3069
      %3071 = vrot.lane.b32.xlu0 %v2476, 32
      %v3072 = vpop.permute.xlu0 %3071
      %3073 = vrot.lane.b32.xlu0 %v2477, 32
      %v3074 = vpop.permute.xlu0 %3073
      %3075 = vrot.lane.b32.xlu0 %v2478, 32
      %v3076 = vpop.permute.xlu0 %3075
      %3077 = vrot.lane.b32.xlu0 %v2479, 32
      %v3078 = vpop.permute.xlu0 %3077
      %3079 = vrot.lane.b32.xlu0 %v2480, 32
      %v3080 = vpop.permute.xlu0 %3079
      %3081 = vrot.lane.b32.xlu0 %v2481, 32
      %v3082 = vpop.permute.xlu0 %3081
      %3083 = vrot.lane.b32.xlu0 %v2482, 32
      %v3084 = vpop.permute.xlu0 %3083
      %3085 = vrot.lane.b32.xlu0 %v2483, 32
      %v3086 = vpop.permute.xlu0 %3085
      %3087 = vrot.lane.b32.xlu0 %v2484, 32
      %v3088 = vpop.permute.xlu0 %3087
      %3089 = vrot.lane.b32.xlu0 %v2485, 32
      %v3090 = vpop.permute.xlu0 %3089
      %3091 = vrot.lane.b32.xlu0 %v2486, 32
      %v3092 = vpop.permute.xlu0 %3091
      %3093 = vrot.lane.b32.xlu0 %v2487, 32
      %v3094 = vpop.permute.xlu0 %3093
      %3095 = vrot.lane.b32.xlu0 %v2488, 32
      %v3096 = vpop.permute.xlu0 %3095
      %3097 = vrot.lane.b32.xlu0 %v2489, 32
      %v3098 = vpop.permute.xlu0 %3097
      %3163 = vrot.lane.b32.xlu0 %v2490, 40
      %v3164 = vpop.permute.xlu0 %3163
      %3165 = vrot.lane.b32.xlu0 %v2491, 40
      %v3166 = vpop.permute.xlu0 %3165
      %3167 = vrot.lane.b32.xlu0 %v2492, 40
      %v3168 = vpop.permute.xlu0 %3167
      %3169 = vrot.lane.b32.xlu0 %v2493, 40
      %v3170 = vpop.permute.xlu0 %3169
      %3171 = vrot.lane.b32.xlu0 %v2494, 40
      %v3172 = vpop.permute.xlu0 %3171
      %3173 = vrot.lane.b32.xlu0 %v2495, 40
      %v3174 = vpop.permute.xlu0 %3173
      %3175 = vrot.lane.b32.xlu0 %v2496, 40
      %v3176 = vpop.permute.xlu0 %3175
      %3177 = vrot.lane.b32.xlu0 %v2497, 40
      %v3178 = vpop.permute.xlu0 %3177
      %3179 = vrot.lane.b32.xlu0 %v2498, 40
      %v3180 = vpop.permute.xlu0 %3179
      %3181 = vrot.lane.b32.xlu0 %v2499, 40
      %v3182 = vpop.permute.xlu0 %3181
      %3183 = vrot.lane.b32.xlu0 %v2500, 40
      %v3184 = vpop.permute.xlu0 %3183
      %3185 = vrot.lane.b32.xlu0 %v2501, 40
      %v3186 = vpop.permute.xlu0 %3185
      %3187 = vrot.lane.b32.xlu0 %v2502, 40
      %v3188 = vpop.permute.xlu0 %3187
      %3189 = vrot.lane.b32.xlu0 %v2503, 40
      %v3190 = vpop.permute.xlu0 %3189
      %3191 = vrot.lane.b32.xlu0 %v2504, 40
      %v3192 = vpop.permute.xlu0 %3191
      %3193 = vrot.lane.b32.xlu0 %v2505, 40
      %v3194 = vpop.permute.xlu0 %3193
      %3195 = vrot.lane.b32.xlu0 %v2506, 40
      %v3196 = vpop.permute.xlu0 %3195
      %3197 = vrot.lane.b32.xlu0 %v2507, 40
      %v3198 = vpop.permute.xlu0 %3197
      %3199 = vrot.lane.b32.xlu0 %v2508, 40
      %v3200 = vpop.permute.xlu0 %3199
      %3201 = vrot.lane.b32.xlu0 %v2509, 40
      %v3202 = vpop.permute.xlu0 %3201
      %3203 = vrot.lane.b32.xlu0 %v2510, 40
      %v3204 = vpop.permute.xlu0 %3203
      %3205 = vrot.lane.b32.xlu0 %v2511, 40
      %v3206 = vpop.permute.xlu0 %3205
      %3207 = vrot.lane.b32.xlu0 %v2512, 40
      %v3208 = vpop.permute.xlu0 %3207
      %3209 = vrot.lane.b32.xlu0 %v2513, 40
      %v3210 = vpop.permute.xlu0 %3209
      %3211 = vrot.lane.b32.xlu0 %v2514, 40
      %v3212 = vpop.permute.xlu0 %3211
      %3213 = vrot.lane.b32.xlu0 %v2515, 40
      %v3214 = vpop.permute.xlu0 %3213
      %3215 = vrot.lane.b32.xlu0 %v2516, 40
      %v3216 = vpop.permute.xlu0 %3215
      %3217 = vrot.lane.b32.xlu0 %v2517, 40
      %v3218 = vpop.permute.xlu0 %3217
      %3219 = vrot.lane.b32.xlu0 %v2518, 40
      %v3220 = vpop.permute.xlu0 %3219
      %3221 = vrot.lane.b32.xlu0 %v2519, 40
      %v3222 = vpop.permute.xlu0 %3221
      %3223 = vrot.lane.b32.xlu0 %v2520, 40
      %v3224 = vpop.permute.xlu0 %3223
      %3225 = vrot.lane.b32.xlu0 %v2521, 40
      %v3226 = vpop.permute.xlu0 %3225
      %3291 = vrot.lane.b32.xlu0 %v2523, 48
      %v3292 = vpop.permute.xlu0 %3291
      %3293 = vrot.lane.b32.xlu0 %v2524, 48
      %v3294 = vpop.permute.xlu0 %3293
      %3295 = vrot.lane.b32.xlu0 %v2525, 48
      %v3296 = vpop.permute.xlu0 %3295
      %3297 = vrot.lane.b32.xlu0 %v2526, 48
      %v3298 = vpop.permute.xlu0 %3297
      %3299 = vrot.lane.b32.xlu0 %v2527, 48
      %v3300 = vpop.permute.xlu0 %3299
      %3301 = vrot.lane.b32.xlu0 %v2528, 48
      %v3302 = vpop.permute.xlu0 %3301
      %3303 = vrot.lane.b32.xlu0 %v2529, 48
      %v3304 = vpop.permute.xlu0 %3303
      %3305 = vrot.lane.b32.xlu0 %v2530, 48
      %v3306 = vpop.permute.xlu0 %3305
      %3307 = vrot.lane.b32.xlu0 %v2531, 48
      %v3308 = vpop.permute.xlu0 %3307
      %3309 = vrot.lane.b32.xlu0 %v2532, 48
      %v3310 = vpop.permute.xlu0 %3309
      %3311 = vrot.lane.b32.xlu0 %v2533, 48
      %v3312 = vpop.permute.xlu0 %3311
      %3313 = vrot.lane.b32.xlu0 %v2534, 48
      %v3314 = vpop.permute.xlu0 %3313
      %3315 = vrot.lane.b32.xlu0 %v2535, 48
      %v3316 = vpop.permute.xlu0 %3315
      %3317 = vrot.lane.b32.xlu0 %v2536, 48
      %v3318 = vpop.permute.xlu0 %3317
      %3319 = vrot.lane.b32.xlu0 %v2537, 48
      %v3320 = vpop.permute.xlu0 %3319
      %3321 = vrot.lane.b32.xlu0 %v2538, 48
      %v3322 = vpop.permute.xlu0 %3321
      %3323 = vrot.lane.b32.xlu0 %v2539, 48
      %v3324 = vpop.permute.xlu0 %3323
      %3325 = vrot.lane.b32.xlu0 %v2540, 48
      %v3326 = vpop.permute.xlu0 %3325
      %3327 = vrot.lane.b32.xlu0 %v2541, 48
      %v3328 = vpop.permute.xlu0 %3327
      %3329 = vrot.lane.b32.xlu0 %v2542, 48
      %v3330 = vpop.permute.xlu0 %3329
      %3331 = vrot.lane.b32.xlu0 %v2543, 48
      %v3332 = vpop.permute.xlu0 %3331
      %3333 = vrot.lane.b32.xlu0 %v2544, 48
      %v3334 = vpop.permute.xlu0 %3333
      %3335 = vrot.lane.b32.xlu0 %v2545, 48
      %v3336 = vpop.permute.xlu0 %3335
      %3337 = vrot.lane.b32.xlu0 %v2546, 48
      %v3338 = vpop.permute.xlu0 %3337
      %3339 = vrot.lane.b32.xlu0 %v2547, 48
      %v3340 = vpop.permute.xlu0 %3339
      %3341 = vrot.lane.b32.xlu0 %v2548, 48
      %v3342 = vpop.permute.xlu0 %3341
      %3343 = vrot.lane.b32.xlu0 %v2549, 48
      %v3344 = vpop.permute.xlu0 %3343
      %3345 = vrot.lane.b32.xlu0 %v2550, 48
      %v3346 = vpop.permute.xlu0 %3345
      %3347 = vrot.lane.b32.xlu0 %v2551, 48
      %v3348 = vpop.permute.xlu0 %3347
      %3349 = vrot.lane.b32.xlu0 %v2552, 48
      %v3350 = vpop.permute.xlu0 %3349
      %3351 = vrot.lane.b32.xlu0 %v2553, 48
      %v3352 = vpop.permute.xlu0 %3351
      %3353 = vrot.lane.b32.xlu0 %v2554, 48
      %v3354 = vpop.permute.xlu0 %3353
      %3419 = vrot.lane.b32.xlu0 %v2555, 56
      %v3420 = vpop.permute.xlu0 %3419
      %3421 = vrot.lane.b32.xlu0 %v2556, 56
      %v3422 = vpop.permute.xlu0 %3421
      %3423 = vrot.lane.b32.xlu0 %v2557, 56
      %v3424 = vpop.permute.xlu0 %3423
      %3425 = vrot.lane.b32.xlu0 %v2558, 56
      %v3426 = vpop.permute.xlu0 %3425
      %3427 = vrot.lane.b32.xlu0 %v2559, 56
      %v3428 = vpop.permute.xlu0 %3427
      %3429 = vrot.lane.b32.xlu0 %v2560, 56
      %v3430 = vpop.permute.xlu0 %3429
      %3431 = vrot.lane.b32.xlu0 %v2561, 56
      %v3432 = vpop.permute.xlu0 %3431
      %3433 = vrot.lane.b32.xlu0 %v2562, 56
      %v3434 = vpop.permute.xlu0 %3433
      %3435 = vrot.lane.b32.xlu0 %v2563, 56
      %v3436 = vpop.permute.xlu0 %3435
      %3437 = vrot.lane.b32.xlu0 %v2564, 56
      %v3438 = vpop.permute.xlu0 %3437
      %3439 = vrot.lane.b32.xlu0 %v2565, 56
      %v3440 = vpop.permute.xlu0 %3439
      %3441 = vrot.lane.b32.xlu0 %v2566, 56
      %v3442 = vpop.permute.xlu0 %3441
      %3443 = vrot.lane.b32.xlu0 %v2567, 56
      %v3444 = vpop.permute.xlu0 %3443
      %3445 = vrot.lane.b32.xlu0 %v2568, 56
      %v3446 = vpop.permute.xlu0 %3445
      %3447 = vrot.lane.b32.xlu0 %v2569, 56
      %v3448 = vpop.permute.xlu0 %3447
      %3449 = vrot.lane.b32.xlu0 %v2570, 56
      %v3450 = vpop.permute.xlu0 %3449
      %3451 = vrot.lane.b32.xlu0 %v2571, 56
      %v3452 = vpop.permute.xlu0 %3451
      %3453 = vrot.lane.b32.xlu0 %v2572, 56
      %v3454 = vpop.permute.xlu0 %3453
      %3455 = vrot.lane.b32.xlu0 %v2573, 56
      %v3456 = vpop.permute.xlu0 %3455
      %3457 = vrot.lane.b32.xlu0 %v2574, 56
      %v3458 = vpop.permute.xlu0 %3457
      %3459 = vrot.lane.b32.xlu0 %v2575, 56
      %v3460 = vpop.permute.xlu0 %3459
      %3461 = vrot.lane.b32.xlu0 %v2576, 56
      %v3462 = vpop.permute.xlu0 %3461
      %3463 = vrot.lane.b32.xlu0 %v2577, 56
      %v3464 = vpop.permute.xlu0 %3463
      %3465 = vrot.lane.b32.xlu0 %v2578, 56
      %v3466 = vpop.permute.xlu0 %3465
      %3467 = vrot.lane.b32.xlu0 %v2579, 56
      %v3468 = vpop.permute.xlu0 %3467
      %3469 = vrot.lane.b32.xlu0 %v2580, 56
      %v3470 = vpop.permute.xlu0 %3469
      %3471 = vrot.lane.b32.xlu0 %v2581, 56
      %v3472 = vpop.permute.xlu0 %3471
      %3473 = vrot.lane.b32.xlu0 %v2582, 56
      %v3474 = vpop.permute.xlu0 %3473
      %3475 = vrot.lane.b32.xlu0 %v2583, 56
      %v3476 = vpop.permute.xlu0 %3475
      %3477 = vrot.lane.b32.xlu0 %v2584, 56
      %v3478 = vpop.permute.xlu0 %3477
      %3479 = vrot.lane.b32.xlu0 %v2585, 56
      %v3480 = vpop.permute.xlu0 %3479
      %3481 = vrot.lane.b32.xlu0 %v2586, 56
      %v3482 = vpop.permute.xlu0 %3481
      %3547 = vrot.lane.b32.xlu0 %v2587, 64
      %v3548 = vpop.permute.xlu0 %3547
      %3549 = vrot.lane.b32.xlu0 %v2588, 64
      %v3550 = vpop.permute.xlu0 %3549
      %3551 = vrot.lane.b32.xlu0 %v2589, 64
      %v3552 = vpop.permute.xlu0 %3551
      %3553 = vrot.lane.b32.xlu0 %v2590, 64
      %v3554 = vpop.permute.xlu0 %3553
      %3555 = vrot.lane.b32.xlu0 %v2591, 64
      %v3556 = vpop.permute.xlu0 %3555
      %3557 = vrot.lane.b32.xlu0 %v2592, 64
      %v3558 = vpop.permute.xlu0 %3557
      %3559 = vrot.lane.b32.xlu0 %v2593, 64
      %v3560 = vpop.permute.xlu0 %3559
      %3561 = vrot.lane.b32.xlu0 %v2594, 64
      %v3562 = vpop.permute.xlu0 %3561
      %3563 = vrot.lane.b32.xlu0 %v2595, 64
      %v3564 = vpop.permute.xlu0 %3563
      %3565 = vrot.lane.b32.xlu0 %v2596, 64
      %v3566 = vpop.permute.xlu0 %3565
      %3567 = vrot.lane.b32.xlu0 %v2597, 64
      %v3568 = vpop.permute.xlu0 %3567
      %3569 = vrot.lane.b32.xlu0 %v2598, 64
      %v3570 = vpop.permute.xlu0 %3569
      %3571 = vrot.lane.b32.xlu0 %v2599, 64
      %v3572 = vpop.permute.xlu0 %3571
      %3573 = vrot.lane.b32.xlu0 %v2600, 64
      %v3574 = vpop.permute.xlu0 %3573
      %3575 = vrot.lane.b32.xlu0 %v2601, 64
      %v3576 = vpop.permute.xlu0 %3575
      %3577 = vrot.lane.b32.xlu0 %v2602, 64
      %v3578 = vpop.permute.xlu0 %3577
      %3579 = vrot.lane.b32.xlu0 %v2603, 64
      %v3580 = vpop.permute.xlu0 %3579
      %3581 = vrot.lane.b32.xlu0 %v2604, 64
      %v3582 = vpop.permute.xlu0 %3581
      %3583 = vrot.lane.b32.xlu0 %v2605, 64
      %v3584 = vpop.permute.xlu0 %3583
      %3585 = vrot.lane.b32.xlu0 %v2606, 64
      %v3586 = vpop.permute.xlu0 %3585
      %3587 = vrot.lane.b32.xlu0 %v2607, 64
      %v3588 = vpop.permute.xlu0 %3587
      %3589 = vrot.lane.b32.xlu0 %v2608, 64
      %v3590 = vpop.permute.xlu0 %3589
      %3591 = vrot.lane.b32.xlu0 %v2609, 64
      %v3592 = vpop.permute.xlu0 %3591
      %3593 = vrot.lane.b32.xlu0 %v2610, 64
      %v3594 = vpop.permute.xlu0 %3593
      %3595 = vrot.lane.b32.xlu0 %v2611, 64
      %v3596 = vpop.permute.xlu0 %3595
      %3597 = vrot.lane.b32.xlu0 %v2612, 64
      %v3598 = vpop.permute.xlu0 %3597
      %3599 = vrot.lane.b32.xlu0 %v2613, 64
      %v3600 = vpop.permute.xlu0 %3599
      %3601 = vrot.lane.b32.xlu0 %v2614, 64
      %v3602 = vpop.permute.xlu0 %3601
      %3603 = vrot.lane.b32.xlu0 %v2615, 64
      %v3604 = vpop.permute.xlu0 %3603
      %3605 = vrot.lane.b32.xlu0 %v2616, 64
      %v3606 = vpop.permute.xlu0 %3605
      %3607 = vrot.lane.b32.xlu0 %v2617, 64
      %v3608 = vpop.permute.xlu0 %3607
      %3609 = vrot.lane.b32.xlu0 %v2618, 64
      %v3610 = vpop.permute.xlu0 %3609
      %v3643 = vsel %vm272, %v2330, %v2652
      %v3644 = vsel %vm272, %v2331, %v2654
      %v3645 = vsel %vm272, %v2332, %v2656
      %v3646 = vsel %vm272, %v2333, %v2658
      %v3647 = vsel %vm272, %v2334, %v2660
      %v3648 = vsel %vm272, %v2335, %v2662
      %v3649 = vsel %vm272, %v2336, %v2664
      %v3650 = vsel %vm272, %v2337, %v2666
      %v3651 = vsel %vm272, %v2338, %v2668
      %v3652 = vsel %vm272, %v2339, %v2670
      %v3653 = vsel %vm272, %v2340, %v2672
      %v3654 = vsel %vm272, %v2341, %v2674
      %v3655 = vsel %vm272, %v2342, %v2676
      %v3656 = vsel %vm272, %v2343, %v2678
      %v3657 = vsel %vm272, %v2344, %v2680
      %v3658 = vsel %vm272, %v2345, %v2682
      %v3659 = vsel %vm272, %v2346, %v2684
      %v3660 = vsel %vm272, %v2347, %v2686
      %v3661 = vsel %vm272, %v2348, %v2688
      %v3662 = vsel %vm272, %v2349, %v2690
      %v3663 = vsel %vm272, %v2350, %v2692
      %v3664 = vsel %vm272, %v2351, %v2694
      %v3665 = vsel %vm272, %v2352, %v2696
      %v3666 = vsel %vm272, %v2353, %v2698
      %v3667 = vsel %vm272, %v2354, %v2700
      %v3668 = vsel %vm272, %v2355, %v2702
      %v3669 = vsel %vm272, %v2356, %v2704
      %v3670 = vsel %vm272, %v2357, %v2706
      %v3671 = vsel %vm272, %v2358, %v2708
      %v3672 = vsel %vm272, %v2359, %v2710
      %v3673 = vsel %vm272, %v2360, %v2712
      %v3674 = vsel %vm272, %v2361, %v2714
      %v3675 = vsel %vm1794, %v3643, %v2780
      %v3676 = vsel %vm1794, %v3644, %v2782
      %v3677 = vsel %vm1794, %v3645, %v2784
      %v3678 = vsel %vm1794, %v3646, %v2786
      %v3679 = vsel %vm1794, %v3647, %v2788
      %v3680 = vsel %vm1794, %v3648, %v2790
      %v3681 = vsel %vm1794, %v3649, %v2792
      %v3682 = vsel %vm1794, %v3650, %v2794
      %v3683 = vsel %vm1794, %v3651, %v2796
      %v3684 = vsel %vm1794, %v3652, %v2798
      %v3685 = vsel %vm1794, %v3653, %v2800
      %v3686 = vsel %vm1794, %v3654, %v2802
      %v3687 = vsel %vm1794, %v3655, %v2804
      %v3688 = vsel %vm1794, %v3656, %v2806
      %v3689 = vsel %vm1794, %v3657, %v2808
      %v3690 = vsel %vm1794, %v3658, %v2810
      %v3691 = vsel %vm1794, %v3659, %v2812
      %v3692 = vsel %vm1794, %v3660, %v2814
      %v3693 = vsel %vm1794, %v3661, %v2816
      %v3694 = vsel %vm1794, %v3662, %v2818
      %v3695 = vsel %vm1794, %v3663, %v2820
      %v3696 = vsel %vm1794, %v3664, %v2822
      %v3697 = vsel %vm1794, %v3665, %v2824
      %v3698 = vsel %vm1794, %v3666, %v2826
      %v3699 = vsel %vm1794, %v3667, %v2828
      %v3700 = vsel %vm1794, %v3668, %v2830
      %v3701 = vsel %vm1794, %v3669, %v2832
      %v3702 = vsel %vm1794, %v3670, %v2834
      %v3703 = vsel %vm1794, %v3671, %v2836
      %v3704 = vsel %vm1794, %v3672, %v2838
      %v3705 = vsel %vm1794, %v3673, %v2840
      %v3706 = vsel %vm1794, %v3674, %v2842
      %v3707 = vsel %vm1860, %v3675, %v2908
      %v3708 = vsel %vm1860, %v3676, %v2910
      %v3709 = vsel %vm1860, %v3677, %v2912
      %v3710 = vsel %vm1860, %v3678, %v2914
      %v3711 = vsel %vm1860, %v3679, %v2916
      %v3712 = vsel %vm1860, %v3680, %v2918
      %v3713 = vsel %vm1860, %v3681, %v2920
      %v3714 = vsel %vm1860, %v3682, %v2922
      %v3715 = vsel %vm1860, %v3683, %v2924
      %v3716 = vsel %vm1860, %v3684, %v2926
      %v3717 = vsel %vm1860, %v3685, %v2928
      %v3718 = vsel %vm1860, %v3686, %v2930
      %v3719 = vsel %vm1860, %v3687, %v2932
      %v3720 = vsel %vm1860, %v3688, %v2934
      %v3721 = vsel %vm1860, %v3689, %v2936
      %v3722 = vsel %vm1860, %v3690, %v2938
      %v3723 = vsel %vm1860, %v3691, %v2940
      %v3724 = vsel %vm1860, %v3692, %v2942
      %v3725 = vsel %vm1860, %v3693, %v2944
      %v3726 = vsel %vm1860, %v3694, %v2946
      %v3727 = vsel %vm1860, %v3695, %v2948
      %v3728 = vsel %vm1860, %v3696, %v2950
      %v3729 = vsel %vm1860, %v3697, %v2952
      %v3730 = vsel %vm1860, %v3698, %v2954
      %v3731 = vsel %vm1860, %v3699, %v2956
      %v3732 = vsel %vm1860, %v3700, %v2958
      %v3733 = vsel %vm1860, %v3701, %v2960
      %v3734 = vsel %vm1860, %v3702, %v2962
      %v3735 = vsel %vm1860, %v3703, %v2964
      %v3736 = vsel %vm1860, %v3704, %v2966
      %v3737 = vsel %vm1860, %v3705, %v2968
      %v3738 = vsel %vm1860, %v3706, %v2970
      %v3739 = vsel %vm1926, %v3707, %v3036
      %v3740 = vsel %vm1926, %v3708, %v3038
      %v3741 = vsel %vm1926, %v3709, %v3040
      %v3742 = vsel %vm1926, %v3710, %v3042
      %v3743 = vsel %vm1926, %v3711, %v3044
      %v3744 = vsel %vm1926, %v3712, %v3046
      %v3745 = vsel %vm1926, %v3713, %v3048
      %v3746 = vsel %vm1926, %v3714, %v3050
      %v3747 = vsel %vm1926, %v3715, %v3052
      %v3748 = vsel %vm1926, %v3716, %v3054
      %v3749 = vsel %vm1926, %v3717, %v3056
      %v3750 = vsel %vm1926, %v3718, %v3058
      %v3751 = vsel %vm1926, %v3719, %v3060
      %v3752 = vsel %vm1926, %v3720, %v3062
      %v3753 = vsel %vm1926, %v3721, %v3064
      %v3754 = vsel %vm1926, %v3722, %v3066
      %v3755 = vsel %vm1926, %v3723, %v3068
      %v3756 = vsel %vm1926, %v3724, %v3070
      %v3757 = vsel %vm1926, %v3725, %v3072
      %v3758 = vsel %vm1926, %v3726, %v3074
      %v3759 = vsel %vm1926, %v3727, %v3076
      %v3760 = vsel %vm1926, %v3728, %v3078
      %v3761 = vsel %vm1926, %v3729, %v3080
      %v3762 = vsel %vm1926, %v3730, %v3082
      %v3763 = vsel %vm1926, %v3731, %v3084
      %v3764 = vsel %vm1926, %v3732, %v3086
      %v3765 = vsel %vm1926, %v3733, %v3088
      %v3766 = vsel %vm1926, %v3734, %v3090
      %v3767 = vsel %vm1926, %v3735, %v3092
      %v3768 = vsel %vm1926, %v3736, %v3094
      %v3769 = vsel %vm1926, %v3737, %v3096
      %v3770 = vsel %vm1926, %v3738, %v3098
      %vm3771 = vcmask 326656
      %v3772 = vsel %vm3771, %v3739, %v3164
      %v3773 = vsel %vm3771, %v3740, %v3166
      %v3774 = vsel %vm3771, %v3741, %v3168
      %v3775 = vsel %vm3771, %v3742, %v3170
      %v3776 = vsel %vm3771, %v3743, %v3172
      %v3777 = vsel %vm3771, %v3744, %v3174
      %v3778 = vsel %vm3771, %v3745, %v3176
      %v3779 = vsel %vm3771, %v3746, %v3178
      %v3780 = vsel %vm3771, %v3747, %v3180
      %v3781 = vsel %vm3771, %v3748, %v3182
      %v3782 = vsel %vm3771, %v3749, %v3184
      %v3783 = vsel %vm3771, %v3750, %v3186
      %v3784 = vsel %vm3771, %v3751, %v3188
      %v3785 = vsel %vm3771, %v3752, %v3190
      %v3786 = vsel %vm3771, %v3753, %v3192
      %v3787 = vsel %vm3771, %v3754, %v3194
      %v3788 = vsel %vm3771, %v3755, %v3196
      %v3789 = vsel %vm3771, %v3756, %v3198
      %v3790 = vsel %vm3771, %v3757, %v3200
      %v3791 = vsel %vm3771, %v3758, %v3202
      %v3792 = vsel %vm3771, %v3759, %v3204
      %v3793 = vsel %vm3771, %v3760, %v3206
      %v3794 = vsel %vm3771, %v3761, %v3208
      %v3795 = vsel %vm3771, %v3762, %v3210
      %v3796 = vsel %vm3771, %v3763, %v3212
      %v3797 = vsel %vm3771, %v3764, %v3214
      %v3798 = vsel %vm3771, %v3765, %v3216
      %v3799 = vsel %vm3771, %v3766, %v3218
      %v3800 = vsel %vm3771, %v3767, %v3220
      %v3801 = vsel %vm3771, %v3768, %v3222
      %v3802 = vsel %vm3771, %v3769, %v3224
      %v3803 = vsel %vm3771, %v3770, %v3226
      %vm3804 = vcmask 392192
      %v3805 = vsel %vm3804, %v3772, %v3292
      %v3806 = vsel %vm3804, %v3773, %v3294
      %v3807 = vsel %vm3804, %v3774, %v3296
      %v3808 = vsel %vm3804, %v3775, %v3298
      %v3809 = vsel %vm3804, %v3776, %v3300
      %v3810 = vsel %vm3804, %v3777, %v3302
      %v3811 = vsel %vm3804, %v3778, %v3304
      %v3812 = vsel %vm3804, %v3779, %v3306
      %v3813 = vsel %vm3804, %v3780, %v3308
      %v3814 = vsel %vm3804, %v3781, %v3310
      %v3815 = vsel %vm3804, %v3782, %v3312
      %v3816 = vsel %vm3804, %v3783, %v3314
      %v3817 = vsel %vm3804, %v3784, %v3316
      %v3818 = vsel %vm3804, %v3785, %v3318
      %v3819 = vsel %vm3804, %v3786, %v3320
      %v3820 = vsel %vm3804, %v3787, %v3322
      %v3821 = vsel %vm3804, %v3788, %v3324
      %v3822 = vsel %vm3804, %v3789, %v3326
      %v3823 = vsel %vm3804, %v3790, %v3328
      %v3824 = vsel %vm3804, %v3791, %v3330
      %v3825 = vsel %vm3804, %v3792, %v3332
      %v3826 = vsel %vm3804, %v3793, %v3334
      %v3827 = vsel %vm3804, %v3794, %v3336
      %v3828 = vsel %vm3804, %v3795, %v3338
      %v3829 = vsel %vm3804, %v3796, %v3340
      %v3830 = vsel %vm3804, %v3797, %v3342
      %v3831 = vsel %vm3804, %v3798, %v3344
      %v3832 = vsel %vm3804, %v3799, %v3346
      %v3833 = vsel %vm3804, %v3800, %v3348
      %v3834 = vsel %vm3804, %v3801, %v3350
      %v3835 = vsel %vm3804, %v3802, %v3352
      %v3836 = vsel %vm3804, %v3803, %v3354
      %vm3837 = vcmask 457728
      %v3838 = vsel %vm3837, %v3805, %v3420
      %v3839 = vsel %vm3837, %v3806, %v3422
      %v3840 = vsel %vm3837, %v3807, %v3424
      %v3841 = vsel %vm3837, %v3808, %v3426
      %v3842 = vsel %vm3837, %v3809, %v3428
      %v3843 = vsel %vm3837, %v3810, %v3430
      %v3844 = vsel %vm3837, %v3811, %v3432
      %v3845 = vsel %vm3837, %v3812, %v3434
      %v3846 = vsel %vm3837, %v3813, %v3436
      %v3847 = vsel %vm3837, %v3814, %v3438
      %v3848 = vsel %vm3837, %v3815, %v3440
      %v3849 = vsel %vm3837, %v3816, %v3442
      %v3850 = vsel %vm3837, %v3817, %v3444
      %v3851 = vsel %vm3837, %v3818, %v3446
      %v3852 = vsel %vm3837, %v3819, %v3448
      %v3853 = vsel %vm3837, %v3820, %v3450
      %v3854 = vsel %vm3837, %v3821, %v3452
      %v3855 = vsel %vm3837, %v3822, %v3454
      %v3856 = vsel %vm3837, %v3823, %v3456
      %v3857 = vsel %vm3837, %v3824, %v3458
      %v3858 = vsel %vm3837, %v3825, %v3460
      %v3859 = vsel %vm3837, %v3826, %v3462
      %v3860 = vsel %vm3837, %v3827, %v3464
      %v3861 = vsel %vm3837, %v3828, %v3466
      %v3862 = vsel %vm3837, %v3829, %v3468
      %v3863 = vsel %vm3837, %v3830, %v3470
      %v3864 = vsel %vm3837, %v3831, %v3472
      %v3865 = vsel %vm3837, %v3832, %v3474
      %v3866 = vsel %vm3837, %v3833, %v3476
      %v3867 = vsel %vm3837, %v3834, %v3478
      %v3868 = vsel %vm3837, %v3835, %v3480
      %v3869 = vsel %vm3837, %v3836, %v3482
      %vm3870 = vcmask 523264
      %v3871 = vsel %vm3870, %v3838, %v3548
      %v3872 = vsel %vm3870, %v3839, %v3550
      %v3873 = vsel %vm3870, %v3840, %v3552
      %v3874 = vsel %vm3870, %v3841, %v3554
      %v3875 = vsel %vm3870, %v3842, %v3556
      %v3876 = vsel %vm3870, %v3843, %v3558
      %v3877 = vsel %vm3870, %v3844, %v3560
      %v3878 = vsel %vm3870, %v3845, %v3562
      %v3879 = vsel %vm3870, %v3846, %v3564
      %v3880 = vsel %vm3870, %v3847, %v3566
      %v3881 = vsel %vm3870, %v3848, %v3568
      %v3882 = vsel %vm3870, %v3849, %v3570
      %v3883 = vsel %vm3870, %v3850, %v3572
      %v3884 = vsel %vm3870, %v3851, %v3574
      %v3885 = vsel %vm3870, %v3852, %v3576
      %v3886 = vsel %vm3870, %v3853, %v3578
      %v3887 = vsel %vm3870, %v3854, %v3580
      %v3888 = vsel %vm3870, %v3855, %v3582
      %v3889 = vsel %vm3870, %v3856, %v3584
      %v3890 = vsel %vm3870, %v3857, %v3586
      %v3891 = vsel %vm3870, %v3858, %v3588
      %v3892 = vsel %vm3870, %v3859, %v3590
      %v3893 = vsel %vm3870, %v3860, %v3592
      %v3894 = vsel %vm3870, %v3861, %v3594
      %v3895 = vsel %vm3870, %v3862, %v3596
      %v3896 = vsel %vm3870, %v3863, %v3598
      %v3897 = vsel %vm3870, %v3864, %v3600
      %v3898 = vsel %vm3870, %v3865, %v3602
      %v3899 = vsel %vm3870, %v3866, %v3604
      %v3900 = vsel %vm3870, %v3867, %v3606
      %v3901 = vsel %vm3870, %v3868, %v3608
      %v3902 = vsel %vm3870, %v3869, %v3610
      %v3903 = vld [vmem:[%s3] sm:$0xff]
      %v3904 = vld [vmem:[%s3 + $0x8] sm:$0xff]
      %v3905 = vld [vmem:[%s3 + $0x10] sm:$0xff]
      %v3906 = vld [vmem:[%s3 + $0x18] sm:$0xff]
      %v3907 = vld [vmem:[%s3 + $0x20] sm:$0xff]
      %v3908 = vld [vmem:[%s3 + $0x28] sm:$0xff]
      %v3909 = vld [vmem:[%s3 + $0x30] sm:$0xff]
      %v3910 = vld [vmem:[%s3 + $0x38] sm:$0xff]
      %v3911 = vld [vmem:[%s3 + $0x40] sm:$0xff]
      %v3912 = vld [vmem:[%s4] sm:$0x1]
      %v3914 = vlaneseq
      %v3915 = vshrl.u32 %v3914, 7
      %v3916 = vsub.s32 0, %v3915
      %v3917 = vrot.slane %v3912, %v3916
      %vm3919 = vcmask 588800
      %v3921 = vsel %vm3919, %v3871, 0
      %v3924 = vsel %vm3919, %v3872, 0
      %v3927 = vsel %vm3919, %v3873, 0
      %v3930 = vsel %vm3919, %v3874, 0
      %v3933 = vsel %vm3919, %v3875, 0
      %v3936 = vsel %vm3919, %v3876, 0
      %v3939 = vsel %vm3919, %v3877, 0
      %v3942 = vsel %vm3919, %v3878, 0
      %v3945 = vsel %vm3919, %v3879, 0
      %v3948 = vsel %vm3919, %v3880, 0
      %v3951 = vsel %vm3919, %v3881, 0
      %v3954 = vsel %vm3919, %v3882, 0
      %v3957 = vsel %vm3919, %v3883, 0
      %v3960 = vsel %vm3919, %v3884, 0
      %v3963 = vsel %vm3919, %v3885, 0
      %v3966 = vsel %vm3919, %v3886, 0
      %v3969 = vsel %vm3919, %v3887, 0
      %v3972 = vsel %vm3919, %v3888, 0
      %v3975 = vsel %vm3919, %v3889, 0
      %v3978 = vsel %vm3919, %v3890, 0
      %v3981 = vsel %vm3919, %v3891, 0
      %v3984 = vsel %vm3919, %v3892, 0
      %v3987 = vsel %vm3919, %v3893, 0
      %v3990 = vsel %vm3919, %v3894, 0
      %v3993 = vsel %vm3919, %v3895, 0
      %v3996 = vsel %vm3919, %v3896, 0
      %v3999 = vsel %vm3919, %v3897, 0
      %v4002 = vsel %vm3919, %v3898, 0
      %v4005 = vsel %vm3919, %v3899, 0
      %v4008 = vsel %vm3919, %v3900, 0
      %v4011 = vsel %vm3919, %v3901, 0
      %v4014 = vsel %vm3919, %v3902, 0
      %4016 = vmatprep.subr.mxu0 0.0
      %4017 = vmatpush1.msra.mxu0 %v3903
      %4018 = vmatprep.subr.mxu0 0.0
      %4019 = vmatpush1.msra.mxu0 %v3904
      %4020 = vmatprep.subr.mxu0 0.0
      %4021 = vmatpush1.msra.mxu0 %v3905
      %4022 = vmatprep.subr.mxu0 0.0
      %4023 = vmatpush1.msra.mxu0 %v3906
      %4024 = vmatprep.subr.mxu0 0.0
      %4025 = vmatpush1.msra.mxu0 %v3907
      %4026 = vmatprep.subr.mxu0 0.0
      %4027 = vmatpush1.msra.mxu0 %v3908
      %4028 = vmatprep.subr.mxu0 0.0
      %4029 = vmatpush1.msra.mxu0 %v3909
      %4030 = vmatprep.subr.mxu0 0.0
      %4031 = vmatpush1.msra.mxu0 %v3910
      %4032 = vmatprep.subr.mxu0 0.0
      %4033 = vmatpush1.msra.mxu0 %v3911
      %4034 = vmatprep.subr.mxu0 0.0
      %4035 = vmatpush1.msra.mxu0 0.0
      %4036 = vmatprep.subr.mxu0 0.0
      %4037 = vmatpush1.msra.mxu0 0.0
      %4038 = vmatprep.subr.mxu0 0.0
      %4039 = vmatpush1.msra.mxu0 0.0
      %4040 = vmatprep.subr.mxu0 0.0
      %4041 = vmatpush1.msra.mxu0 0.0
      %4042 = vmatprep.subr.mxu0 0.0
      %4043 = vmatpush1.msra.mxu0 0.0
      %4044 = vmatprep.subr.mxu0 0.0
      %4045 = vmatpush1.msra.mxu0 0.0
      %4046 = vmatprep.subr.mxu0 0.0
      %4047 = vmatpush1.msra.mxu0 0.0
      %4048 = vmatprep.subr.mxu0 0.0
      %4049 = vmatpush1.msra.mxu0 0.0
      %4050 = vmatprep.subr.mxu0 0.0
      %4051 = vmatpush1.msra.mxu0 0.0
      %4052 = vmatprep.subr.mxu0 0.0
      %4053 = vmatpush1.msra.mxu0 0.0
      %4054 = vmatprep.subr.mxu0 0.0
      %4055 = vmatpush1.msra.mxu0 0.0
      %4056 = vmatprep.subr.mxu0 0.0
      %4057 = vmatpush1.msra.mxu0 0.0
      %4058 = vmatprep.subr.mxu0 0.0
      %4059 = vmatpush1.msra.mxu0 0.0
      %4060 = vmatprep.subr.mxu0 0.0
      %4061 = vmatpush1.msra.mxu0 0.0
      %4062 = vmatprep.subr.mxu0 0.0
      %4063 = vmatpush1.msra.mxu0 0.0
      %4064 = vmatprep.subr.mxu0 0.0
      %4065 = vmatpush1.msra.mxu0 0.0
      %4066 = vmatprep.subr.mxu0 0.0
      %4067 = vmatpush1.msra.mxu0 0.0
      %4068 = vmatprep.subr.mxu0 0.0
      %4069 = vmatpush1.msra.mxu0 0.0
      %4070 = vmatprep.subr.mxu0 0.0
      %4071 = vmatpush1.msra.mxu0 0.0
      %4072 = vmatprep.subr.mxu0 0.0
      %4073 = vmatpush1.msra.mxu0 0.0
      %4074 = vmatprep.subr.mxu0 0.0
      %4075 = vmatpush1.msra.mxu0 0.0
      %4076 = vmatprep.subr.mxu0 0.0
      %4077 = vmatpush1.msra.mxu0 0.0
      %4078 = vmatprep.subr.mxu0 0.0
      %4079 = vmatpush1.msra.mxu0 0.0
      %4080 = vmatprep.mubr.f32.mxu0 0.0
      %4081 = vmatmul.mubr.f32.gmra.mrb[0].mxu0 %v3921
      %v4082 = vpop.f32.mrb[0].mxu0
      %v4083 = vadd.f32 %v3917, %v4082
      %v4084 = vpop.f32.mrb[0].mxu0
      %4085 = vmatprep.mubr.f32.mxu0 0.0
      %4086 = vmatmul.mubr.f32.gmra.mrb[0].mxu0 %v3924
      %v4087 = vpop.f32.mrb[0].mxu0
      %v4088 = vadd.f32 %v3917, %v4087
      %v4089 = vpop.f32.mrb[0].mxu0
      %4090 = vmatprep.mubr.f32.mxu0 0.0
      %4091 = vmatmul.mubr.f32.gmra.mrb[0].mxu0 %v3927
      %v4092 = vpop.f32.mrb[0].mxu0
      %v4093 = vadd.f32 %v3917, %v4092
      %v4094 = vpop.f32.mrb[0].mxu0
      %4095 = vmatprep.mubr.f32.mxu0 0.0
      %4096 = vmatmul.mubr.f32.gmra.mrb[0].mxu0 %v3930
      %v4097 = vpop.f32.mrb[0].mxu0
      %v4098 = vadd.f32 %v3917, %v4097
      %v4099 = vpop.f32.mrb[0].mxu0
      %4100 = vmatprep.mubr.f32.mxu0 0.0
      %4101 = vmatmul.mubr.f32.gmra.mrb[0].mxu0 %v3933
      %v4102 = vpop.f32.mrb[0].mxu0
      %v4103 = vadd.f32 %v3917, %v4102
      %v4104 = vpop.f32.mrb[0].mxu0
      %4105 = vmatprep.mubr.f32.mxu0 0.0
      %4106 = vmatmul.mubr.f32.gmra.mrb[0].mxu0 %v3936
      %v4107 = vpop.f32.mrb[0].mxu0
      %v4108 = vadd.f32 %v3917, %v4107
      %v4109 = vpop.f32.mrb[0].mxu0
      %4110 = vmatprep.mubr.f32.mxu0 0.0
      %4111 = vmatmul.mubr.f32.gmra.mrb[0].mxu0 %v3939
      %v4112 = vpop.f32.mrb[0].mxu0
      %v4113 = vadd.f32 %v3917, %v4112
      %v4114 = vpop.f32.mrb[0].mxu0
      %4115 = vmatprep.mubr.f32.mxu0 0.0
      %4116 = vmatmul.mubr.f32.gmra.mrb[0].mxu0 %v3942
      %v4117 = vpop.f32.mrb[0].mxu0
      %v4118 = vadd.f32 %v3917, %v4117
      %v4119 = vpop.f32.mrb[0].mxu0
      %4120 = vmatprep.mubr.f32.mxu0 0.0
      %4121 = vmatmul.mubr.f32.gmra.mrb[0].mxu0 %v3945
      %v4122 = vpop.f32.mrb[0].mxu0
      %v4123 = vadd.f32 %v3917, %v4122
      %v4124 = vpop.f32.mrb[0].mxu0
      %4125 = vmatprep.mubr.f32.mxu0 0.0
      %4126 = vmatmul.mubr.f32.gmra.mrb[0].mxu0 %v3948
      %v4127 = vpop.f32.mrb[0].mxu0
      %v4128 = vadd.f32 %v3917, %v4127
      %v4129 = vpop.f32.mrb[0].mxu0
      %4130 = vmatprep.mubr.f32.mxu0 0.0
      %4131 = vmatmul.mubr.f32.gmra.mrb[0].mxu0 %v3951
      %v4132 = vpop.f32.mrb[0].mxu0
      %v4133 = vadd.f32 %v3917, %v4132
      %v4134 = vpop.f32.mrb[0].mxu0
      %4135 = vmatprep.mubr.f32.mxu0 0.0
      %4136 = vmatmul.mubr.f32.gmra.mrb[0].mxu0 %v3954
      %v4137 = vpop.f32.mrb[0].mxu0
      %v4138 = vadd.f32 %v3917, %v4137
      %v4139 = vpop.f32.mrb[0].mxu0
      %4140 = vmatprep.mubr.f32.mxu0 0.0
      %4141 = vmatmul.mubr.f32.gmra.mrb[0].mxu0 %v3957
      %v4142 = vpop.f32.mrb[0].mxu0
      %v4143 = vadd.f32 %v3917, %v4142
      %v4144 = vpop.f32.mrb[0].mxu0
      %4145 = vmatprep.mubr.f32.mxu0 0.0
      %4146 = vmatmul.mubr.f32.gmra.mrb[0].mxu0 %v3960
      %v4147 = vpop.f32.mrb[0].mxu0
      %v4148 = vadd.f32 %v3917, %v4147
      %v4149 = vpop.f32.mrb[0].mxu0
      %4150 = vmatprep.mubr.f32.mxu0 0.0
      %4151 = vmatmul.mubr.f32.gmra.mrb[0].mxu0 %v3963
      %v4152 = vpop.f32.mrb[0].mxu0
      %v4153 = vadd.f32 %v3917, %v4152
      %v4154 = vpop.f32.mrb[0].mxu0
      %4155 = vmatprep.mubr.f32.mxu0 0.0
      %4156 = vmatmul.mubr.f32.gmra.mrb[0].mxu0 %v3966
      %v4157 = vpop.f32.mrb[0].mxu0
      %v4158 = vadd.f32 %v3917, %v4157
      %v4159 = vpop.f32.mrb[0].mxu0
      %4160 = vmatprep.mubr.f32.mxu0 0.0
      %4161 = vmatmul.mubr.f32.gmra.mrb[0].mxu0 %v3969
      %v4162 = vpop.f32.mrb[0].mxu0
      %v4163 = vadd.f32 %v3917, %v4162
      %v4164 = vpop.f32.mrb[0].mxu0
      %4165 = vmatprep.mubr.f32.mxu0 0.0
      %4166 = vmatmul.mubr.f32.gmra.mrb[0].mxu0 %v3972
      %v4167 = vpop.f32.mrb[0].mxu0
      %v4168 = vadd.f32 %v3917, %v4167
      %v4169 = vpop.f32.mrb[0].mxu0
      %4170 = vmatprep.mubr.f32.mxu0 0.0
      %4171 = vmatmul.mubr.f32.gmra.mrb[0].mxu0 %v3975
      %v4172 = vpop.f32.mrb[0].mxu0
      %v4173 = vadd.f32 %v3917, %v4172
      %v4174 = vpop.f32.mrb[0].mxu0
      %4175 = vmatprep.mubr.f32.mxu0 0.0
      %4176 = vmatmul.mubr.f32.gmra.mrb[0].mxu0 %v3978
      %v4177 = vpop.f32.mrb[0].mxu0
      %v4178 = vadd.f32 %v3917, %v4177
      %v4179 = vpop.f32.mrb[0].mxu0
      %4180 = vmatprep.mubr.f32.mxu0 0.0
      %4181 = vmatmul.mubr.f32.gmra.mrb[0].mxu0 %v3981
      %v4182 = vpop.f32.mrb[0].mxu0
      %v4183 = vadd.f32 %v3917, %v4182
      %v4184 = vpop.f32.mrb[0].mxu0
      %4185 = vmatprep.mubr.f32.mxu0 0.0
      %4186 = vmatmul.mubr.f32.gmra.mrb[0].mxu0 %v3984
      %v4187 = vpop.f32.mrb[0].mxu0
      %v4188 = vadd.f32 %v3917, %v4187
      %v4189 = vpop.f32.mrb[0].mxu0
      %4190 = vmatprep.mubr.f32.mxu0 0.0
      %4191 = vmatmul.mubr.f32.gmra.mrb[0].mxu0 %v3987
      %v4192 = vpop.f32.mrb[0].mxu0
      %v4193 = vadd.f32 %v3917, %v4192
      %v4194 = vpop.f32.mrb[0].mxu0
      %4195 = vmatprep.mubr.f32.mxu0 0.0
      %4196 = vmatmul.mubr.f32.gmra.mrb[0].mxu0 %v3990
      %v4197 = vpop.f32.mrb[0].mxu0
      %v4198 = vadd.f32 %v3917, %v4197
      %v4199 = vpop.f32.mrb[0].mxu0
      %4200 = vmatprep.mubr.f32.mxu0 0.0
      %4201 = vmatmul.mubr.f32.gmra.mrb[0].mxu0 %v3993
      %v4202 = vpop.f32.mrb[0].mxu0
      %v4203 = vadd.f32 %v3917, %v4202
      %v4204 = vpop.f32.mrb[0].mxu0
      %4205 = vmatprep.mubr.f32.mxu0 0.0
      %4206 = vmatmul.mubr.f32.gmra.mrb[0].mxu0 %v3996
      %v4207 = vpop.f32.mrb[0].mxu0
      %v4208 = vadd.f32 %v3917, %v4207
      %v4209 = vpop.f32.mrb[0].mxu0
      %4210 = vmatprep.mubr.f32.mxu0 0.0
      %4211 = vmatmul.mubr.f32.gmra.mrb[0].mxu0 %v3999
      %v4212 = vpop.f32.mrb[0].mxu0
      %v4213 = vadd.f32 %v3917, %v4212
      %v4214 = vpop.f32.mrb[0].mxu0
      %4215 = vmatprep.mubr.f32.mxu0 0.0
      %4216 = vmatmul.mubr.f32.gmra.mrb[0].mxu0 %v4002
      %v4217 = vpop.f32.mrb[0].mxu0
      %v4218 = vadd.f32 %v3917, %v4217
      %v4219 = vpop.f32.mrb[0].mxu0
      %4220 = vmatprep.mubr.f32.mxu0 0.0
      %4221 = vmatmul.mubr.f32.gmra.mrb[0].mxu0 %v4005
      %v4222 = vpop.f32.mrb[0].mxu0
      %v4223 = vadd.f32 %v3917, %v4222
      %v4224 = vpop.f32.mrb[0].mxu0
      %4225 = vmatprep.mubr.f32.mxu0 0.0
      %4226 = vmatmul.mubr.f32.gmra.mrb[0].mxu0 %v4008
      %v4227 = vpop.f32.mrb[0].mxu0
      %v4228 = vadd.f32 %v3917, %v4227
      %v4229 = vpop.f32.mrb[0].mxu0
      %4230 = vmatprep.mubr.f32.mxu0 0.0
      %4231 = vmatmul.mubr.f32.gmra.mrb[0].mxu0 %v4011
      %v4232 = vpop.f32.mrb[0].mxu0
      %v4233 = vadd.f32 %v3917, %v4232
      %v4234 = vpop.f32.mrb[0].mxu0
      %4235 = vmatprep.mubr.f32.mxu0 0.0
      %4236 = vmatmul.mubr.f32.gmra.mrb[0].mxu0 %v4014
      %v4237 = vpop.f32.mrb[0].mxu0
      %v4238 = vadd.f32 %v3917, %v4237
      %v4239 = vpop.f32.mrb[0].mxu0
      %4240 = vdwg.mxu0
      %v4241 = vmax.f32 %v4083, 0.0
      %v4242 = vmax.f32 %v4088, 0.0
      %v4243 = vmax.f32 %v4093, 0.0
      %v4244 = vmax.f32 %v4098, 0.0
      %v4245 = vmax.f32 %v4103, 0.0
      %v4246 = vmax.f32 %v4108, 0.0
      %v4247 = vmax.f32 %v4113, 0.0
      %v4248 = vmax.f32 %v4118, 0.0
      %v4249 = vmax.f32 %v4123, 0.0
      %v4250 = vmax.f32 %v4128, 0.0
      %v4251 = vmax.f32 %v4133, 0.0
      %v4252 = vmax.f32 %v4138, 0.0
      %v4253 = vmax.f32 %v4143, 0.0
      %v4254 = vmax.f32 %v4148, 0.0
      %v4255 = vmax.f32 %v4153, 0.0
      %v4256 = vmax.f32 %v4158, 0.0
      %v4257 = vmax.f32 %v4163, 0.0
      %v4258 = vmax.f32 %v4168, 0.0
      %v4259 = vmax.f32 %v4173, 0.0
      %v4260 = vmax.f32 %v4178, 0.0
      %v4261 = vmax.f32 %v4183, 0.0
      %v4262 = vmax.f32 %v4188, 0.0
      %v4263 = vmax.f32 %v4193, 0.0
      %v4264 = vmax.f32 %v4198, 0.0
      %v4265 = vmax.f32 %v4203, 0.0
      %v4266 = vmax.f32 %v4208, 0.0
      %v4267 = vmax.f32 %v4213, 0.0
      %v4268 = vmax.f32 %v4218, 0.0
      %v4269 = vmax.f32 %v4223, 0.0
      %v4270 = vmax.f32 %v4228, 0.0
      %v4271 = vmax.f32 %v4233, 0.0
      %v4272 = vmax.f32 %v4238, 0.0
      %4273 = vst.msk [vmem:[%s224] sm:$0xff] %vm272, %v4241
      %4274 = vst.msk [vmem:[%s224 + $0x8] sm:$0xff] %vm272, %v4242
      %4275 = vst.msk [vmem:[%s224 + $0x10] sm:$0xff] %vm272, %v4243
      %4276 = vst.msk [vmem:[%s224 + $0x18] sm:$0xff] %vm272, %v4244
      %4277 = vst.msk [vmem:[%s224 + $0x20] sm:$0xff] %vm272, %v4245
      %4278 = vst.msk [vmem:[%s224 + $0x28] sm:$0xff] %vm272, %v4246
      %4279 = vst.msk [vmem:[%s224 + $0x30] sm:$0xff] %vm272, %v4247
      %4280 = vst.msk [vmem:[%s224 + $0x38] sm:$0xff] %vm272, %v4248
      %4281 = vst.msk [vmem:[%s224 + $0x40] sm:$0xff] %vm272, %v4249
      %4282 = vst.msk [vmem:[%s224 + $0x48] sm:$0xff] %vm272, %v4250
      %4283 = vst.msk [vmem:[%s224 + $0x50] sm:$0xff] %vm272, %v4251
      %4284 = vst.msk [vmem:[%s224 + $0x58] sm:$0xff] %vm272, %v4252
      %4285 = vst.msk [vmem:[%s224 + $0x60] sm:$0xff] %vm272, %v4253
      %4286 = vst.msk [vmem:[%s224 + $0x68] sm:$0xff] %vm272, %v4254
      %4287 = vst.msk [vmem:[%s224 + $0x70] sm:$0xff] %vm272, %v4255
      %4288 = vst.msk [vmem:[%s224 + $0x78] sm:$0xff] %vm272, %v4256
      %4289 = vst.msk [vmem:[%s224 + $0x80] sm:$0xff] %vm272, %v4257
      %4290 = vst.msk [vmem:[%s224 + $0x88] sm:$0xff] %vm272, %v4258
      %4291 = vst.msk [vmem:[%s224 + $0x90] sm:$0xff] %vm272, %v4259
      %4292 = vst.msk [vmem:[%s224 + $0x98] sm:$0xff] %vm272, %v4260
      %4293 = vst.msk [vmem:[%s224 + $0xa0] sm:$0xff] %vm272, %v4261
      %4294 = vst.msk [vmem:[%s224 + $0xa8] sm:$0xff] %vm272, %v4262
      %4295 = vst.msk [vmem:[%s224 + $0xb0] sm:$0xff] %vm272, %v4263
      %4296 = vst.msk [vmem:[%s224 + $0xb8] sm:$0xff] %vm272, %v4264
      %4297 = vst.msk [vmem:[%s224 + $0xc0] sm:$0xff] %vm272, %v4265
      %4298 = vst.msk [vmem:[%s224 + $0xc8] sm:$0xff] %vm272, %v4266
      %4299 = vst.msk [vmem:[%s224 + $0xd0] sm:$0xff] %vm272, %v4267
      %4300 = vst.msk [vmem:[%s224 + $0xd8] sm:$0xff] %vm272, %v4268
      %4301 = vst.msk [vmem:[%s224 + $0xe0] sm:$0xff] %vm272, %v4269
      %4302 = vst.msk [vmem:[%s224 + $0xe8] sm:$0xff] %vm272, %v4270
      %4303 = vst.msk [vmem:[%s224 + $0xf0] sm:$0xff] %vm272, %v4271
      %4304 = vst.msk [vmem:[%s224 + $0xf8] sm:$0xff] %vm272, %v4272
      %p4305 = scmp.lt.s32.totalorder %s16, 1
      %s4306 = scalar_select %p4305, %s16, 1
      %s4307 = smul.addr %s4306, 32
      %s4308 = smul.addr %s4307, 8
      %s4309 = scalar_lea.vmem %s5, %s4308
      // Predicated region
      $region41: #{tpu_custom_call.1} parent=39 // pred_check
        %p4310 = pneg %p144
      $region42: #{tpu_custom_call.1} parent=39 // pred_check_branch
        %4312 = sbr.rel (%p4310) target = $region44
      $region43: #{tpu_custom_call.1} parent=39 // pred_region
        _
      $region44: #{tpu_custom_call.1} parent=39 // pred_fallthru
        _
    $region40: #{tpu_custom_call.1} parent=5 // pred_fallthru
      _
    %p4313 = scmp.le.s32.totalorder 2, %s11
    // Predicated region
    $region45: #{tpu_custom_call.1} parent=5 // pred_check
      %p4314 = pneg %p4313
    $region46: #{tpu_custom_call.1} parent=5 // pred_check_branch
      %4316 = sbr.rel (%p4314) target = $region48
    $region47: #{tpu_custom_call.1} parent=5 // pred_region
      %s4317 = ssub.s32 %s11, 2
      // Predicated region
      $region49: #{tpu_custom_call.1} parent=47 // pred_check
        %p4318 = pneg %p150
      $region50: #{tpu_custom_call.1} parent=47 // pred_check_branch
        %4320 = sbr.rel (%p4318) target = $region52
      $region51: #{tpu_custom_call.1} parent=47 // pred_region
        %p4321 = scmp.lt.s32.totalorder %s17, 1
        %s4322 = scalar_select %p4321, %s17, 1
        %s4323 = smul.addr %s4322, 32
        %s4324 = smul.addr %s4323, 8
        %s4325 = scalar_lea.vmem %s5, %s4324
      $region52: #{tpu_custom_call.1} parent=47 // pred_fallthru
        _
    $region48: #{tpu_custom_call.1} parent=5 // pred_fallthru
      _
  $region6: #{tpu_custom_call.1} parent=0 // loop_footer
    %s15 = sadd.s32 1, %s11
  $region7: #{tpu_custom_call.1} parent=0 // loop_footer_branch
    %10 = sbr.rel target = $region3
  $region8: #{tpu_custom_call.1} parent=0 // loop_exit
    _

</llo_original>
